<compile_context>
chip_gen: v5e
topology: v5e:2x2
jax: 0.10.0
libtpu: 0.0.40
codegen_flags: <defaults>
</compile_context>

<pallas_src>
import jax
import jax.numpy as jnp
import numpy as np
from jax.experimental import pallas as pl
from jax.experimental.pallas import tpu as pltpu


def make_scgen_vae_kernel(z_dim):
    """Kernel factory closed over the true latent width Z."""

    def kernel(x_ref, w1_ref, b1_ref, wmulv_ref, bmulv_ref, eps_ref,
               wd1_ref, bd1_ref, wd2_ref, bd2_ref, recon_ref, mulv_ref):
        # --- encoder hidden layer (bf16 MXU operands, f32 accumulate) ---
        x = x_ref[...]  # already bf16
        h = jnp.dot(x, w1_ref[...], preferred_element_type=jnp.float32) + b1_ref[...]
        h = jnp.maximum(h, 0.0)  # ReLU in f32

        # --- fused mu||logvar projection: one lane-dense (H, SLAB) matmul ---
        mulv = (
            jnp.dot(h.astype(jnp.bfloat16), wmulv_ref[...],
                    preferred_element_type=jnp.float32)
            + bmulv_ref[...]
        )
        mu = mulv[:, :z_dim]                 # lanes [0, Z)
        logvar = mulv[:, z_dim:2 * z_dim]    # lanes [Z, 2Z)

        # --- reparameterization (f32; eps supplied by host, shape (tb, Z)) ---
        z = mu + eps_ref[...] * jnp.exp(0.5 * logvar)

        # --- decoder ---
        hd = (
            jnp.dot(z.astype(jnp.bfloat16), wd1_ref[...],
                    preferred_element_type=jnp.float32)
            + bd1_ref[...]
        )
        hd = jnp.maximum(hd, 0.0)
        recon = (
            jnp.dot(hd.astype(jnp.bfloat16), wd2_ref[...],
                    preferred_element_type=jnp.float32)
            + bd2_ref[...]
        )

        recon_ref[...] = recon.astype(recon_ref.dtype)   # bf16 store (HBM-bound win)
        mulv_ref[...] = mulv                             # lane-dense f32 slab

    return kernel


def _nbytes(shape, dtype):
    return int(np.prod(shape)) * jnp.dtype(dtype).itemsize


def _vmem_capacity_bytes():
    """Physical VMEM per core; conservative (v7x-sized) fallback."""
    try:
        info = pltpu.get_tpu_info()
        cap = int(getattr(info, "vmem_capacity_bytes", 64 << 20))
        return cap if cap > 0 else (64 << 20)
    except Exception:
        return 64 << 20


def scgen_forward(x, params, eps, *, tile_b=None, recon_dtype=jnp.bfloat16,
                  return_packed=False):
    """Fused VAE forward.

    Returns (recon, mu, logvar); `return_packed=True` instead returns
    (recon, mulv_slab, Z) so downstream KL code can slice lazily and keep the
    lane-dense slab (avoids extra narrow-slice copies on the HBM-bound path).
    """
    B, G = x.shape
    H = params["w1"].shape[1]
    Z = params["wmu"].shape[1]
    SLAB = pl.cdiv(max(2 * Z, 1), 128) * 128   # lane-dense mu||logvar slab width

    bf = jnp.bfloat16
    f32 = jnp.float32

    # --- pack parameters (bf16 MXU weights, f32 biases) ---
    w1 = params["w1"].astype(bf)
    b1 = params["b1"].reshape(1, H).astype(f32)
    wmulv = jnp.concatenate([params["wmu"], params["wlv"]], axis=1)          # (H, 2Z)
    wmulv = jnp.pad(wmulv, ((0, 0), (0, SLAB - 2 * Z))).astype(bf)           # (H, SLAB)
    bmulv = jnp.concatenate(
        [params["bmu"].reshape(1, Z), params["blv"].reshape(1, Z)], axis=1)
    bmulv = jnp.pad(bmulv, ((0, 0), (0, SLAB - 2 * Z))).astype(f32)          # (1, SLAB)
    wd1 = params["wd1"].astype(bf)                                           # (Z, H)
    bd1 = params["bd1"].reshape(1, H).astype(f32)
    wd2 = params["wd2"].astype(bf)                                           # (H, G)
    bd2 = params["bd2"].reshape(1, G).astype(f32)

    # --- batch tile selection from the chip's VMEM capacity ---
    vmem_cap = _vmem_capacity_bytes()
    if tile_b is None:
        if vmem_cap <= (64 << 20):
            # v7x-class: 2 TensorCores share the grid -> want >= 4 grid steps
            # so each core still has >= 2 steps to pipeline activation DMA.
            tile_b = min(128, max(16, B // 4))
        else:
            # v5e / v6e: 128 MiB VMEM, single TC -> large tiles amortize
            # per-grid-step overhead on this HBM-bound kernel.
            tile_b = min(512, B)
    tile_b = int(max(16, min(tile_b, max(B, 16))))
    tile_b = ((tile_b + 15) // 16) * 16       # full-sublane (bf16-packed) tiles
    Bp = pl.cdiv(B, tile_b) * tile_b

    x_p = x.astype(bf)                         # bf16 activations in / out
    eps_p = eps.astype(f32)                    # reparam noise stays f32, unpadded (B, Z)
    if Bp != B:
        x_p = jnp.pad(x_p, ((0, Bp - B), (0, 0)))
        eps_p = jnp.pad(eps_p, ((0, Bp - B), (0, 0)))

    grid = (Bp // tile_b,)
    row = lambda i: (i, 0)      # batch-tiled operands
    const = lambda i: (0, 0)    # weights stay VMEM-resident across batch steps

    def build(single_buffer_weights):
        wkw = {"pipeline_mode": pl.Buffered(1)} if single_buffer_weights else {}
        wspec = lambda shape: pl.BlockSpec(shape, const, **wkw)

        in_specs = [
            pl.BlockSpec((tile_b, G), row),     # x (bf16)
            wspec((G, H)),                      # w1
            wspec((1, H)),                      # b1
            wspec((H, SLAB)),                   # wmu||wlv (fused, lane-dense)
            wspec((1, SLAB)),                   # bmu||blv
            pl.BlockSpec((tile_b, Z), row),     # eps (f32, unpadded lanes)
            wspec((Z, H)),                      # wd1
            wspec((1, H)),                      # bd1
            wspec((H, G)),                      # wd2
            wspec((1, G)),                      # bd2
        ]
        out_specs = (
            pl.BlockSpec((tile_b, G), row),     # reconstruction (bf16)
            pl.BlockSpec((tile_b, SLAB), row),  # mu||logvar slab (f32)
        )
        out_shapes = (
            jax.ShapeDtypeStruct((Bp, G), recon_dtype),
            jax.ShapeDtypeStruct((Bp, SLAB), f32),
        )

        # VMEM budget: weights x1 (single-buffered) or x2, activations x2
        # (double-buffered), plus headroom; capped at ~85% of physical VMEM.
        weight_bytes = (
            _nbytes((G, H), bf) + _nbytes((1, H), f32)
            + _nbytes((H, SLAB), bf) + _nbytes((1, SLAB), f32)
            + _nbytes((Z, H), bf) + _nbytes((1, H), f32)
            + _nbytes((H, G), bf) + _nbytes((1, G), f32)
        )
        act_bytes = (
            _nbytes((tile_b, G), bf) + _nbytes((tile_b, Z), f32)
            + _nbytes((tile_b, G), recon_dtype) + _nbytes((tile_b, SLAB), f32)
        )
        w_copies = 1 if single_buffer_weights else 2
        vmem_limit = w_copies * weight_bytes + 2 * act_bytes + (6 << 20)
        vmem_cap_limit = max(32 << 20, int(0.85 * vmem_cap))
        vmem_limit = int(min(max(vmem_limit, 16 << 20), vmem_cap_limit))

        return pl.pallas_call(
            make_scgen_vae_kernel(Z),
            out_shape=out_shapes,
            grid=grid,
            in_specs=in_specs,
            out_specs=out_specs,
            compiler_params=pltpu.CompilerParams(
                dimension_semantics=("parallel",),   # batch axis -> both TCs on v7x
                vmem_limit_bytes=vmem_limit,
            ),
        )

    operands = (x_p, w1, b1, wmulv, bmulv, eps_p, wd1, bd1, wd2, bd2)
    try:
        recon, slab = build(True)(*operands)
    except Exception:
        # Fallback for JAX versions that reject single-buffered constant specs.
        recon, slab = build(False)(*operands)

    recon = recon[:B]
    slab = slab[:B]
    if return_packed:
        return recon, slab, Z
    mu = slab[:, :Z]
    logvar = slab[:, Z:2 * Z]
    return recon, mu, logvar


def init_params(key, G, H, Z):
    """Deterministic small-scale parameter init (no checkpoint load)."""
    ks = jax.random.split(key, 6)

    def lin(k, fan_in, fan_out):
        scale = 1.0 / np.sqrt(fan_in)
        return jax.random.uniform(
            k, (fan_in, fan_out), jnp.float32, minval=-scale, maxval=scale
        )

    return {
        "w1": lin(ks[0], G, H),  "b1": jnp.zeros((1, H), jnp.float32),
        "wmu": lin(ks[1], H, Z), "bmu": jnp.zeros((1, Z), jnp.float32),
        "wlv": lin(ks[2], H, Z), "blv": jnp.zeros((1, Z), jnp.float32),
        "wd1": lin(ks[3], Z, H), "bd1": jnp.zeros((1, H), jnp.float32),
        "wd2": lin(ks[4], H, G), "bd2": jnp.zeros((1, G), jnp.float32),
    }


def reference_forward(x, p, eps):
    """Pure-JAX reference mirroring the kernel's bf16-operand / f32-accumulate
    matmuls for apples-to-apples correctness checking."""
    bf = jnp.bfloat16

    def mm(a, w):
        return jnp.dot(a.astype(bf), w.astype(bf),
                       preferred_element_type=jnp.float32)

    h = jnp.maximum(mm(x, p["w1"]) + p["b1"], 0.0)
    mu = mm(h, p["wmu"]) + p["bmu"]
    logvar = mm(h, p["wlv"]) + p["blv"]
    z = mu + eps * jnp.exp(0.5 * logvar)
    hd = jnp.maximum(mm(z, p["wd1"]) + p["bd1"], 0.0)
    recon = mm(hd, p["wd2"]) + p["bd2"]
    return recon, mu, logvar


if __name__ == "__main__":
    # Shapes consistent with SCGEN.set_input: (b, c=1, g) -> (b, g).
    B, G, H, Z = 256, 512, 256, 32

    key = jax.random.PRNGKey(0)
    k_x, k_eps, k_p = jax.random.split(key, 3)

    x = jax.random.normal(k_x, (B, 1, G), dtype=jnp.float32)    # (b, c, g)
    x2d = x.reshape(B, G)                                        # SCGEN.set_input view
    eps = jax.random.normal(k_eps, (B, Z), dtype=jnp.float32)    # reparam noise

    params = init_params(k_p, G, H, Z)

    # x handed to the kernel in bf16 (in a real pipeline this cast fuses into
    # the upstream producer; here it is explicit).
    recon, mu, logvar = scgen_forward(x2d.astype(jnp.bfloat16), params, eps)
    jax.block_until_ready((recon, mu, logvar))

    r_ref, mu_ref, lv_ref = reference_forward(x2d, params, eps)
    np.testing.assert_allclose(np.asarray(recon.astype(jnp.float32)),
                               np.asarray(r_ref), rtol=2e-2, atol=2e-2)
    np.testing.assert_allclose(np.asarray(mu), np.asarray(mu_ref),
                               rtol=1e-2, atol=1e-2)
    np.testing.assert_allclose(np.asarray(logvar), np.asarray(lv_ref),
                               rtol=1e-2, atol=1e-2)

    print("KERNEL_OK")
</pallas_src>

<mosaic_0001>
module attributes {stable_mosaic.version = 11 : i64} {
  func.func @kernel(%arg0: i32, %arg1: memref<64x512xbf16, #tpu.memory_space<vmem>>, %arg2: memref<512x256xbf16, #tpu.memory_space<vmem>>, %arg3: memref<1x256xf32, #tpu.memory_space<vmem>>, %arg4: memref<256x128xbf16, #tpu.memory_space<vmem>>, %arg5: memref<1x128xf32, #tpu.memory_space<vmem>>, %arg6: memref<64x32xf32, #tpu.memory_space<vmem>>, %arg7: memref<32x256xbf16, #tpu.memory_space<vmem>>, %arg8: memref<1x256xf32, #tpu.memory_space<vmem>>, %arg9: memref<256x512xbf16, #tpu.memory_space<vmem>>, %arg10: memref<1x512xf32, #tpu.memory_space<vmem>>, %arg11: memref<64x512xbf16, #tpu.memory_space<vmem>>, %arg12: memref<64x128xf32, #tpu.memory_space<vmem>>) attributes {dimension_semantics = [#tpu.dimension_semantics<parallel>], iteration_bounds = array<i64: 4>, scalar_prefetch = 0 : i64, scratch_operands = 0 : i64, tpu.core_type = #tpu.core_type<tc>, window_params = [{transform_indices = @transform_0, window_bounds = array<i64: 64, 512>}, {pipeline_mode = #tpu.pipeline_mode<synchronous>, transform_indices = @transform_1, window_bounds = array<i64: 512, 256>}, {pipeline_mode = #tpu.pipeline_mode<synchronous>, transform_indices = @transform_2, window_bounds = array<i64: 1, 256>}, {pipeline_mode = #tpu.pipeline_mode<synchronous>, transform_indices = @transform_3, window_bounds = array<i64: 256, 128>}, {pipeline_mode = #tpu.pipeline_mode<synchronous>, transform_indices = @transform_4, window_bounds = array<i64: 1, 128>}, {transform_indices = @transform_5, window_bounds = array<i64: 64, 32>}, {pipeline_mode = #tpu.pipeline_mode<synchronous>, transform_indices = @transform_6, window_bounds = array<i64: 32, 256>}, {pipeline_mode = #tpu.pipeline_mode<synchronous>, transform_indices = @transform_7, window_bounds = array<i64: 1, 256>}, {pipeline_mode = #tpu.pipeline_mode<synchronous>, transform_indices = @transform_8, window_bounds = array<i64: 256, 512>}, {pipeline_mode = #tpu.pipeline_mode<synchronous>, transform_indices = @transform_9, window_bounds = array<i64: 1, 512>}, {transform_indices = @transform_10, window_bounds = array<i64: 64, 512>}, {transform_indices = @transform_11, window_bounds = array<i64: 64, 128>}]} {
    %c0 = arith.constant 0 : index
    %c0_0 = arith.constant 0 : index
    %0 = vector.load %arg1[%c0, %c0_0] : memref<64x512xbf16, #tpu.memory_space<vmem>>, vector<64x512xbf16>
    %c0_1 = arith.constant 0 : index
    %c0_2 = arith.constant 0 : index
    %1 = vector.load %arg2[%c0_1, %c0_2] : memref<512x256xbf16, #tpu.memory_space<vmem>>, vector<512x256xbf16>
    %cst = arith.constant dense<0.000000e+00> : vector<64x256xf32>
    %2 = tpu.matmul %0, %1, %cst {dimension_numbers = #tpu.dot_dimension_numbers<[1], [0], [0], [1], [0, 0, 1, 1], [], []>} : vector<64x512xbf16>, vector<512x256xbf16>, vector<64x256xf32> -> vector<64x256xf32>
    %c0_3 = arith.constant 0 : index
    %c0_4 = arith.constant 0 : index
    %3 = vector.load %arg3[%c0_3, %c0_4] : memref<1x256xf32, #tpu.memory_space<vmem>>, vector<1x256xf32>
    %4 = vector.broadcast %3 : vector<1x256xf32> to vector<64x256xf32>
    %5 = arith.addf %2, %4 : vector<64x256xf32>
    %cst_5 = arith.constant 0.000000e+00 : f32
    %6 = vector.broadcast %cst_5 : f32 to vector<64x256xf32>
    %7 = arith.maximumf %5, %6 : vector<64x256xf32>
    %8 = arith.truncf %7 : vector<64x256xf32> to vector<64x256xbf16>
    %c0_6 = arith.constant 0 : index
    %c0_7 = arith.constant 0 : index
    %9 = vector.load %arg4[%c0_6, %c0_7] : memref<256x128xbf16, #tpu.memory_space<vmem>>, vector<256x128xbf16>
    %cst_8 = arith.constant dense<0.000000e+00> : vector<64x128xf32>
    %10 = tpu.matmul %8, %9, %cst_8 {dimension_numbers = #tpu.dot_dimension_numbers<[1], [0], [0], [1], [0, 0, 1, 1], [], []>} : vector<64x256xbf16>, vector<256x128xbf16>, vector<64x128xf32> -> vector<64x128xf32>
    %c0_9 = arith.constant 0 : index
    %c0_10 = arith.constant 0 : index
    %11 = vector.load %arg5[%c0_9, %c0_10] : memref<1x128xf32, #tpu.memory_space<vmem>>, vector<1x128xf32>
    %12 = vector.broadcast %11 : vector<1x128xf32> to vector<64x128xf32>
    %13 = arith.addf %10, %12 : vector<64x128xf32>
    %14 = vector.extract_strided_slice %13 {offsets = [0, 0], sizes = [64, 32], strides = [1, 1]} : vector<64x128xf32> to vector<64x32xf32>
    %15 = vector.extract_strided_slice %13 {offsets = [0, 32], sizes = [64, 32], strides = [1, 1]} : vector<64x128xf32> to vector<64x32xf32>
    %c0_11 = arith.constant 0 : index
    %c0_12 = arith.constant 0 : index
    %16 = vector.load %arg6[%c0_11, %c0_12] : memref<64x32xf32, #tpu.memory_space<vmem>>, vector<64x32xf32>
    %cst_13 = arith.constant 5.000000e-01 : f32
    %17 = vector.broadcast %cst_13 : f32 to vector<64x32xf32>
    %18 = arith.mulf %17, %15 : vector<64x32xf32>
    %19 = math.exp %18 : vector<64x32xf32>
    %20 = arith.mulf %16, %19 : vector<64x32xf32>
    %21 = arith.addf %14, %20 : vector<64x32xf32>
    %22 = arith.truncf %21 : vector<64x32xf32> to vector<64x32xbf16>
    %c0_14 = arith.constant 0 : index
    %c0_15 = arith.constant 0 : index
    %23 = vector.load %arg7[%c0_14, %c0_15] : memref<32x256xbf16, #tpu.memory_space<vmem>>, vector<32x256xbf16>
    %cst_16 = arith.constant dense<0.000000e+00> : vector<64x256xf32>
    %24 = tpu.matmul %22, %23, %cst_16 {dimension_numbers = #tpu.dot_dimension_numbers<[1], [0], [0], [1], [0, 0, 1, 1], [], []>} : vector<64x32xbf16>, vector<32x256xbf16>, vector<64x256xf32> -> vector<64x256xf32>
    %c0_17 = arith.constant 0 : index
    %c0_18 = arith.constant 0 : index
    %25 = vector.load %arg8[%c0_17, %c0_18] : memref<1x256xf32, #tpu.memory_space<vmem>>, vector<1x256xf32>
    %26 = vector.broadcast %25 : vector<1x256xf32> to vector<64x256xf32>
    %27 = arith.addf %24, %26 : vector<64x256xf32>
    %cst_19 = arith.constant 0.000000e+00 : f32
    %28 = vector.broadcast %cst_19 : f32 to vector<64x256xf32>
    %29 = arith.maximumf %27, %28 : vector<64x256xf32>
    %30 = arith.truncf %29 : vector<64x256xf32> to vector<64x256xbf16>
    %c0_20 = arith.constant 0 : index
    %c0_21 = arith.constant 0 : index
    %31 = vector.load %arg9[%c0_20, %c0_21] : memref<256x512xbf16, #tpu.memory_space<vmem>>, vector<256x512xbf16>
    %cst_22 = arith.constant dense<0.000000e+00> : vector<64x512xf32>
    %32 = tpu.matmul %30, %31, %cst_22 {dimension_numbers = #tpu.dot_dimension_numbers<[1], [0], [0], [1], [0, 0, 1, 1], [], []>} : vector<64x256xbf16>, vector<256x512xbf16>, vector<64x512xf32> -> vector<64x512xf32>
    %c0_23 = arith.constant 0 : index
    %c0_24 = arith.constant 0 : index
    %33 = vector.load %arg10[%c0_23, %c0_24] : memref<1x512xf32, #tpu.memory_space<vmem>>, vector<1x512xf32>
    %34 = vector.broadcast %33 : vector<1x512xf32> to vector<64x512xf32>
    %35 = arith.addf %32, %34 : vector<64x512xf32>
    %36 = arith.truncf %35 : vector<64x512xf32> to vector<64x512xbf16>
    %c0_25 = arith.constant 0 : index
    %c0_26 = arith.constant 0 : index
    %37 = vector.load %arg11[%c0_25, %c0_26] : memref<64x512xbf16, #tpu.memory_space<vmem>>, vector<64x512xbf16>
    tpu.vector_store %arg11[%c0_25, %c0_26], %36 {strides = array<i32>} : memref<64x512xbf16, #tpu.memory_space<vmem>>, vector<64x512xbf16>,
    %c0_27 = arith.constant 0 : index
    %c0_28 = arith.constant 0 : index
    %38 = vector.load %arg12[%c0_27, %c0_28] : memref<64x128xf32, #tpu.memory_space<vmem>>, vector<64x128xf32>
    tpu.vector_store %arg12[%c0_27, %c0_28], %13 {strides = array<i32>} : memref<64x128xf32, #tpu.memory_space<vmem>>, vector<64x128xf32>,
    return
  }
  func.func @transform_0(%arg0: i32) -> (i32, i32) {
    %c0_i32 = arith.constant 0 : i32
    %c0_i32_0 = arith.constant 0 : i32
    return %arg0, %c0_i32 : i32, i32
  }
  func.func @transform_1(%arg0: i32) -> (i32, i32) {
    %c0_i32 = arith.constant 0 : i32
    %c0_i32_0 = arith.constant 0 : i32
    %c0_i32_1 = arith.constant 0 : i32
    return %c0_i32, %c0_i32_0 : i32, i32
  }
  func.func @transform_2(%arg0: i32) -> (i32, i32) {
    %c0_i32 = arith.constant 0 : i32
    %c0_i32_0 = arith.constant 0 : i32
    %c0_i32_1 = arith.constant 0 : i32
    return %c0_i32, %c0_i32_0 : i32, i32
  }
  func.func @transform_3(%arg0: i32) -> (i32, i32) {
    %c0_i32 = arith.constant 0 : i32
    %c0_i32_0 = arith.constant 0 : i32
    %c0_i32_1 = arith.constant 0 : i32
    return %c0_i32, %c0_i32_0 : i32, i32
  }
  func.func @transform_4(%arg0: i32) -> (i32, i32) {
    %c0_i32 = arith.constant 0 : i32
    %c0_i32_0 = arith.constant 0 : i32
    %c0_i32_1 = arith.constant 0 : i32
    return %c0_i32, %c0_i32_0 : i32, i32
  }
  func.func @transform_5(%arg0: i32) -> (i32, i32) {
    %c0_i32 = arith.constant 0 : i32
    %c0_i32_0 = arith.constant 0 : i32
    return %arg0, %c0_i32 : i32, i32
  }
  func.func @transform_6(%arg0: i32) -> (i32, i32) {
    %c0_i32 = arith.constant 0 : i32
    %c0_i32_0 = arith.constant 0 : i32
    %c0_i32_1 = arith.constant 0 : i32
    return %c0_i32, %c0_i32_0 : i32, i32
  }
  func.func @transform_7(%arg0: i32) -> (i32, i32) {
    %c0_i32 = arith.constant 0 : i32
    %c0_i32_0 = arith.constant 0 : i32
    %c0_i32_1 = arith.constant 0 : i32
    return %c0_i32, %c0_i32_0 : i32, i32
  }
  func.func @transform_8(%arg0: i32) -> (i32, i32) {
    %c0_i32 = arith.constant 0 : i32
    %c0_i32_0 = arith.constant 0 : i32
    %c0_i32_1 = arith.constant 0 : i32
    return %c0_i32, %c0_i32_0 : i32, i32
  }
  func.func @transform_9(%arg0: i32) -> (i32, i32) {
    %c0_i32 = arith.constant 0 : i32
    %c0_i32_0 = arith.constant 0 : i32
    %c0_i32_1 = arith.constant 0 : i32
    return %c0_i32, %c0_i32_0 : i32, i32
  }
  func.func @transform_10(%arg0: i32) -> (i32, i32) {
    %c0_i32 = arith.constant 0 : i32
    %c0_i32_0 = arith.constant 0 : i32
    return %arg0, %c0_i32 : i32, i32
  }
  func.func @transform_11(%arg0: i32) -> (i32, i32) {
    %c0_i32 = arith.constant 0 : i32
    %c0_i32_0 = arith.constant 0 : i32
    return %arg0, %c0_i32 : i32, i32
  }
}

module attributes {stable_mosaic.version = 11 : i64} {
  func.func @kernel(%arg0: i32, %arg1: memref<64x512xbf16, #tpu.memory_space<vmem>>, %arg2: memref<512x256xbf16, #tpu.memory_space<vmem>>, %arg3: memref<1x256xf32, #tpu.memory_space<vmem>>, %arg4: memref<256x128xbf16, #tpu.memory_space<vmem>>, %arg5: memref<1x128xf32, #tpu.memory_space<vmem>>, %arg6: memref<64x32xf32, #tpu.memory_space<vmem>>, %arg7: memref<32x256xbf16, #tpu.memory_space<vmem>>, %arg8: memref<1x256xf32, #tpu.memory_space<vmem>>, %arg9: memref<256x512xbf16, #tpu.memory_space<vmem>>, %arg10: memref<1x512xf32, #tpu.memory_space<vmem>>, %arg11: memref<64x512xbf16, #tpu.memory_space<vmem>>, %arg12: memref<64x128xf32, #tpu.memory_space<vmem>>) attributes {dimension_semantics = [#tpu.dimension_semantics<parallel>], iteration_bounds = array<i64: 4>, scalar_prefetch = 0 : i64, scratch_operands = 0 : i64, tpu.core_type = #tpu.core_type<tc>, window_params = [{transform_indices = @transform_0, window_bounds = array<i64: 64, 512>}, {pipeline_mode = #tpu.pipeline_mode<synchronous>, transform_indices = @transform_1, window_bounds = array<i64: 512, 256>}, {pipeline_mode = #tpu.pipeline_mode<synchronous>, transform_indices = @transform_2, window_bounds = array<i64: 1, 256>}, {pipeline_mode = #tpu.pipeline_mode<synchronous>, transform_indices = @transform_3, window_bounds = array<i64: 256, 128>}, {pipeline_mode = #tpu.pipeline_mode<synchronous>, transform_indices = @transform_4, window_bounds = array<i64: 1, 128>}, {transform_indices = @transform_5, window_bounds = array<i64: 64, 32>}, {pipeline_mode = #tpu.pipeline_mode<synchronous>, transform_indices = @transform_6, window_bounds = array<i64: 32, 256>}, {pipeline_mode = #tpu.pipeline_mode<synchronous>, transform_indices = @transform_7, window_bounds = array<i64: 1, 256>}, {pipeline_mode = #tpu.pipeline_mode<synchronous>, transform_indices = @transform_8, window_bounds = array<i64: 256, 512>}, {pipeline_mode = #tpu.pipeline_mode<synchronous>, transform_indices = @transform_9, window_bounds = array<i64: 1, 512>}, {transform_indices = @transform_10, window_bounds = array<i64: 64, 512>}, {transform_indices = @transform_11, window_bounds = array<i64: 64, 128>}]} {
    %c0 = arith.constant 0 : index
    %c0_0 = arith.constant 0 : index
    %0 = vector.load %arg1[%c0, %c0_0] : memref<64x512xbf16, #tpu.memory_space<vmem>>, vector<64x512xbf16>
    %c0_1 = arith.constant 0 : index
    %c0_2 = arith.constant 0 : index
    %1 = vector.load %arg2[%c0_1, %c0_2] : memref<512x256xbf16, #tpu.memory_space<vmem>>, vector<512x256xbf16>
    %cst = arith.constant dense<0.000000e+00> : vector<64x256xf32>
    %2 = tpu.matmul %0, %1, %cst {dimension_numbers = #tpu.dot_dimension_numbers<[1], [0], [0], [1], [0, 0, 1, 1], [], []>} : vector<64x512xbf16>, vector<512x256xbf16>, vector<64x256xf32> -> vector<64x256xf32>
    %c0_3 = arith.constant 0 : index
    %c0_4 = arith.constant 0 : index
    %3 = vector.load %arg3[%c0_3, %c0_4] : memref<1x256xf32, #tpu.memory_space<vmem>>, vector<1x256xf32>
    %4 = vector.broadcast %3 : vector<1x256xf32> to vector<64x256xf32>
    %5 = arith.addf %2, %4 : vector<64x256xf32>
    %cst_5 = arith.constant 0.000000e+00 : f32
    %6 = vector.broadcast %cst_5 : f32 to vector<64x256xf32>
    %7 = arith.maximumf %5, %6 : vector<64x256xf32>
    %8 = arith.truncf %7 : vector<64x256xf32> to vector<64x256xbf16>
    %c0_6 = arith.constant 0 : index
    %c0_7 = arith.constant 0 : index
    %9 = vector.load %arg4[%c0_6, %c0_7] : memref<256x128xbf16, #tpu.memory_space<vmem>>, vector<256x128xbf16>
    %cst_8 = arith.constant dense<0.000000e+00> : vector<64x128xf32>
    %10 = tpu.matmul %8, %9, %cst_8 {dimension_numbers = #tpu.dot_dimension_numbers<[1], [0], [0], [1], [0, 0, 1, 1], [], []>} : vector<64x256xbf16>, vector<256x128xbf16>, vector<64x128xf32> -> vector<64x128xf32>
    %c0_9 = arith.constant 0 : index
    %c0_10 = arith.constant 0 : index
    %11 = vector.load %arg5[%c0_9, %c0_10] : memref<1x128xf32, #tpu.memory_space<vmem>>, vector<1x128xf32>
    %12 = vector.broadcast %11 : vector<1x128xf32> to vector<64x128xf32>
    %13 = arith.addf %10, %12 : vector<64x128xf32>
    %14 = vector.extract_strided_slice %13 {offsets = [0, 0], sizes = [64, 32], strides = [1, 1]} : vector<64x128xf32> to vector<64x32xf32>
    %15 = vector.extract_strided_slice %13 {offsets = [0, 32], sizes = [64, 32], strides = [1, 1]} : vector<64x128xf32> to vector<64x32xf32>
    %c0_11 = arith.constant 0 : index
    %c0_12 = arith.constant 0 : index
    %16 = vector.load %arg6[%c0_11, %c0_12] : memref<64x32xf32, #tpu.memory_space<vmem>>, vector<64x32xf32>
    %cst_13 = arith.constant 5.000000e-01 : f32
    %17 = vector.broadcast %cst_13 : f32 to vector<64x32xf32>
    %18 = arith.mulf %17, %15 : vector<64x32xf32>
    %19 = math.exp %18 : vector<64x32xf32>
    %20 = arith.mulf %16, %19 : vector<64x32xf32>
    %21 = arith.addf %14, %20 : vector<64x32xf32>
    %22 = arith.truncf %21 : vector<64x32xf32> to vector<64x32xbf16>
    %c0_14 = arith.constant 0 : index
    %c0_15 = arith.constant 0 : index
    %23 = vector.load %arg7[%c0_14, %c0_15] : memref<32x256xbf16, #tpu.memory_space<vmem>>, vector<32x256xbf16>
    %cst_16 = arith.constant dense<0.000000e+00> : vector<64x256xf32>
    %24 = tpu.matmul %22, %23, %cst_16 {dimension_numbers = #tpu.dot_dimension_numbers<[1], [0], [0], [1], [0, 0, 1, 1], [], []>} : vector<64x32xbf16>, vector<32x256xbf16>, vector<64x256xf32> -> vector<64x256xf32>
    %c0_17 = arith.constant 0 : index
    %c0_18 = arith.constant 0 : index
    %25 = vector.load %arg8[%c0_17, %c0_18] : memref<1x256xf32, #tpu.memory_space<vmem>>, vector<1x256xf32>
    %26 = vector.broadcast %25 : vector<1x256xf32> to vector<64x256xf32>
    %27 = arith.addf %24, %26 : vector<64x256xf32>
    %cst_19 = arith.constant 0.000000e+00 : f32
    %28 = vector.broadcast %cst_19 : f32 to vector<64x256xf32>
    %29 = arith.maximumf %27, %28 : vector<64x256xf32>
    %30 = arith.truncf %29 : vector<64x256xf32> to vector<64x256xbf16>
    %c0_20 = arith.constant 0 : index
    %c0_21 = arith.constant 0 : index
    %31 = vector.load %arg9[%c0_20, %c0_21] : memref<256x512xbf16, #tpu.memory_space<vmem>>, vector<256x512xbf16>
    %cst_22 = arith.constant dense<0.000000e+00> : vector<64x512xf32>
    %32 = tpu.matmul %30, %31, %cst_22 {dimension_numbers = #tpu.dot_dimension_numbers<[1], [0], [0], [1], [0, 0, 1, 1], [], []>} : vector<64x256xbf16>, vector<256x512xbf16>, vector<64x512xf32> -> vector<64x512xf32>
    %c0_23 = arith.constant 0 : index
    %c0_24 = arith.constant 0 : index
    %33 = vector.load %arg10[%c0_23, %c0_24] : memref<1x512xf32, #tpu.memory_space<vmem>>, vector<1x512xf32>
    %34 = vector.broadcast %33 : vector<1x512xf32> to vector<64x512xf32>
    %35 = arith.addf %32, %34 : vector<64x512xf32>
    %36 = arith.truncf %35 : vector<64x512xf32> to vector<64x512xbf16>
    %c0_25 = arith.constant 0 : index
    %c0_26 = arith.constant 0 : index
    %37 = vector.load %arg11[%c0_25, %c0_26] : memref<64x512xbf16, #tpu.memory_space<vmem>>, vector<64x512xbf16>
    tpu.vector_store %arg11[%c0_25, %c0_26], %36 {strides = array<i32>} : memref<64x512xbf16, #tpu.memory_space<vmem>>, vector<64x512xbf16>,
    %c0_27 = arith.constant 0 : index
    %c0_28 = arith.constant 0 : index
    %38 = vector.load %arg12[%c0_27, %c0_28] : memref<64x128xf32, #tpu.memory_space<vmem>>, vector<64x128xf32>
    tpu.vector_store %arg12[%c0_27, %c0_28], %13 {strides = array<i32>} : memref<64x128xf32, #tpu.memory_space<vmem>>, vector<64x128xf32>,
    return
  }
  func.func @transform_0(%arg0: i32) -> (i32, i32) {
    %c0_i32 = arith.constant 0 : i32
    %c0_i32_0 = arith.constant 0 : i32
    return %arg0, %c0_i32 : i32, i32
  }
  func.func @transform_1(%arg0: i32) -> (i32, i32) {
    %c0_i32 = arith.constant 0 : i32
    %c0_i32_0 = arith.constant 0 : i32
    %c0_i32_1 = arith.constant 0 : i32
    return %c0_i32, %c0_i32_0 : i32, i32
  }
  func.func @transform_2(%arg0: i32) -> (i32, i32) {
    %c0_i32 = arith.constant 0 : i32
    %c0_i32_0 = arith.constant 0 : i32
    %c0_i32_1 = arith.constant 0 : i32
    return %c0_i32, %c0_i32_0 : i32, i32
  }
  func.func @transform_3(%arg0: i32) -> (i32, i32) {
    %c0_i32 = arith.constant 0 : i32
    %c0_i32_0 = arith.constant 0 : i32
    %c0_i32_1 = arith.constant 0 : i32
    return %c0_i32, %c0_i32_0 : i32, i32
  }
  func.func @transform_4(%arg0: i32) -> (i32, i32) {
    %c0_i32 = arith.constant 0 : i32
    %c0_i32_0 = arith.constant 0 : i32
    %c0_i32_1 = arith.constant 0 : i32
    return %c0_i32, %c0_i32_0 : i32, i32
  }
  func.func @transform_5(%arg0: i32) -> (i32, i32) {
    %c0_i32 = arith.constant 0 : i32
    %c0_i32_0 = arith.constant 0 : i32
    return %arg0, %c0_i32 : i32, i32
  }
  func.func @transform_6(%arg0: i32) -> (i32, i32) {
    %c0_i32 = arith.constant 0 : i32
    %c0_i32_0 = arith.constant 0 : i32
    %c0_i32_1 = arith.constant 0 : i32
    return %c0_i32, %c0_i32_0 : i32, i32
  }
  func.func @transform_7(%arg0: i32) -> (i32, i32) {
    %c0_i32 = arith.constant 0 : i32
    %c0_i32_0 = arith.constant 0 : i32
    %c0_i32_1 = arith.constant 0 : i32
    return %c0_i32, %c0_i32_0 : i32, i32
  }
  func.func @transform_8(%arg0: i32) -> (i32, i32) {
    %c0_i32 = arith.constant 0 : i32
    %c0_i32_0 = arith.constant 0 : i32
    %c0_i32_1 = arith.constant 0 : i32
    return %c0_i32, %c0_i32_0 : i32, i32
  }
  func.func @transform_9(%arg0: i32) -> (i32, i32) {
    %c0_i32 = arith.constant 0 : i32
    %c0_i32_0 = arith.constant 0 : i32
    %c0_i32_1 = arith.constant 0 : i32
    return %c0_i32, %c0_i32_0 : i32, i32
  }
  func.func @transform_10(%arg0: i32) -> (i32, i32) {
    %c0_i32 = arith.constant 0 : i32
    %c0_i32_0 = arith.constant 0 : i32
    return %arg0, %c0_i32 : i32, i32
  }
  func.func @transform_11(%arg0: i32) -> (i32, i32) {
    %c0_i32 = arith.constant 0 : i32
    %c0_i32_0 = arith.constant 0 : i32
    return %arg0, %c0_i32 : i32, i32
  }
}

</mosaic_0001>

<llo_original>
// kernel: tpu_custom_call.1
$region0: #{tpu_custom_call.1}
  #allocation0 [shape = 'u32[]', space=smem, size = 0x4, offset = 0x4, fixed_abs, tag = 'smem constant byte address 0x4 - core index']
  #allocation1 [shape = 'u32[72,128]{1,0:T(1,128)}', space=vmem, size = 0x9000, scoped, tag = 'internal scratch']
  %s0 = inlined_call_operand.hbm [shape: bf16[256,512], index: 0, kind: input, shape index: {}]
  %s1 = inlined_call_operand.hbm [shape: bf16[512,256], index: 1, kind: input, shape index: {}]
  %s2 = inlined_call_operand.vmem [shape: f32[1,256], index: 2, kind: input, shape index: {}]
  %s3 = inlined_call_operand.vmem [shape: bf16[256,128], index: 3, kind: input, shape index: {}]
  %s4 = inlined_call_operand.vmem [shape: f32[1,128], index: 4, kind: input, shape index: {}]
  %s5 = inlined_call_operand.vmem [shape: f32[256,32], index: 5, kind: input, shape index: {}]
  %s6 = inlined_call_operand.vmem [shape: bf16[32,256], index: 6, kind: input, shape index: {}]
  %s7 = inlined_call_operand.vmem [shape: f32[1,256], index: 7, kind: input, shape index: {}]
  %s8 = inlined_call_operand.hbm [shape: bf16[256,512], index: 8, kind: input, shape index: {}]
  %s9 = inlined_call_operand.vmem [shape: f32[1,512], index: 9, kind: input, shape index: {}]
  %s10 = inlined_call_operand.hbm [shape: bf16[256,512], index: 10, kind: output, shape index: {0}]
  %s11 = inlined_call_operand.hbm [shape: f32[256,128], index: 11, kind: output, shape index: {1}]
  %12 = xla_tuple %s10, %s11
  %s13 = sld [smem:[#allocation0]]
  $region93: #{tpu_custom_call.1} parent=0
    _
  %s15 = ssub.s32 1, %s13
  %s16 = scalar_select 0, %s15, %s13
  $region1: #{tpu_custom_call.1} parent=0
    #allocation2 [shape = 'u8[131072]{0}', space=vmem, size = 0x20000, scoped, tag = 'input window, operand 0']
    #allocation3 [shape = 's32[2]{0}', space=sflag, size = 0x8, scoped, tag = 'scoped memory for tpu_custom_call.1']
    #allocation4 [shape = 's32[2]{0}', space=sflag, size = 0x8, scoped, tag = 'scoped memory for tpu_custom_call.1']
    #allocation5 [shape = 'u8[262144]{0}', space=vmem, size = 0x40000, scoped, tag = 'input window, operand 1, single buffered']
    #allocation6 [shape = 's32[1]{0}', space=sflag, size = 0x4, scoped, tag = 'scoped memory for tpu_custom_call.1']
    #allocation7 [shape = 'u8[262144]{0}', space=vmem, size = 0x40000, scoped, tag = 'input window, operand 8, single buffered']
    #allocation8 [shape = 'u8[131072]{0}', space=vmem, size = 0x20000, scoped, tag = 'output window, operand 0']
    #allocation9 [shape = 'u8[65536]{0}', space=vmem, size = 0x10000, scoped, tag = 'output window, operand 1']
    #allocation10 [shape = 's32[2]{0}', space=sflag, size = 0x8, scoped, tag = 'scoped memory for tpu_custom_call.1']
    %17 = vsyncpa [#allocation3], 0
    %s18 = scalar_lea.sflag [#allocation3], 1
    %19 = vsyncpa %s18, 0
    %20 = vsyncpa [#allocation6], 0
    %21 = vsyncpa [#allocation4], 0
    %s22 = scalar_lea.sflag [#allocation4], 1
    %23 = vsyncpa %s22, 0
    %24 = vsyncpa [#allocation10], 0
    %s25 = scalar_lea.sflag [#allocation10], 1
    %26 = vsyncpa %s25, 0
    loop: start=0, step=1, limit=6
    $region2: #{tpu_custom_call.1} parent=1 // loop_pre_header
      _
    $region3: #{tpu_custom_call.1} parent=1 // loop_header
      %s28 = sphi 0, %s32
      %p29 = scmp.ge.s32.totalorder %s28, 6
      %s38 = sphi 0, %s40
      %s41 = sphi 0, %s38
      %s42 = sphi 0, %s41
      %s58 = sphi 0, %s42
      %s62 = sphi 0, %s62
      %s64 = sphi 0, %s62
      %s65 = sphi 0, %s64
      %s79 = sphi 0, %s65
      %s83 = sphi 0, %s83
      %s85 = sphi 0, %s83
      %s86 = sphi 0, %s85
      %s100 = sphi 0, %s86
      %s104 = sphi 0, %s104
      %s106 = sphi 0, %s104
      %s107 = sphi 0, %s106
      %s121 = sphi 0, %s107
      %s125 = sphi 0, %s125
      %s127 = sphi 0, %s125
      %s128 = sphi 0, %s127
      %s142 = sphi 0, %s128
      %s148 = sphi 0, %s150
      %s151 = sphi 0, %s148
      %s152 = sphi 0, %s151
      %s168 = sphi 0, %s152
      %s172 = sphi 0, %s172
      %s174 = sphi 0, %s172
      %s175 = sphi 0, %s174
      %s189 = sphi 0, %s175
      %s193 = sphi 0, %s193
      %s195 = sphi 0, %s193
      %s196 = sphi 0, %s195
      %s210 = sphi 0, %s196
      %s214 = sphi 0, %s214
      %s216 = sphi 0, %s214
      %s217 = sphi 0, %s216
      %s231 = sphi 0, %s217
      %s235 = sphi 0, %s235
      %s237 = sphi 0, %s235
      %s238 = sphi 0, %s237
      %s252 = sphi 0, %s238
      %s258 = sphi 0, %s260
      %s261 = sphi 0, %s258
      %s262 = sphi 0, %s261
      %s278 = sphi 0, %s262
      %s284 = sphi 0, %s286
      %s287 = sphi 0, %s284
      %s288 = sphi 0, %s287
      %s304 = sphi 0, %s288
    $region4: #{tpu_custom_call.1} parent=1 // loop_header_branch
      %31 = sbr.rel (%p29) target = $region8
    $region5: #{tpu_custom_call.1} parent=1 // loop_body
      %s33 = ssub.s32 %s28, 1
      %s34 = ssub.s32 %s28, 2
      %s35 = sadd.s32 %s28, 1
      %s36 = ssub.s32 %s28, %s35
      %p37 = scmp.eq.s32.totalorder %s36, 0
      %s39 = sadd.s32 %s38, 1
      %s40 = scalar_select %p37, %s38, %s39
      %p43 = pneg %p37
      %p44 = scmp.eq.s32.totalorder %s28, 3
      %p45 = por %p43, %p44
      %p46 = scmp.ne.s32.totalorder %s38, %s41
      %p47 = scmp.eq.s32.totalorder %s28, 0
      %p48 = por %p46, %p47
      %p49 = scmp.ne.s32.totalorder %s38, %s41
      %p50 = scmp.eq.s32.totalorder %s33, 3
      %p51 = por %p49, %p50
      %p52 = scmp.ne.s32.totalorder %s41, %s42
      %p53 = scmp.eq.s32.totalorder %s33, 0
      %p54 = por %p52, %p53
      %p55 = scmp.ne.s32.totalorder %s41, %s42
      %p56 = scmp.eq.s32.totalorder %s34, 3
      %p57 = por %p55, %p56
      %p59 = scmp.ne.s32.totalorder %s42, %s58
      %p60 = scmp.eq.s32.totalorder %s34, 0
      %p61 = por %p59, %p60
      %s63 = sadd.s32 %s62, 1
      %p66 = scmp.eq.s32.totalorder %s28, 3
      %p67 = scmp.ne.s32.totalorder %s62, %s64
      %p68 = scmp.eq.s32.totalorder %s28, 0
      %p69 = por %p67, %p68
      %p70 = scmp.ne.s32.totalorder %s62, %s64
      %p71 = scmp.eq.s32.totalorder %s33, 3
      %p72 = por %p70, %p71
      %p73 = scmp.ne.s32.totalorder %s64, %s65
      %p74 = scmp.eq.s32.totalorder %s33, 0
      %p75 = por %p73, %p74
      %p76 = scmp.ne.s32.totalorder %s64, %s65
      %p77 = scmp.eq.s32.totalorder %s34, 3
      %p78 = por %p76, %p77
      %p80 = scmp.ne.s32.totalorder %s65, %s79
      %p81 = scmp.eq.s32.totalorder %s34, 0
      %p82 = por %p80, %p81
      %s84 = sadd.s32 %s83, 1
      %p87 = scmp.eq.s32.totalorder %s28, 3
      %p88 = scmp.ne.s32.totalorder %s83, %s85
      %p89 = scmp.eq.s32.totalorder %s28, 0
      %p90 = por %p88, %p89
      %p91 = scmp.ne.s32.totalorder %s83, %s85
      %p92 = scmp.eq.s32.totalorder %s33, 3
      %p93 = por %p91, %p92
      %p94 = scmp.ne.s32.totalorder %s85, %s86
      %p95 = scmp.eq.s32.totalorder %s33, 0
      %p96 = por %p94, %p95
      %p97 = scmp.ne.s32.totalorder %s85, %s86
      %p98 = scmp.eq.s32.totalorder %s34, 3
      %p99 = por %p97, %p98
      %p101 = scmp.ne.s32.totalorder %s86, %s100
      %p102 = scmp.eq.s32.totalorder %s34, 0
      %p103 = por %p101, %p102
      %s105 = sadd.s32 %s104, 1
      %p108 = scmp.eq.s32.totalorder %s28, 3
      %p109 = scmp.ne.s32.totalorder %s104, %s106
      %p110 = scmp.eq.s32.totalorder %s28, 0
      %p111 = por %p109, %p110
      %p112 = scmp.ne.s32.totalorder %s104, %s106
      %p113 = scmp.eq.s32.totalorder %s33, 3
      %p114 = por %p112, %p113
      %p115 = scmp.ne.s32.totalorder %s106, %s107
      %p116 = scmp.eq.s32.totalorder %s33, 0
      %p117 = por %p115, %p116
      %p118 = scmp.ne.s32.totalorder %s106, %s107
      %p119 = scmp.eq.s32.totalorder %s34, 3
      %p120 = por %p118, %p119
      %p122 = scmp.ne.s32.totalorder %s107, %s121
      %p123 = scmp.eq.s32.totalorder %s34, 0
      %p124 = por %p122, %p123
      %s126 = sadd.s32 %s125, 1
      %p129 = scmp.eq.s32.totalorder %s28, 3
      %p130 = scmp.ne.s32.totalorder %s125, %s127
      %p131 = scmp.eq.s32.totalorder %s28, 0
      %p132 = por %p130, %p131
      %p133 = scmp.ne.s32.totalorder %s125, %s127
      %p134 = scmp.eq.s32.totalorder %s33, 3
      %p135 = por %p133, %p134
      %p136 = scmp.ne.s32.totalorder %s127, %s128
      %p137 = scmp.eq.s32.totalorder %s33, 0
      %p138 = por %p136, %p137
      %p139 = scmp.ne.s32.totalorder %s127, %s128
      %p140 = scmp.eq.s32.totalorder %s34, 3
      %p141 = por %p139, %p140
      %p143 = scmp.ne.s32.totalorder %s128, %s142
      %p144 = scmp.eq.s32.totalorder %s34, 0
      %p145 = por %p143, %p144
      %s146 = ssub.s32 %s28, %s35
      %p147 = scmp.eq.s32.totalorder %s146, 0
      %s149 = sadd.s32 %s148, 1
      %s150 = scalar_select %p147, %s148, %s149
      %p153 = pneg %p147
      %p154 = scmp.eq.s32.totalorder %s28, 3
      %p155 = por %p153, %p154
      %p156 = scmp.ne.s32.totalorder %s148, %s151
      %p157 = scmp.eq.s32.totalorder %s28, 0
      %p158 = por %p156, %p157
      %p159 = scmp.ne.s32.totalorder %s148, %s151
      %p160 = scmp.eq.s32.totalorder %s33, 3
      %p161 = por %p159, %p160
      %p162 = scmp.ne.s32.totalorder %s151, %s152
      %p163 = scmp.eq.s32.totalorder %s33, 0
      %p164 = por %p162, %p163
      %p165 = scmp.ne.s32.totalorder %s151, %s152
      %p166 = scmp.eq.s32.totalorder %s34, 3
      %p167 = por %p165, %p166
      %p169 = scmp.ne.s32.totalorder %s152, %s168
      %p170 = scmp.eq.s32.totalorder %s34, 0
      %p171 = por %p169, %p170
      %s173 = sadd.s32 %s172, 1
      %p176 = scmp.eq.s32.totalorder %s28, 3
      %p177 = scmp.ne.s32.totalorder %s172, %s174
      %p178 = scmp.eq.s32.totalorder %s28, 0
      %p179 = por %p177, %p178
      %p180 = scmp.ne.s32.totalorder %s172, %s174
      %p181 = scmp.eq.s32.totalorder %s33, 3
      %p182 = por %p180, %p181
      %p183 = scmp.ne.s32.totalorder %s174, %s175
      %p184 = scmp.eq.s32.totalorder %s33, 0
      %p185 = por %p183, %p184
      %p186 = scmp.ne.s32.totalorder %s174, %s175
      %p187 = scmp.eq.s32.totalorder %s34, 3
      %p188 = por %p186, %p187
      %p190 = scmp.ne.s32.totalorder %s175, %s189
      %p191 = scmp.eq.s32.totalorder %s34, 0
      %p192 = por %p190, %p191
      %s194 = sadd.s32 %s193, 1
      %p197 = scmp.eq.s32.totalorder %s28, 3
      %p198 = scmp.ne.s32.totalorder %s193, %s195
      %p199 = scmp.eq.s32.totalorder %s28, 0
      %p200 = por %p198, %p199
      %p201 = scmp.ne.s32.totalorder %s193, %s195
      %p202 = scmp.eq.s32.totalorder %s33, 3
      %p203 = por %p201, %p202
      %p204 = scmp.ne.s32.totalorder %s195, %s196
      %p205 = scmp.eq.s32.totalorder %s33, 0
      %p206 = por %p204, %p205
      %p207 = scmp.ne.s32.totalorder %s195, %s196
      %p208 = scmp.eq.s32.totalorder %s34, 3
      %p209 = por %p207, %p208
      %p211 = scmp.ne.s32.totalorder %s196, %s210
      %p212 = scmp.eq.s32.totalorder %s34, 0
      %p213 = por %p211, %p212
      %s215 = sadd.s32 %s214, 1
      %p218 = scmp.eq.s32.totalorder %s28, 3
      %p219 = scmp.ne.s32.totalorder %s214, %s216
      %p220 = scmp.eq.s32.totalorder %s28, 0
      %p221 = por %p219, %p220
      %p222 = scmp.ne.s32.totalorder %s214, %s216
      %p223 = scmp.eq.s32.totalorder %s33, 3
      %p224 = por %p222, %p223
      %p225 = scmp.ne.s32.totalorder %s216, %s217
      %p226 = scmp.eq.s32.totalorder %s33, 0
      %p227 = por %p225, %p226
      %p228 = scmp.ne.s32.totalorder %s216, %s217
      %p229 = scmp.eq.s32.totalorder %s34, 3
      %p230 = por %p228, %p229
      %p232 = scmp.ne.s32.totalorder %s217, %s231
      %p233 = scmp.eq.s32.totalorder %s34, 0
      %p234 = por %p232, %p233
      %s236 = sadd.s32 %s235, 1
      %p239 = scmp.eq.s32.totalorder %s28, 3
      %p240 = scmp.ne.s32.totalorder %s235, %s237
      %p241 = scmp.eq.s32.totalorder %s28, 0
      %p242 = por %p240, %p241
      %p243 = scmp.ne.s32.totalorder %s235, %s237
      %p244 = scmp.eq.s32.totalorder %s33, 3
      %p245 = por %p243, %p244
      %p246 = scmp.ne.s32.totalorder %s237, %s238
      %p247 = scmp.eq.s32.totalorder %s33, 0
      %p248 = por %p246, %p247
      %p249 = scmp.ne.s32.totalorder %s237, %s238
      %p250 = scmp.eq.s32.totalorder %s34, 3
      %p251 = por %p249, %p250
      %p253 = scmp.ne.s32.totalorder %s238, %s252
      %p254 = scmp.eq.s32.totalorder %s34, 0
      %p255 = por %p253, %p254
      %s256 = ssub.s32 %s28, %s35
      %p257 = scmp.eq.s32.totalorder %s256, 0
      %s259 = sadd.s32 %s258, 1
      %s260 = scalar_select %p257, %s258, %s259
      %p263 = pneg %p257
      %p264 = scmp.eq.s32.totalorder %s28, 3
      %p265 = por %p263, %p264
      %p266 = scmp.ne.s32.totalorder %s258, %s261
      %p267 = scmp.eq.s32.totalorder %s28, 0
      %p268 = por %p266, %p267
      %p269 = scmp.ne.s32.totalorder %s258, %s261
      %p270 = scmp.eq.s32.totalorder %s33, 3
      %p271 = por %p269, %p270
      %p272 = scmp.ne.s32.totalorder %s261, %s262
      %p273 = scmp.eq.s32.totalorder %s33, 0
      %p274 = por %p272, %p273
      %p275 = scmp.ne.s32.totalorder %s261, %s262
      %p276 = scmp.eq.s32.totalorder %s34, 3
      %p277 = por %p275, %p276
      %p279 = scmp.ne.s32.totalorder %s262, %s278
      %p280 = scmp.eq.s32.totalorder %s34, 0
      %p281 = por %p279, %p280
      %s282 = ssub.s32 %s28, %s35
      %p283 = scmp.eq.s32.totalorder %s282, 0
      %s285 = sadd.s32 %s284, 1
      %s286 = scalar_select %p283, %s284, %s285
      %p289 = pneg %p283
      %p290 = scmp.eq.s32.totalorder %s28, 3
      %p291 = por %p289, %p290
      %p292 = scmp.ne.s32.totalorder %s284, %s287
      %p293 = scmp.eq.s32.totalorder %s28, 0
      %p294 = por %p292, %p293
      %p295 = scmp.ne.s32.totalorder %s284, %s287
      %p296 = scmp.eq.s32.totalorder %s33, 3
      %p297 = por %p295, %p296
      %p298 = scmp.ne.s32.totalorder %s287, %s288
      %p299 = scmp.eq.s32.totalorder %s33, 0
      %p300 = por %p298, %p299
      %p301 = scmp.ne.s32.totalorder %s287, %s288
      %p302 = scmp.eq.s32.totalorder %s34, 3
      %p303 = por %p301, %p302
      %p305 = scmp.ne.s32.totalorder %s288, %s304
      %p306 = scmp.eq.s32.totalorder %s34, 0
      %p307 = por %p305, %p306
      %p308 = scmp.le.s32.totalorder 1, %s28
      %p309 = scmp.lt.s32.totalorder %s28, 5
      %p310 = pnand %p308, %p309
      %p311 = pneg %p310
      // Predicated region
      $region9: #{tpu_custom_call.1} parent=5 // pred_check
        _
      $region10: #{tpu_custom_call.1} parent=5 // pred_check_branch
        %313 = sbr.rel (%p310) target = $region12
      $region11: #{tpu_custom_call.1} parent=5 // pred_region
        %s314 = ssub.s32 %s28, 1
        // Predicated region
        $region13: #{tpu_custom_call.1} parent=11 // pred_check
          %p315 = pneg %p75
        $region14: #{tpu_custom_call.1} parent=11 // pred_check_branch
          %317 = sbr.rel (%p315) target = $region16
        $region15: #{tpu_custom_call.1} parent=11 // pred_region
          %319 = vsyncadd [#allocation6], 0
          %s320 = sshll.u32 %s1, 4
          %s321 = int_to_ptr.hbm [resolvable:$true] %s320
          %s322 = sshll.u32 [#allocation5], 4
          %s323 = int_to_ptr.vmem [resolvable:$true] %s322
          %328 = dma.hbm_to_vmem [thread:$0]  %s321, 8192, %s323, [#allocation6], 128, 128, 8
        $region16: #{tpu_custom_call.1} parent=11 // pred_fallthru
          _
        // Predicated region
        $region17: #{tpu_custom_call.1} parent=11 // pred_check
          %p329 = pneg %p96
        $region18: #{tpu_custom_call.1} parent=11 // pred_check_branch
          %331 = sbr.rel (%p329) target = $region20
        $region19: #{tpu_custom_call.1} parent=11 // pred_region
          _
        $region20: #{tpu_custom_call.1} parent=11 // pred_fallthru
          _
        // Predicated region
        $region21: #{tpu_custom_call.1} parent=11 // pred_check
          %p332 = pneg %p117
        $region22: #{tpu_custom_call.1} parent=11 // pred_check_branch
          %334 = sbr.rel (%p332) target = $region24
        $region23: #{tpu_custom_call.1} parent=11 // pred_region
          _
        $region24: #{tpu_custom_call.1} parent=11 // pred_fallthru
          _
        // Predicated region
        $region25: #{tpu_custom_call.1} parent=11 // pred_check
          %p335 = pneg %p138
        $region26: #{tpu_custom_call.1} parent=11 // pred_check_branch
          %337 = sbr.rel (%p335) target = $region28
        $region27: #{tpu_custom_call.1} parent=11 // pred_region
          _
        $region28: #{tpu_custom_call.1} parent=11 // pred_fallthru
          _
        // Predicated region
        $region29: #{tpu_custom_call.1} parent=11 // pred_check
          %p338 = pneg %p185
        $region30: #{tpu_custom_call.1} parent=11 // pred_check_branch
          %340 = sbr.rel (%p338) target = $region32
        $region31: #{tpu_custom_call.1} parent=11 // pred_region
          _
        $region32: #{tpu_custom_call.1} parent=11 // pred_fallthru
          _
        // Predicated region
        $region33: #{tpu_custom_call.1} parent=11 // pred_check
          %p341 = pneg %p206
        $region34: #{tpu_custom_call.1} parent=11 // pred_check_branch
          %343 = sbr.rel (%p341) target = $region36
        $region35: #{tpu_custom_call.1} parent=11 // pred_region
          _
        $region36: #{tpu_custom_call.1} parent=11 // pred_fallthru
          _
        // Predicated region
        $region37: #{tpu_custom_call.1} parent=11 // pred_check
          %p344 = pneg %p227
        $region38: #{tpu_custom_call.1} parent=11 // pred_check_branch
          %346 = sbr.rel (%p344) target = $region40
        $region39: #{tpu_custom_call.1} parent=11 // pred_region
          %348 = vsyncadd [#allocation6], 0
          %s349 = sshll.u32 %s8, 4
          %s350 = int_to_ptr.hbm [resolvable:$true] %s349
          %s351 = sshll.u32 [#allocation7], 4
          %s352 = int_to_ptr.vmem [resolvable:$true] %s351
          %357 = dma.hbm_to_vmem [thread:$0]  %s350, 8192, %s352, [#allocation6], 256, 256, 16
        $region40: #{tpu_custom_call.1} parent=11 // pred_fallthru
          _
        // Predicated region
        $region41: #{tpu_custom_call.1} parent=11 // pred_check
          %p358 = pneg %p248
        $region42: #{tpu_custom_call.1} parent=11 // pred_check_branch
          %360 = sbr.rel (%p358) target = $region44
        $region43: #{tpu_custom_call.1} parent=11 // pred_region
          _
        $region44: #{tpu_custom_call.1} parent=11 // pred_fallthru
          _
      $region12: #{tpu_custom_call.1} parent=5 // pred_fallthru
        _
      %p361 = scmp.lt.s32.totalorder %s28, 4
      // Predicated region
      $region45: #{tpu_custom_call.1} parent=5 // pred_check
        %p362 = pneg %p361
      $region46: #{tpu_custom_call.1} parent=5 // pred_check_branch
        %364 = sbr.rel (%p362) target = $region48
      $region47: #{tpu_custom_call.1} parent=5 // pred_region
        // Predicated region
        $region49: #{tpu_custom_call.1} parent=47 // pred_check
          %p365 = pneg %p48
        $region50: #{tpu_custom_call.1} parent=47 // pred_check_branch
          %367 = sbr.rel (%p365) target = $region52
        $region51: #{tpu_custom_call.1} parent=47 // pred_region
          %s368 = sand.u32 %s38, 1
          %s369 = scalar_lea.sflag [#allocation3], %s368
          %s370 = sand.u32 %s38, 1
          %s371 = smul.addr %s370, 128
          %s372 = scalar_lea.vmem [#allocation2], %s371
          %s373 = smul.u32 8, %s28
          %375 = vsyncadd %s369, 0
          %s376 = smul.addr %s373, 4
          %s377 = smul.addr %s376, 4
          %s378 = scalar_lea.hbm %s0, %s377
          %s379 = sshll.u32 %s378, 4
          %s380 = int_to_ptr.hbm [resolvable:$true] %s379
          %s381 = sshll.u32 %s372, 4
          %s382 = int_to_ptr.vmem [resolvable:$true] %s381
          %387 = dma.hbm_to_vmem [thread:$0]  %s380, 2048, %s382, %s369, 256, 256, 16
        $region52: #{tpu_custom_call.1} parent=47 // pred_fallthru
          _
        // Predicated region
        $region53: #{tpu_custom_call.1} parent=47 // pred_check
          %p388 = pneg %p158
        $region54: #{tpu_custom_call.1} parent=47 // pred_check_branch
          %390 = sbr.rel (%p388) target = $region56
        $region55: #{tpu_custom_call.1} parent=47 // pred_region
          %s391 = smul.u32 8, %s28
          %p392 = scmp.lt.s32.totalorder %s391, 31
          %s393 = scalar_select %p392, %s391, 31
          %s394 = smul.addr %s393, 8
          %s395 = scalar_lea.vmem %s5, %s394
          %s396 = smul.u32 8, %s28
        $region56: #{tpu_custom_call.1} parent=47 // pred_fallthru
          _
      $region48: #{tpu_custom_call.1} parent=5 // pred_fallthru
        _
      %p397 = scmp.le.s32.totalorder 1, %s28
      %p398 = scmp.lt.s32.totalorder %s28, 5
      %p399 = pnand %p397, %p398
      %p400 = pneg %p399
      // Predicated region
      $region57: #{tpu_custom_call.1} parent=5 // pred_check
        _
      $region58: #{tpu_custom_call.1} parent=5 // pred_check_branch
        %402 = sbr.rel (%p399) target = $region60
      $region59: #{tpu_custom_call.1} parent=5 // pred_region
        %s403 = ssub.s32 %s28, 1
        %s404 = sand.u32 %s41, 1
        %s405 = scalar_lea.sflag [#allocation3], %s404
        %s406 = sand.u32 %s41, 1
        %s407 = smul.addr %s406, 128
        %s408 = scalar_lea.vmem [#allocation2], %s407
        // Predicated region
        $region61: #{tpu_custom_call.1} parent=59 // pred_check
          %p409 = pneg %p54
        $region62: #{tpu_custom_call.1} parent=59 // pred_check_branch
          %411 = sbr.rel (%p409) target = $region64
        $region63: #{tpu_custom_call.1} parent=59 // pred_region
          %413 = dma.done %s405, 2048
        $region64: #{tpu_custom_call.1} parent=59 // pred_fallthru
          _
        // Predicated region
        $region65: #{tpu_custom_call.1} parent=59 // pred_check
          %p414 = pneg %p75
        $region66: #{tpu_custom_call.1} parent=59 // pred_check_branch
          %416 = sbr.rel (%p414) target = $region68
        $region67: #{tpu_custom_call.1} parent=59 // pred_region
          %418 = dma.done [#allocation6], 8192
        $region68: #{tpu_custom_call.1} parent=59 // pred_fallthru
          _
        // Predicated region
        $region69: #{tpu_custom_call.1} parent=59 // pred_check
          %p419 = pneg %p227
        $region70: #{tpu_custom_call.1} parent=59 // pred_check_branch
          %421 = sbr.rel (%p419) target = $region72
        $region71: #{tpu_custom_call.1} parent=59 // pred_region
          %423 = dma.done [#allocation6], 8192
        $region72: #{tpu_custom_call.1} parent=59 // pred_fallthru
          _
        %s424 = sand.u32 %s41, 1
        %s425 = scalar_lea.sflag [#allocation3], %s424
        %s426 = sand.u32 %s41, 1
        %s427 = smul.addr %s426, 128
        %s428 = scalar_lea.vmem [#allocation2], %s427
        %p429 = pneg %p54
        %p430 = pneg %p51
        %p431 = pneg %p75
        %p432 = pneg %p72
        %p433 = pneg %p96
        %p434 = pneg %p93
        %p435 = pneg %p117
        %p436 = pneg %p114
        %p437 = pneg %p138
        %p438 = pneg %p135
        %s439 = smul.u32 8, %s33
        %p440 = scmp.lt.s32.totalorder %s439, 31
        %s441 = scalar_select %p440, %s439, 31
        %s442 = smul.addr %s441, 8
        %s443 = scalar_lea.vmem %s5, %s442
        %p444 = pneg %p164
        %p445 = pneg %p161
        %p446 = pneg %p185
        %p447 = pneg %p182
        %p448 = pneg %p206
        %p449 = pneg %p203
        %p450 = pneg %p227
        %p451 = pneg %p224
        %p452 = pneg %p248
        %p453 = pneg %p245
        %p454 = pneg %p274
        %p455 = pneg %p271
        %s456 = sand.u32 %s261, 1
        %s457 = scalar_lea.sflag [#allocation4], %s456
        %s458 = sand.u32 %s261, 1
        %s459 = smul.addr %s458, 128
        %s460 = scalar_lea.vmem [#allocation8], %s459
        %p461 = pneg %p300
        %p462 = pneg %p297
        %s463 = sand.u32 %s287, 1
        %s464 = scalar_lea.sflag [#allocation10], %s463
        %s465 = sand.u32 %s287, 1
        %s466 = smul.addr %s465, 64
        %s467 = scalar_lea.vmem [#allocation9], %s466
        %s468 = smul.u32 8, %s33
        %s469 = smul.u32 8, %s33
        %p470 = scmp.lt.s32.totalorder %s469, 31
        %s471 = scalar_select %p470, %s469, 31
        %s472 = smul.addr %s471, 8
        %s473 = scalar_lea.vmem %s5, %s472
        %s474 = smul.u32 8, %s33
        %s475 = smul.u32 8, %s33
        %s476 = smul.u32 8, %s33
        %v478 = vld [vmem:[%s408] sm:$0xff]
        %v479 = vld [vmem:[%s408 + $0x8] sm:$0xff]
        %v480 = vld [vmem:[%s408 + $0x10] sm:$0xff]
        %v481 = vld [vmem:[%s408 + $0x18] sm:$0xff]
        %v482 = vld [vmem:[%s408 + $0x20] sm:$0xff]
        %v483 = vld [vmem:[%s408 + $0x28] sm:$0xff]
        %v484 = vld [vmem:[%s408 + $0x30] sm:$0xff]
        %v485 = vld [vmem:[%s408 + $0x38] sm:$0xff]
        %v486 = vld [vmem:[%s408 + $0x40] sm:$0xff]
        %v487 = vld [vmem:[%s408 + $0x48] sm:$0xff]
        %v488 = vld [vmem:[%s408 + $0x50] sm:$0xff]
        %v489 = vld [vmem:[%s408 + $0x58] sm:$0xff]
        %v490 = vld [vmem:[%s408 + $0x60] sm:$0xff]
        %v491 = vld [vmem:[%s408 + $0x68] sm:$0xff]
        %v492 = vld [vmem:[%s408 + $0x70] sm:$0xff]
        %v493 = vld [vmem:[%s408 + $0x78] sm:$0xff]
        %v494 = vld [vmem:[#allocation5] sm:$0xff]
        %v495 = vld [vmem:[#allocation5 + $0x8] sm:$0xff]
        %v496 = vld [vmem:[#allocation5 + $0x10] sm:$0xff]
        %v497 = vld [vmem:[#allocation5 + $0x18] sm:$0xff]
        %v498 = vld [vmem:[#allocation5 + $0x20] sm:$0xff]
        %v499 = vld [vmem:[#allocation5 + $0x28] sm:$0xff]
        %v500 = vld [vmem:[#allocation5 + $0x30] sm:$0xff]
        %v501 = vld [vmem:[#allocation5 + $0x38] sm:$0xff]
        %v502 = vld [vmem:[#allocation5 + $0x40] sm:$0xff]
        %v503 = vld [vmem:[#allocation5 + $0x48] sm:$0xff]
        %v504 = vld [vmem:[#allocation5 + $0x50] sm:$0xff]
        %v505 = vld [vmem:[#allocation5 + $0x58] sm:$0xff]
        %v506 = vld [vmem:[#allocation5 + $0x60] sm:$0xff]
        %v507 = vld [vmem:[#allocation5 + $0x68] sm:$0xff]
        %v508 = vld [vmem:[#allocation5 + $0x70] sm:$0xff]
        %v509 = vld [vmem:[#allocation5 + $0x78] sm:$0xff]
        %v510 = vld [vmem:[#allocation5 + $0x80] sm:$0xff]
        %v511 = vld [vmem:[#allocation5 + $0x88] sm:$0xff]
        %v512 = vld [vmem:[#allocation5 + $0x90] sm:$0xff]
        %v513 = vld [vmem:[#allocation5 + $0x98] sm:$0xff]
        %v514 = vld [vmem:[#allocation5 + $0xa0] sm:$0xff]
        %v515 = vld [vmem:[#allocation5 + $0xa8] sm:$0xff]
        %v516 = vld [vmem:[#allocation5 + $0xb0] sm:$0xff]
        %v517 = vld [vmem:[#allocation5 + $0xb8] sm:$0xff]
        %v518 = vld [vmem:[#allocation5 + $0xc0] sm:$0xff]
        %v519 = vld [vmem:[#allocation5 + $0xc8] sm:$0xff]
        %v520 = vld [vmem:[#allocation5 + $0xd0] sm:$0xff]
        %v521 = vld [vmem:[#allocation5 + $0xd8] sm:$0xff]
        %v522 = vld [vmem:[#allocation5 + $0xe0] sm:$0xff]
        %v523 = vld [vmem:[#allocation5 + $0xe8] sm:$0xff]
        %v524 = vld [vmem:[#allocation5 + $0xf0] sm:$0xff]
        %v525 = vld [vmem:[#allocation5 + $0xf8] sm:$0xff]
        %v526 = vld [vmem:[#allocation5 + $0x100] sm:$0xff]
        %v527 = vld [vmem:[#allocation5 + $0x108] sm:$0xff]
        %v528 = vld [vmem:[#allocation5 + $0x110] sm:$0xff]
        %v529 = vld [vmem:[#allocation5 + $0x118] sm:$0xff]
        %v530 = vld [vmem:[#allocation5 + $0x120] sm:$0xff]
        %v531 = vld [vmem:[#allocation5 + $0x128] sm:$0xff]
        %v532 = vld [vmem:[#allocation5 + $0x130] sm:$0xff]
        %v533 = vld [vmem:[#allocation5 + $0x138] sm:$0xff]
        %v534 = vld [vmem:[#allocation5 + $0x140] sm:$0xff]
        %v535 = vld [vmem:[#allocation5 + $0x148] sm:$0xff]
        %v536 = vld [vmem:[#allocation5 + $0x150] sm:$0xff]
        %v537 = vld [vmem:[#allocation5 + $0x158] sm:$0xff]
        %v538 = vld [vmem:[#allocation5 + $0x160] sm:$0xff]
        %v539 = vld [vmem:[#allocation5 + $0x168] sm:$0xff]
        %v540 = vld [vmem:[#allocation5 + $0x170] sm:$0xff]
        %v541 = vld [vmem:[#allocation5 + $0x178] sm:$0xff]
        %v542 = vld [vmem:[#allocation5 + $0x180] sm:$0xff]
        %v543 = vld [vmem:[#allocation5 + $0x188] sm:$0xff]
        %v544 = vld [vmem:[#allocation5 + $0x190] sm:$0xff]
        %v545 = vld [vmem:[#allocation5 + $0x198] sm:$0xff]
        %v546 = vld [vmem:[#allocation5 + $0x1a0] sm:$0xff]
        %v547 = vld [vmem:[#allocation5 + $0x1a8] sm:$0xff]
        %v548 = vld [vmem:[#allocation5 + $0x1b0] sm:$0xff]
        %v549 = vld [vmem:[#allocation5 + $0x1b8] sm:$0xff]
        %v550 = vld [vmem:[#allocation5 + $0x1c0] sm:$0xff]
        %v551 = vld [vmem:[#allocation5 + $0x1c8] sm:$0xff]
        %v552 = vld [vmem:[#allocation5 + $0x1d0] sm:$0xff]
        %v553 = vld [vmem:[#allocation5 + $0x1d8] sm:$0xff]
        %v554 = vld [vmem:[#allocation5 + $0x1e0] sm:$0xff]
        %v555 = vld [vmem:[#allocation5 + $0x1e8] sm:$0xff]
        %v556 = vld [vmem:[#allocation5 + $0x1f0] sm:$0xff]
        %v557 = vld [vmem:[#allocation5 + $0x1f8] sm:$0xff]
        %v558 = vld [vmem:[%s2] sm:$0x3]
        %v560 = vperm.slane %v558, 0
        %v561 = vperm.slane %v558, 1
        %v580 = vunpack.c.l.b16 %v478
        %v581 = vunpack.c.h.b16 %v478
        %v582 = vunpack.c.l.b16 %v479
        %v583 = vunpack.c.h.b16 %v479
        %v584 = vunpack.c.l.b16 %v480
        %v585 = vunpack.c.h.b16 %v480
        %v586 = vunpack.c.l.b16 %v481
        %v587 = vunpack.c.h.b16 %v481
        %v588 = vunpack.c.l.b16 %v482
        %v589 = vunpack.c.h.b16 %v482
        %v590 = vunpack.c.l.b16 %v483
        %v591 = vunpack.c.h.b16 %v483
        %v592 = vunpack.c.l.b16 %v484
        %v593 = vunpack.c.h.b16 %v484
        %v594 = vunpack.c.l.b16 %v485
        %v595 = vunpack.c.h.b16 %v485
        %v596 = vunpack.c.l.b16 %v486
        %v597 = vunpack.c.h.b16 %v486
        %v598 = vunpack.c.l.b16 %v487
        %v599 = vunpack.c.h.b16 %v487
        %v600 = vunpack.c.l.b16 %v488
        %v601 = vunpack.c.h.b16 %v488
        %v602 = vunpack.c.l.b16 %v489
        %v603 = vunpack.c.h.b16 %v489
        %v604 = vunpack.c.l.b16 %v490
        %v605 = vunpack.c.h.b16 %v490
        %v606 = vunpack.c.l.b16 %v491
        %v607 = vunpack.c.h.b16 %v491
        %v608 = vunpack.c.l.b16 %v492
        %v609 = vunpack.c.h.b16 %v492
        %v610 = vunpack.c.l.b16 %v493
        %v611 = vunpack.c.h.b16 %v493
        %v612 = vpack.c.b16 %v584, %v580
        %v613 = vpack.c.b16 %v585, %v581
        %v614 = vpack.c.b16 %v586, %v582
        %v615 = vpack.c.b16 %v587, %v583
        %v616 = vpack.c.b16 %v592, %v588
        %v617 = vpack.c.b16 %v593, %v589
        %v618 = vpack.c.b16 %v594, %v590
        %v619 = vpack.c.b16 %v595, %v591
        %v620 = vpack.c.b16 %v600, %v596
        %v621 = vpack.c.b16 %v601, %v597
        %v622 = vpack.c.b16 %v602, %v598
        %v623 = vpack.c.b16 %v603, %v599
        %v624 = vpack.c.b16 %v608, %v604
        %v625 = vpack.c.b16 %v609, %v605
        %v626 = vpack.c.b16 %v610, %v606
        %v627 = vpack.c.b16 %v611, %v607
        %v708 = vunpack.c.l.b16 %v494
        %v709 = vunpack.c.h.b16 %v494
        %v710 = vunpack.c.l.b16 %v495
        %v711 = vunpack.c.h.b16 %v495
        %v712 = vunpack.c.l.b16 %v496
        %v713 = vunpack.c.h.b16 %v496
        %v714 = vunpack.c.l.b16 %v497
        %v715 = vunpack.c.h.b16 %v497
        %v716 = vunpack.c.l.b16 %v498
        %v717 = vunpack.c.h.b16 %v498
        %v718 = vunpack.c.l.b16 %v499
        %v719 = vunpack.c.h.b16 %v499
        %v720 = vunpack.c.l.b16 %v500
        %v721 = vunpack.c.h.b16 %v500
        %v722 = vunpack.c.l.b16 %v501
        %v723 = vunpack.c.h.b16 %v501
        %v724 = vunpack.c.l.b16 %v502
        %v725 = vunpack.c.h.b16 %v502
        %v726 = vunpack.c.l.b16 %v503
        %v727 = vunpack.c.h.b16 %v503
        %v728 = vunpack.c.l.b16 %v504
        %v729 = vunpack.c.h.b16 %v504
        %v730 = vunpack.c.l.b16 %v505
        %v731 = vunpack.c.h.b16 %v505
        %v732 = vunpack.c.l.b16 %v506
        %v733 = vunpack.c.h.b16 %v506
        %v734 = vunpack.c.l.b16 %v507
        %v735 = vunpack.c.h.b16 %v507
        %v736 = vunpack.c.l.b16 %v508
        %v737 = vunpack.c.h.b16 %v508
        %v738 = vunpack.c.l.b16 %v509
        %v739 = vunpack.c.h.b16 %v509
        %v740 = vunpack.c.l.b16 %v510
        %v741 = vunpack.c.h.b16 %v510
        %v742 = vunpack.c.l.b16 %v511
        %v743 = vunpack.c.h.b16 %v511
        %v744 = vunpack.c.l.b16 %v512
        %v745 = vunpack.c.h.b16 %v512
        %v746 = vunpack.c.l.b16 %v513
        %v747 = vunpack.c.h.b16 %v513
        %v748 = vunpack.c.l.b16 %v514
        %v749 = vunpack.c.h.b16 %v514
        %v750 = vunpack.c.l.b16 %v515
        %v751 = vunpack.c.h.b16 %v515
        %v752 = vunpack.c.l.b16 %v516
        %v753 = vunpack.c.h.b16 %v516
        %v754 = vunpack.c.l.b16 %v517
        %v755 = vunpack.c.h.b16 %v517
        %v756 = vunpack.c.l.b16 %v518
        %v757 = vunpack.c.h.b16 %v518
        %v758 = vunpack.c.l.b16 %v519
        %v759 = vunpack.c.h.b16 %v519
        %v760 = vunpack.c.l.b16 %v520
        %v761 = vunpack.c.h.b16 %v520
        %v762 = vunpack.c.l.b16 %v521
        %v763 = vunpack.c.h.b16 %v521
        %v764 = vunpack.c.l.b16 %v522
        %v765 = vunpack.c.h.b16 %v522
        %v766 = vunpack.c.l.b16 %v523
        %v767 = vunpack.c.h.b16 %v523
        %v768 = vunpack.c.l.b16 %v524
        %v769 = vunpack.c.h.b16 %v524
        %v770 = vunpack.c.l.b16 %v525
        %v771 = vunpack.c.h.b16 %v525
        %v772 = vunpack.c.l.b16 %v526
        %v773 = vunpack.c.h.b16 %v526
        %v774 = vunpack.c.l.b16 %v527
        %v775 = vunpack.c.h.b16 %v527
        %v776 = vunpack.c.l.b16 %v528
        %v777 = vunpack.c.h.b16 %v528
        %v778 = vunpack.c.l.b16 %v529
        %v779 = vunpack.c.h.b16 %v529
        %v780 = vunpack.c.l.b16 %v530
        %v781 = vunpack.c.h.b16 %v530
        %v782 = vunpack.c.l.b16 %v531
        %v783 = vunpack.c.h.b16 %v531
        %v784 = vunpack.c.l.b16 %v532
        %v785 = vunpack.c.h.b16 %v532
        %v786 = vunpack.c.l.b16 %v533
        %v787 = vunpack.c.h.b16 %v533
        %v788 = vunpack.c.l.b16 %v534
        %v789 = vunpack.c.h.b16 %v534
        %v790 = vunpack.c.l.b16 %v535
        %v791 = vunpack.c.h.b16 %v535
        %v792 = vunpack.c.l.b16 %v536
        %v793 = vunpack.c.h.b16 %v536
        %v794 = vunpack.c.l.b16 %v537
        %v795 = vunpack.c.h.b16 %v537
        %v796 = vunpack.c.l.b16 %v538
        %v797 = vunpack.c.h.b16 %v538
        %v798 = vunpack.c.l.b16 %v539
        %v799 = vunpack.c.h.b16 %v539
        %v800 = vunpack.c.l.b16 %v540
        %v801 = vunpack.c.h.b16 %v540
        %v802 = vunpack.c.l.b16 %v541
        %v803 = vunpack.c.h.b16 %v541
        %v804 = vunpack.c.l.b16 %v542
        %v805 = vunpack.c.h.b16 %v542
        %v806 = vunpack.c.l.b16 %v543
        %v807 = vunpack.c.h.b16 %v543
        %v808 = vunpack.c.l.b16 %v544
        %v809 = vunpack.c.h.b16 %v544
        %v810 = vunpack.c.l.b16 %v545
        %v811 = vunpack.c.h.b16 %v545
        %v812 = vunpack.c.l.b16 %v546
        %v813 = vunpack.c.h.b16 %v546
        %v814 = vunpack.c.l.b16 %v547
        %v815 = vunpack.c.h.b16 %v547
        %v816 = vunpack.c.l.b16 %v548
        %v817 = vunpack.c.h.b16 %v548
        %v818 = vunpack.c.l.b16 %v549
        %v819 = vunpack.c.h.b16 %v549
        %v820 = vunpack.c.l.b16 %v550
        %v821 = vunpack.c.h.b16 %v550
        %v822 = vunpack.c.l.b16 %v551
        %v823 = vunpack.c.h.b16 %v551
        %v824 = vunpack.c.l.b16 %v552
        %v825 = vunpack.c.h.b16 %v552
        %v826 = vunpack.c.l.b16 %v553
        %v827 = vunpack.c.h.b16 %v553
        %v828 = vunpack.c.l.b16 %v554
        %v829 = vunpack.c.h.b16 %v554
        %v830 = vunpack.c.l.b16 %v555
        %v831 = vunpack.c.h.b16 %v555
        %v832 = vunpack.c.l.b16 %v556
        %v833 = vunpack.c.h.b16 %v556
        %v834 = vunpack.c.l.b16 %v557
        %v835 = vunpack.c.h.b16 %v557
        %v836 = vpack.c.b16 %v710, %v708
        %v837 = vpack.c.b16 %v711, %v709
        %v838 = vpack.c.b16 %v714, %v712
        %v839 = vpack.c.b16 %v715, %v713
        %v840 = vpack.c.b16 %v718, %v716
        %v841 = vpack.c.b16 %v719, %v717
        %v842 = vpack.c.b16 %v722, %v720
        %v843 = vpack.c.b16 %v723, %v721
        %v844 = vpack.c.b16 %v726, %v724
        %v845 = vpack.c.b16 %v727, %v725
        %v846 = vpack.c.b16 %v730, %v728
        %v847 = vpack.c.b16 %v731, %v729
        %v848 = vpack.c.b16 %v734, %v732
        %v849 = vpack.c.b16 %v735, %v733
        %v850 = vpack.c.b16 %v738, %v736
        %v851 = vpack.c.b16 %v739, %v737
        %v852 = vpack.c.b16 %v742, %v740
        %v853 = vpack.c.b16 %v743, %v741
        %v854 = vpack.c.b16 %v746, %v744
        %v855 = vpack.c.b16 %v747, %v745
        %v856 = vpack.c.b16 %v750, %v748
        %v857 = vpack.c.b16 %v751, %v749
        %v858 = vpack.c.b16 %v754, %v752
        %v859 = vpack.c.b16 %v755, %v753
        %v860 = vpack.c.b16 %v758, %v756
        %v861 = vpack.c.b16 %v759, %v757
        %v862 = vpack.c.b16 %v762, %v760
        %v863 = vpack.c.b16 %v763, %v761
        %v864 = vpack.c.b16 %v766, %v764
        %v865 = vpack.c.b16 %v767, %v765
        %v866 = vpack.c.b16 %v770, %v768
        %v867 = vpack.c.b16 %v771, %v769
        %v868 = vpack.c.b16 %v774, %v772
        %v869 = vpack.c.b16 %v775, %v773
        %v870 = vpack.c.b16 %v778, %v776
        %v871 = vpack.c.b16 %v779, %v777
        %v872 = vpack.c.b16 %v782, %v780
        %v873 = vpack.c.b16 %v783, %v781
        %v874 = vpack.c.b16 %v786, %v784
        %v875 = vpack.c.b16 %v787, %v785
        %v876 = vpack.c.b16 %v790, %v788
        %v877 = vpack.c.b16 %v791, %v789
        %v878 = vpack.c.b16 %v794, %v792
        %v879 = vpack.c.b16 %v795, %v793
        %v880 = vpack.c.b16 %v798, %v796
        %v881 = vpack.c.b16 %v799, %v797
        %v882 = vpack.c.b16 %v802, %v800
        %v883 = vpack.c.b16 %v803, %v801
        %v884 = vpack.c.b16 %v806, %v804
        %v885 = vpack.c.b16 %v807, %v805
        %v886 = vpack.c.b16 %v810, %v808
        %v887 = vpack.c.b16 %v811, %v809
        %v888 = vpack.c.b16 %v814, %v812
        %v889 = vpack.c.b16 %v815, %v813
        %v890 = vpack.c.b16 %v818, %v816
        %v891 = vpack.c.b16 %v819, %v817
        %v892 = vpack.c.b16 %v822, %v820
        %v893 = vpack.c.b16 %v823, %v821
        %v894 = vpack.c.b16 %v826, %v824
        %v895 = vpack.c.b16 %v827, %v825
        %v896 = vpack.c.b16 %v830, %v828
        %v897 = vpack.c.b16 %v831, %v829
        %v898 = vpack.c.b16 %v834, %v832
        %v899 = vpack.c.b16 %v835, %v833
        %964 = vmatpush.bf16.msra.mxu0 %v850
        %965 = vmatpush.bf16.msra.mxu0 %v848
        %966 = vmatpush.bf16.msra.mxu0 %v846
        %967 = vmatpush.bf16.msra.mxu0 %v844
        %968 = vmatpush.bf16.msra.mxu0 %v842
        %969 = vmatpush.bf16.msra.mxu0 %v840
        %970 = vmatpush.bf16.msra.mxu0 %v838
        %971 = vmatpush.bf16.msra.mxu0 %v836
        %972 = vmatmul.bf16.gmra.mxu0 %v612
        %v973 = vpop.f32.mrf.mxu0
        %v974 = vadd.f32 %v560, %v973
        %v975 = vpop.f32.mrf.mxu0
        %v976 = vadd.f32 %v560, %v975
        %977 = vmatmul.bf16.gmra.mxu0 %v616
        %v978 = vpop.f32.mrf.mxu0
        %v979 = vadd.f32 %v560, %v978
        %v980 = vpop.f32.mrf.mxu0
        %v981 = vadd.f32 %v560, %v980
        %982 = vmatmul.bf16.gmra.mxu0 %v620
        %v983 = vpop.f32.mrf.mxu0
        %v984 = vadd.f32 %v560, %v983
        %v985 = vpop.f32.mrf.mxu0
        %v986 = vadd.f32 %v560, %v985
        %987 = vmatmul.bf16.gmra.mxu0 %v624
        %v988 = vpop.f32.mrf.mxu0
        %v989 = vadd.f32 %v560, %v988
        %v990 = vpop.f32.mrf.mxu0
        %v991 = vadd.f32 %v560, %v990
        %992 = vdwg.mxu0
        %993 = vmatpush.bf16.msra.mxu0 %v866
        %994 = vmatpush.bf16.msra.mxu0 %v864
        %995 = vmatpush.bf16.msra.mxu0 %v862
        %996 = vmatpush.bf16.msra.mxu0 %v860
        %997 = vmatpush.bf16.msra.mxu0 %v858
        %998 = vmatpush.bf16.msra.mxu0 %v856
        %999 = vmatpush.bf16.msra.mxu0 %v854
        %1000 = vmatpush.bf16.msra.mxu0 %v852
        %1001 = vmatmul.bf16.gmra.mxu0 %v613
        %v1002 = vpop.f32.mrf.mxu0
        %v1003 = vadd.f32 %v974, %v1002
        %v1004 = vpop.f32.mrf.mxu0
        %v1005 = vadd.f32 %v976, %v1004
        %1006 = vmatmul.bf16.gmra.mxu0 %v617
        %v1007 = vpop.f32.mrf.mxu0
        %v1008 = vadd.f32 %v979, %v1007
        %v1009 = vpop.f32.mrf.mxu0
        %v1010 = vadd.f32 %v981, %v1009
        %1011 = vmatmul.bf16.gmra.mxu0 %v621
        %v1012 = vpop.f32.mrf.mxu0
        %v1013 = vadd.f32 %v984, %v1012
        %v1014 = vpop.f32.mrf.mxu0
        %v1015 = vadd.f32 %v986, %v1014
        %1016 = vmatmul.bf16.gmra.mxu0 %v625
        %v1017 = vpop.f32.mrf.mxu0
        %v1018 = vadd.f32 %v989, %v1017
        %v1019 = vpop.f32.mrf.mxu0
        %v1020 = vadd.f32 %v991, %v1019
        %1021 = vdwg.mxu0
        %1022 = vmatpush.bf16.msra.mxu0 %v882
        %1023 = vmatpush.bf16.msra.mxu0 %v880
        %1024 = vmatpush.bf16.msra.mxu0 %v878
        %1025 = vmatpush.bf16.msra.mxu0 %v876
        %1026 = vmatpush.bf16.msra.mxu0 %v874
        %1027 = vmatpush.bf16.msra.mxu0 %v872
        %1028 = vmatpush.bf16.msra.mxu0 %v870
        %1029 = vmatpush.bf16.msra.mxu0 %v868
        %1030 = vmatmul.bf16.gmra.mxu0 %v614
        %v1031 = vpop.f32.mrf.mxu0
        %v1032 = vadd.f32 %v1003, %v1031
        %v1033 = vpop.f32.mrf.mxu0
        %v1034 = vadd.f32 %v1005, %v1033
        %1035 = vmatmul.bf16.gmra.mxu0 %v618
        %v1036 = vpop.f32.mrf.mxu0
        %v1037 = vadd.f32 %v1008, %v1036
        %v1038 = vpop.f32.mrf.mxu0
        %v1039 = vadd.f32 %v1010, %v1038
        %1040 = vmatmul.bf16.gmra.mxu0 %v622
        %v1041 = vpop.f32.mrf.mxu0
        %v1042 = vadd.f32 %v1013, %v1041
        %v1043 = vpop.f32.mrf.mxu0
        %v1044 = vadd.f32 %v1015, %v1043
        %1045 = vmatmul.bf16.gmra.mxu0 %v626
        %v1046 = vpop.f32.mrf.mxu0
        %v1047 = vadd.f32 %v1018, %v1046
        %v1048 = vpop.f32.mrf.mxu0
        %v1049 = vadd.f32 %v1020, %v1048
        %1050 = vdwg.mxu0
        %1051 = vmatpush.bf16.msra.mxu0 %v898
        %1052 = vmatpush.bf16.msra.mxu0 %v896
        %1053 = vmatpush.bf16.msra.mxu0 %v894
        %1054 = vmatpush.bf16.msra.mxu0 %v892
        %1055 = vmatpush.bf16.msra.mxu0 %v890
        %1056 = vmatpush.bf16.msra.mxu0 %v888
        %1057 = vmatpush.bf16.msra.mxu0 %v886
        %1058 = vmatpush.bf16.msra.mxu0 %v884
        %1059 = vmatmul.bf16.gmra.mxu0 %v615
        %v1060 = vpop.f32.mrf.mxu0
        %v1061 = vadd.f32 %v1032, %v1060
        %v1062 = vpop.f32.mrf.mxu0
        %v1063 = vadd.f32 %v1034, %v1062
        %1064 = vmatmul.bf16.gmra.mxu0 %v619
        %v1065 = vpop.f32.mrf.mxu0
        %v1066 = vadd.f32 %v1037, %v1065
        %v1067 = vpop.f32.mrf.mxu0
        %v1068 = vadd.f32 %v1039, %v1067
        %1069 = vmatmul.bf16.gmra.mxu0 %v623
        %v1070 = vpop.f32.mrf.mxu0
        %v1071 = vadd.f32 %v1042, %v1070
        %v1072 = vpop.f32.mrf.mxu0
        %v1073 = vadd.f32 %v1044, %v1072
        %1074 = vmatmul.bf16.gmra.mxu0 %v627
        %v1075 = vpop.f32.mrf.mxu0
        %v1076 = vadd.f32 %v1047, %v1075
        %v1077 = vpop.f32.mrf.mxu0
        %v1078 = vadd.f32 %v1049, %v1077
        %1079 = vdwg.mxu0
        %1080 = vmatpush.bf16.msra.mxu0 %v851
        %1081 = vmatpush.bf16.msra.mxu0 %v849
        %1082 = vmatpush.bf16.msra.mxu0 %v847
        %1083 = vmatpush.bf16.msra.mxu0 %v845
        %1084 = vmatpush.bf16.msra.mxu0 %v843
        %1085 = vmatpush.bf16.msra.mxu0 %v841
        %1086 = vmatpush.bf16.msra.mxu0 %v839
        %1087 = vmatpush.bf16.msra.mxu0 %v837
        %1088 = vmatmul.bf16.gmra.mxu0 %v612
        %v1089 = vpop.f32.mrf.mxu0
        %v1090 = vadd.f32 %v561, %v1089
        %v1091 = vpop.f32.mrf.mxu0
        %v1092 = vadd.f32 %v561, %v1091
        %1093 = vmatmul.bf16.gmra.mxu0 %v616
        %v1094 = vpop.f32.mrf.mxu0
        %v1095 = vadd.f32 %v561, %v1094
        %v1096 = vpop.f32.mrf.mxu0
        %v1097 = vadd.f32 %v561, %v1096
        %1098 = vmatmul.bf16.gmra.mxu0 %v620
        %v1099 = vpop.f32.mrf.mxu0
        %v1100 = vadd.f32 %v561, %v1099
        %v1101 = vpop.f32.mrf.mxu0
        %v1102 = vadd.f32 %v561, %v1101
        %1103 = vmatmul.bf16.gmra.mxu0 %v624
        %v1104 = vpop.f32.mrf.mxu0
        %v1105 = vadd.f32 %v561, %v1104
        %v1106 = vpop.f32.mrf.mxu0
        %v1107 = vadd.f32 %v561, %v1106
        %1108 = vdwg.mxu0
        %1109 = vmatpush.bf16.msra.mxu0 %v867
        %1110 = vmatpush.bf16.msra.mxu0 %v865
        %1111 = vmatpush.bf16.msra.mxu0 %v863
        %1112 = vmatpush.bf16.msra.mxu0 %v861
        %1113 = vmatpush.bf16.msra.mxu0 %v859
        %1114 = vmatpush.bf16.msra.mxu0 %v857
        %1115 = vmatpush.bf16.msra.mxu0 %v855
        %1116 = vmatpush.bf16.msra.mxu0 %v853
        %1117 = vmatmul.bf16.gmra.mxu0 %v613
        %v1118 = vpop.f32.mrf.mxu0
        %v1119 = vadd.f32 %v1090, %v1118
        %v1120 = vpop.f32.mrf.mxu0
        %v1121 = vadd.f32 %v1092, %v1120
        %1122 = vmatmul.bf16.gmra.mxu0 %v617
        %v1123 = vpop.f32.mrf.mxu0
        %v1124 = vadd.f32 %v1095, %v1123
        %v1125 = vpop.f32.mrf.mxu0
        %v1126 = vadd.f32 %v1097, %v1125
        %1127 = vmatmul.bf16.gmra.mxu0 %v621
        %v1128 = vpop.f32.mrf.mxu0
        %v1129 = vadd.f32 %v1100, %v1128
        %v1130 = vpop.f32.mrf.mxu0
        %v1131 = vadd.f32 %v1102, %v1130
        %1132 = vmatmul.bf16.gmra.mxu0 %v625
        %v1133 = vpop.f32.mrf.mxu0
        %v1134 = vadd.f32 %v1105, %v1133
        %v1135 = vpop.f32.mrf.mxu0
        %v1136 = vadd.f32 %v1107, %v1135
        %1137 = vdwg.mxu0
        %1138 = vmatpush.bf16.msra.mxu0 %v883
        %1139 = vmatpush.bf16.msra.mxu0 %v881
        %1140 = vmatpush.bf16.msra.mxu0 %v879
        %1141 = vmatpush.bf16.msra.mxu0 %v877
        %1142 = vmatpush.bf16.msra.mxu0 %v875
        %1143 = vmatpush.bf16.msra.mxu0 %v873
        %1144 = vmatpush.bf16.msra.mxu0 %v871
        %1145 = vmatpush.bf16.msra.mxu0 %v869
        %1146 = vmatmul.bf16.gmra.mxu0 %v614
        %v1147 = vpop.f32.mrf.mxu0
        %v1148 = vadd.f32 %v1119, %v1147
        %v1149 = vpop.f32.mrf.mxu0
        %v1150 = vadd.f32 %v1121, %v1149
        %1151 = vmatmul.bf16.gmra.mxu0 %v618
        %v1152 = vpop.f32.mrf.mxu0
        %v1153 = vadd.f32 %v1124, %v1152
        %v1154 = vpop.f32.mrf.mxu0
        %v1155 = vadd.f32 %v1126, %v1154
        %1156 = vmatmul.bf16.gmra.mxu0 %v622
        %v1157 = vpop.f32.mrf.mxu0
        %v1158 = vadd.f32 %v1129, %v1157
        %v1159 = vpop.f32.mrf.mxu0
        %v1160 = vadd.f32 %v1131, %v1159
        %1161 = vmatmul.bf16.gmra.mxu0 %v626
        %v1162 = vpop.f32.mrf.mxu0
        %v1163 = vadd.f32 %v1134, %v1162
        %v1164 = vpop.f32.mrf.mxu0
        %v1165 = vadd.f32 %v1136, %v1164
        %1166 = vdwg.mxu0
        %1167 = vmatpush.bf16.msra.mxu0 %v899
        %1168 = vmatpush.bf16.msra.mxu0 %v897
        %1169 = vmatpush.bf16.msra.mxu0 %v895
        %1170 = vmatpush.bf16.msra.mxu0 %v893
        %1171 = vmatpush.bf16.msra.mxu0 %v891
        %1172 = vmatpush.bf16.msra.mxu0 %v889
        %1173 = vmatpush.bf16.msra.mxu0 %v887
        %1174 = vmatpush.bf16.msra.mxu0 %v885
        %1175 = vmatmul.bf16.gmra.mxu0 %v615
        %v1176 = vpop.f32.mrf.mxu0
        %v1177 = vadd.f32 %v1148, %v1176
        %v1178 = vpop.f32.mrf.mxu0
        %v1179 = vadd.f32 %v1150, %v1178
        %1180 = vmatmul.bf16.gmra.mxu0 %v619
        %v1181 = vpop.f32.mrf.mxu0
        %v1182 = vadd.f32 %v1153, %v1181
        %v1183 = vpop.f32.mrf.mxu0
        %v1184 = vadd.f32 %v1155, %v1183
        %1185 = vmatmul.bf16.gmra.mxu0 %v623
        %v1186 = vpop.f32.mrf.mxu0
        %v1187 = vadd.f32 %v1158, %v1186
        %v1188 = vpop.f32.mrf.mxu0
        %v1189 = vadd.f32 %v1160, %v1188
        %1190 = vmatmul.bf16.gmra.mxu0 %v627
        %v1191 = vpop.f32.mrf.mxu0
        %v1192 = vadd.f32 %v1163, %v1191
        %v1193 = vpop.f32.mrf.mxu0
        %v1194 = vadd.f32 %v1165, %v1193
        %1195 = vdwg.mxu0
        %v1196 = vmax.f32 %v1061, 0.0
        %v1197 = vmax.f32 %v1177, 0.0
        %v1198 = vmax.f32 %v1063, 0.0
        %v1199 = vmax.f32 %v1179, 0.0
        %v1200 = vmax.f32 %v1066, 0.0
        %v1201 = vmax.f32 %v1182, 0.0
        %v1202 = vmax.f32 %v1068, 0.0
        %v1203 = vmax.f32 %v1184, 0.0
        %v1204 = vmax.f32 %v1071, 0.0
        %v1205 = vmax.f32 %v1187, 0.0
        %v1206 = vmax.f32 %v1073, 0.0
        %v1207 = vmax.f32 %v1189, 0.0
        %v1208 = vmax.f32 %v1076, 0.0
        %v1209 = vmax.f32 %v1192, 0.0
        %v1210 = vmax.f32 %v1078, 0.0
        %v1211 = vmax.f32 %v1194, 0.0
        %v1212 = vpack.c.bf16 %v1198, %v1196
        %v1213 = vpack.c.bf16 %v1199, %v1197
        %v1214 = vpack.c.bf16 %v1202, %v1200
        %v1215 = vpack.c.bf16 %v1203, %v1201
        %v1216 = vpack.c.bf16 %v1206, %v1204
        %v1217 = vpack.c.bf16 %v1207, %v1205
        %v1218 = vpack.c.bf16 %v1210, %v1208
        %v1219 = vpack.c.bf16 %v1211, %v1209
        %v1220 = vld [vmem:[%s3] sm:$0xf]
        %v1221 = vld [vmem:[%s3 + $0x4] sm:$0xf]
        %v1222 = vld [vmem:[%s3 + $0x8] sm:$0xf]
        %v1223 = vld [vmem:[%s3 + $0xc] sm:$0xf]
        %v1224 = vld [vmem:[%s3 + $0x10] sm:$0xf]
        %v1225 = vld [vmem:[%s3 + $0x14] sm:$0xf]
        %v1226 = vld [vmem:[%s3 + $0x18] sm:$0xf]
        %v1227 = vld [vmem:[%s3 + $0x1c] sm:$0xf]
        %v1228 = vld [vmem:[%s3 + $0x20] sm:$0xf]
        %v1229 = vld [vmem:[%s3 + $0x24] sm:$0xf]
        %v1230 = vld [vmem:[%s3 + $0x28] sm:$0xf]
        %v1231 = vld [vmem:[%s3 + $0x2c] sm:$0xf]
        %v1232 = vld [vmem:[%s3 + $0x30] sm:$0xf]
        %v1233 = vld [vmem:[%s3 + $0x34] sm:$0xf]
        %v1234 = vld [vmem:[%s3 + $0x38] sm:$0xf]
        %v1235 = vld [vmem:[%s3 + $0x3c] sm:$0xf]
        %v1236 = vld [vmem:[%s3 + $0x40] sm:$0xf]
        %v1237 = vld [vmem:[%s3 + $0x44] sm:$0xf]
        %v1238 = vld [vmem:[%s3 + $0x48] sm:$0xf]
        %v1239 = vld [vmem:[%s3 + $0x4c] sm:$0xf]
        %v1240 = vld [vmem:[%s3 + $0x50] sm:$0xf]
        %v1241 = vld [vmem:[%s3 + $0x54] sm:$0xf]
        %v1242 = vld [vmem:[%s3 + $0x58] sm:$0xf]
        %v1243 = vld [vmem:[%s3 + $0x5c] sm:$0xf]
        %v1244 = vld [vmem:[%s3 + $0x60] sm:$0xf]
        %v1245 = vld [vmem:[%s3 + $0x64] sm:$0xf]
        %v1246 = vld [vmem:[%s3 + $0x68] sm:$0xf]
        %v1247 = vld [vmem:[%s3 + $0x6c] sm:$0xf]
        %v1248 = vld [vmem:[%s3 + $0x70] sm:$0xf]
        %v1249 = vld [vmem:[%s3 + $0x74] sm:$0xf]
        %v1250 = vld [vmem:[%s3 + $0x78] sm:$0xf]
        %v1251 = vld [vmem:[%s3 + $0x7c] sm:$0xf]
        %v1252 = vld [vmem:[%s4] sm:$0x1]
        %v1254 = vperm.slane %v1252, 0
        %v1288 = vunpack.c.l.b16 %v1220
        %v1289 = vunpack.c.l.b16 %v1221
        %v1290 = vunpack.c.l.b16 %v1222
        %v1291 = vunpack.c.l.b16 %v1223
        %v1292 = vunpack.c.l.b16 %v1224
        %v1293 = vunpack.c.l.b16 %v1225
        %v1294 = vunpack.c.l.b16 %v1226
        %v1295 = vunpack.c.l.b16 %v1227
        %v1296 = vunpack.c.l.b16 %v1228
        %v1297 = vunpack.c.l.b16 %v1229
        %v1298 = vunpack.c.l.b16 %v1230
        %v1299 = vunpack.c.l.b16 %v1231
        %v1300 = vunpack.c.l.b16 %v1232
        %v1301 = vunpack.c.l.b16 %v1233
        %v1302 = vunpack.c.l.b16 %v1234
        %v1303 = vunpack.c.l.b16 %v1235
        %v1304 = vunpack.c.l.b16 %v1236
        %v1305 = vunpack.c.l.b16 %v1237
        %v1306 = vunpack.c.l.b16 %v1238
        %v1307 = vunpack.c.l.b16 %v1239
        %v1308 = vunpack.c.l.b16 %v1240
        %v1309 = vunpack.c.l.b16 %v1241
        %v1310 = vunpack.c.l.b16 %v1242
        %v1311 = vunpack.c.l.b16 %v1243
        %v1312 = vunpack.c.l.b16 %v1244
        %v1313 = vunpack.c.l.b16 %v1245
        %v1314 = vunpack.c.l.b16 %v1246
        %v1315 = vunpack.c.l.b16 %v1247
        %v1316 = vunpack.c.l.b16 %v1248
        %v1317 = vunpack.c.l.b16 %v1249
        %v1318 = vunpack.c.l.b16 %v1250
        %v1319 = vunpack.c.l.b16 %v1251
        %v1320 = vpack.c.b16 %v1289, %v1288
        %v1321 = vpack.c.b16 %v1291, %v1290
        %v1322 = vpack.c.b16 %v1293, %v1292
        %v1323 = vpack.c.b16 %v1295, %v1294
        %v1324 = vpack.c.b16 %v1297, %v1296
        %v1325 = vpack.c.b16 %v1299, %v1298
        %v1326 = vpack.c.b16 %v1301, %v1300
        %v1327 = vpack.c.b16 %v1303, %v1302
        %v1328 = vpack.c.b16 %v1305, %v1304
        %v1329 = vpack.c.b16 %v1307, %v1306
        %v1330 = vpack.c.b16 %v1309, %v1308
        %v1331 = vpack.c.b16 %v1311, %v1310
        %v1332 = vpack.c.b16 %v1313, %v1312
        %v1333 = vpack.c.b16 %v1315, %v1314
        %v1334 = vpack.c.b16 %v1317, %v1316
        %v1335 = vpack.c.b16 %v1319, %v1318
        %1352 = vmatpush.bf16.msra.mxu0 %v1327
        %1353 = vmatpush.bf16.msra.mxu0 %v1326
        %1354 = vmatpush.bf16.msra.mxu0 %v1325
        %1355 = vmatpush.bf16.msra.mxu0 %v1324
        %1356 = vmatpush.bf16.msra.mxu0 %v1323
        %1357 = vmatpush.bf16.msra.mxu0 %v1322
        %1358 = vmatpush.bf16.msra.mxu0 %v1321
        %1359 = vmatpush.bf16.msra.mxu0 %v1320
        %1360 = vmatmul.bf16.gmra.mxu0 %v1212
        %v1361 = vpop.f32.mrf.mxu0
        %v1362 = vadd.f32 %v1254, %v1361
        %v1363 = vpop.f32.mrf.mxu0
        %v1364 = vadd.f32 %v1254, %v1363
        %1365 = vmatmul.bf16.gmra.mxu0 %v1214
        %v1366 = vpop.f32.mrf.mxu0
        %v1367 = vadd.f32 %v1254, %v1366
        %v1368 = vpop.f32.mrf.mxu0
        %v1369 = vadd.f32 %v1254, %v1368
        %1370 = vmatmul.bf16.gmra.mxu0 %v1216
        %v1371 = vpop.f32.mrf.mxu0
        %v1372 = vadd.f32 %v1254, %v1371
        %v1373 = vpop.f32.mrf.mxu0
        %v1374 = vadd.f32 %v1254, %v1373
        %1375 = vmatmul.bf16.gmra.mxu0 %v1218
        %v1376 = vpop.f32.mrf.mxu0
        %v1377 = vadd.f32 %v1254, %v1376
        %v1378 = vpop.f32.mrf.mxu0
        %v1379 = vadd.f32 %v1254, %v1378
        %1380 = vdwg.mxu0
        %1381 = vmatpush.bf16.msra.mxu0 %v1335
        %1382 = vmatpush.bf16.msra.mxu0 %v1334
        %1383 = vmatpush.bf16.msra.mxu0 %v1333
        %1384 = vmatpush.bf16.msra.mxu0 %v1332
        %1385 = vmatpush.bf16.msra.mxu0 %v1331
        %1386 = vmatpush.bf16.msra.mxu0 %v1330
        %1387 = vmatpush.bf16.msra.mxu0 %v1329
        %1388 = vmatpush.bf16.msra.mxu0 %v1328
        %1389 = vmatmul.bf16.gmra.mxu0 %v1213
        %v1390 = vpop.f32.mrf.mxu0
        %v1391 = vadd.f32 %v1362, %v1390
        %v1392 = vpop.f32.mrf.mxu0
        %v1393 = vadd.f32 %v1364, %v1392
        %1394 = vmatmul.bf16.gmra.mxu0 %v1215
        %v1395 = vpop.f32.mrf.mxu0
        %v1396 = vadd.f32 %v1367, %v1395
        %v1397 = vpop.f32.mrf.mxu0
        %v1398 = vadd.f32 %v1369, %v1397
        %1399 = vmatmul.bf16.gmra.mxu0 %v1217
        %v1400 = vpop.f32.mrf.mxu0
        %v1401 = vadd.f32 %v1372, %v1400
        %v1402 = vpop.f32.mrf.mxu0
        %v1403 = vadd.f32 %v1374, %v1402
        %1404 = vmatmul.bf16.gmra.mxu0 %v1219
        %v1405 = vpop.f32.mrf.mxu0
        %v1406 = vadd.f32 %v1377, %v1405
        %v1407 = vpop.f32.mrf.mxu0
        %v1408 = vadd.f32 %v1379, %v1407
        %1409 = vdwg.mxu0
        %v1410 = vld [vmem:[%s473] sm:$0xff]
        %v1411 = vld [vmem:[%s473 + $0x8] sm:$0xff]
        %v1412 = vld [vmem:[%s473 + $0x10] sm:$0xff]
        %v1413 = vld [vmem:[%s473 + $0x18] sm:$0xff]
        %v1414 = vld [vmem:[%s473 + $0x20] sm:$0xff]
        %v1415 = vld [vmem:[%s473 + $0x28] sm:$0xff]
        %v1416 = vld [vmem:[%s473 + $0x30] sm:$0xff]
        %v1417 = vld [vmem:[%s473 + $0x38] sm:$0xff]
        %v1418 = vmul.f32 %v1391, 0.5
        %v1419 = vmul.f32 %v1393, 0.5
        %v1420 = vmul.f32 %v1396, 0.5
        %v1421 = vmul.f32 %v1398, 0.5
        %v1422 = vmul.f32 %v1401, 0.5
        %v1423 = vmul.f32 %v1403, 0.5
        %v1424 = vmul.f32 %v1406, 0.5
        %v1425 = vmul.f32 %v1408, 0.5
        %v1426 = vmul.f32 %v1418, 1.442695
        %v1427 = vpow.pop %v1426
        %v1428 = vmul.f32 %v1419, 1.442695
        %v1429 = vpow.pop %v1428
        %v1430 = vmul.f32 %v1420, 1.442695
        %v1431 = vpow.pop %v1430
        %v1432 = vmul.f32 %v1421, 1.442695
        %v1433 = vpow.pop %v1432
        %v1434 = vmul.f32 %v1422, 1.442695
        %v1435 = vpow.pop %v1434
        %v1436 = vmul.f32 %v1423, 1.442695
        %v1437 = vpow.pop %v1436
        %v1438 = vmul.f32 %v1424, 1.442695
        %v1439 = vpow.pop %v1438
        %v1440 = vmul.f32 %v1425, 1.442695
        %v1441 = vpow.pop %v1440
        %1450 = vrot.lane.b32.xlu0 %v1427, 96
        %v1451 = vpop.permute.xlu0 %1450
        %1452 = vrot.lane.b32.xlu0 %v1429, 96
        %v1453 = vpop.permute.xlu0 %1452
        %1454 = vrot.lane.b32.xlu0 %v1431, 96
        %v1455 = vpop.permute.xlu0 %1454
        %1456 = vrot.lane.b32.xlu0 %v1433, 96
        %v1457 = vpop.permute.xlu0 %1456
        %1458 = vrot.lane.b32.xlu0 %v1435, 96
        %v1459 = vpop.permute.xlu0 %1458
        %1460 = vrot.lane.b32.xlu0 %v1437, 96
        %v1461 = vpop.permute.xlu0 %1460
        %1462 = vrot.lane.b32.xlu0 %v1439, 96
        %v1463 = vpop.permute.xlu0 %1462
        %1464 = vrot.lane.b32.xlu0 %v1441, 96
        %v1465 = vpop.permute.xlu0 %1464
        %v1474 = vmul.f32 %v1410, %v1451
        %v1475 = vmul.f32 %v1411, %v1453
        %v1476 = vmul.f32 %v1412, %v1455
        %v1477 = vmul.f32 %v1413, %v1457
        %v1478 = vmul.f32 %v1414, %v1459
        %v1479 = vmul.f32 %v1415, %v1461
        %v1480 = vmul.f32 %v1416, %v1463
        %v1481 = vmul.f32 %v1417, %v1465
        %v1482 = vadd.f32 %v1391, %v1474
        %v1483 = vadd.f32 %v1393, %v1475
        %v1484 = vadd.f32 %v1396, %v1476
        %v1485 = vadd.f32 %v1398, %v1477
        %v1486 = vadd.f32 %v1401, %v1478
        %v1487 = vadd.f32 %v1403, %v1479
        %v1488 = vadd.f32 %v1406, %v1480
        %v1489 = vadd.f32 %v1408, %v1481
        %v1490 = vpack.c.bf16 %v1483, %v1482
        %v1491 = vpack.c.bf16 %v1485, %v1484
        %v1492 = vpack.c.bf16 %v1487, %v1486
        %v1493 = vpack.c.bf16 %v1489, %v1488
        %v1494 = vld [vmem:[%s6] sm:$0xff]
        %v1495 = vld [vmem:[%s6 + $0x8] sm:$0xff]
        %v1496 = vld [vmem:[%s6 + $0x10] sm:$0xff]
        %v1497 = vld [vmem:[%s6 + $0x18] sm:$0xff]
        %v1498 = vld [vmem:[%s7] sm:$0x3]
        %v1500 = vperm.slane %v1498, 0
        %v1501 = vperm.slane %v1498, 1
        %v1508 = vunpack.c.l.b16 %v1494
        %v1509 = vunpack.c.h.b16 %v1494
        %v1510 = vunpack.c.l.b16 %v1495
        %v1511 = vunpack.c.h.b16 %v1495
        %v1512 = vunpack.c.l.b16 %v1496
        %v1513 = vunpack.c.h.b16 %v1496
        %v1514 = vunpack.c.l.b16 %v1497
        %v1515 = vunpack.c.h.b16 %v1497
        %v1516 = vpack.c.b16 %v1510, %v1508
        %v1517 = vpack.c.b16 %v1511, %v1509
        %v1518 = vpack.c.b16 %v1514, %v1512
        %v1519 = vpack.c.b16 %v1515, %v1513
        %vm1524 = vcmask 261120
        %v1526 = vsel %vm1524, %v1490, 0
        %v1529 = vsel %vm1524, %v1491, 0
        %v1532 = vsel %vm1524, %v1492, 0
        %v1535 = vsel %vm1524, %v1493, 0
        %1537 = vmatpush.bf16.msra.mxu0 0
        %1538 = vmatpush.bf16.msra.mxu0 0
        %1539 = vmatpush.bf16.msra.mxu0 0
        %1540 = vmatpush.bf16.msra.mxu0 0
        %1541 = vmatpush.bf16.msra.mxu0 0
        %1542 = vmatpush.bf16.msra.mxu0 0
        %1543 = vmatpush.bf16.msra.mxu0 %v1518
        %1544 = vmatpush.bf16.msra.mxu0 %v1516
        %1545 = vmatmul.bf16.gmra.mxu0 %v1526
        %v1546 = vpop.f32.mrf.mxu0
        %v1547 = vadd.f32 %v1500, %v1546
        %v1548 = vpop.f32.mrf.mxu0
        %v1549 = vadd.f32 %v1500, %v1548
        %1550 = vmatmul.bf16.gmra.mxu0 %v1529
        %v1551 = vpop.f32.mrf.mxu0
        %v1552 = vadd.f32 %v1500, %v1551
        %v1553 = vpop.f32.mrf.mxu0
        %v1554 = vadd.f32 %v1500, %v1553
        %1555 = vmatmul.bf16.gmra.mxu0 %v1532
        %v1556 = vpop.f32.mrf.mxu0
        %v1557 = vadd.f32 %v1500, %v1556
        %v1558 = vpop.f32.mrf.mxu0
        %v1559 = vadd.f32 %v1500, %v1558
        %1560 = vmatmul.bf16.gmra.mxu0 %v1535
        %v1561 = vpop.f32.mrf.mxu0
        %v1562 = vadd.f32 %v1500, %v1561
        %v1563 = vpop.f32.mrf.mxu0
        %v1564 = vadd.f32 %v1500, %v1563
        %1565 = vdwg.mxu0
        %1566 = vmatpush.bf16.msra.mxu0 0
        %1567 = vmatpush.bf16.msra.mxu0 0
        %1568 = vmatpush.bf16.msra.mxu0 0
        %1569 = vmatpush.bf16.msra.mxu0 0
        %1570 = vmatpush.bf16.msra.mxu0 0
        %1571 = vmatpush.bf16.msra.mxu0 0
        %1572 = vmatpush.bf16.msra.mxu0 %v1519
        %1573 = vmatpush.bf16.msra.mxu0 %v1517
        %1574 = vmatmul.bf16.gmra.mxu0 %v1526
        %v1575 = vpop.f32.mrf.mxu0
        %v1576 = vadd.f32 %v1501, %v1575
        %v1577 = vpop.f32.mrf.mxu0
        %v1578 = vadd.f32 %v1501, %v1577
        %1579 = vmatmul.bf16.gmra.mxu0 %v1529
        %v1580 = vpop.f32.mrf.mxu0
        %v1581 = vadd.f32 %v1501, %v1580
        %v1582 = vpop.f32.mrf.mxu0
        %v1583 = vadd.f32 %v1501, %v1582
        %1584 = vmatmul.bf16.gmra.mxu0 %v1532
        %v1585 = vpop.f32.mrf.mxu0
        %v1586 = vadd.f32 %v1501, %v1585
        %v1587 = vpop.f32.mrf.mxu0
        %v1588 = vadd.f32 %v1501, %v1587
        %1589 = vmatmul.bf16.gmra.mxu0 %v1535
        %v1590 = vpop.f32.mrf.mxu0
        %v1591 = vadd.f32 %v1501, %v1590
        %v1592 = vpop.f32.mrf.mxu0
        %v1593 = vadd.f32 %v1501, %v1592
        %1594 = vdwg.mxu0
        %v1595 = vmax.f32 %v1547, 0.0
        %v1596 = vmax.f32 %v1576, 0.0
        %v1597 = vmax.f32 %v1549, 0.0
        %v1598 = vmax.f32 %v1578, 0.0
        %v1599 = vmax.f32 %v1552, 0.0
        %v1600 = vmax.f32 %v1581, 0.0
        %v1601 = vmax.f32 %v1554, 0.0
        %v1602 = vmax.f32 %v1583, 0.0
        %v1603 = vmax.f32 %v1557, 0.0
        %v1604 = vmax.f32 %v1586, 0.0
        %v1605 = vmax.f32 %v1559, 0.0
        %v1606 = vmax.f32 %v1588, 0.0
        %v1607 = vmax.f32 %v1562, 0.0
        %v1608 = vmax.f32 %v1591, 0.0
        %v1609 = vmax.f32 %v1564, 0.0
        %v1610 = vmax.f32 %v1593, 0.0
        %v1611 = vpack.c.bf16 %v1597, %v1595
        %v1612 = vpack.c.bf16 %v1598, %v1596
        %v1613 = vpack.c.bf16 %v1601, %v1599
        %v1614 = vpack.c.bf16 %v1602, %v1600
        %v1615 = vpack.c.bf16 %v1605, %v1603
        %v1616 = vpack.c.bf16 %v1606, %v1604
        %v1617 = vpack.c.bf16 %v1609, %v1607
        %v1618 = vpack.c.bf16 %v1610, %v1608
        %v1619 = vld [vmem:[#allocation7] sm:$0xff]
        %v1620 = vld [vmem:[#allocation7 + $0x8] sm:$0xff]
        %v1621 = vld [vmem:[#allocation7 + $0x10] sm:$0xff]
        %v1622 = vld [vmem:[#allocation7 + $0x18] sm:$0xff]
        %v1623 = vld [vmem:[#allocation7 + $0x20] sm:$0xff]
        %v1624 = vld [vmem:[#allocation7 + $0x28] sm:$0xff]
        %v1625 = vld [vmem:[#allocation7 + $0x30] sm:$0xff]
        %v1626 = vld [vmem:[#allocation7 + $0x38] sm:$0xff]
        %v1627 = vld [vmem:[#allocation7 + $0x40] sm:$0xff]
        %v1628 = vld [vmem:[#allocation7 + $0x48] sm:$0xff]
        %v1629 = vld [vmem:[#allocation7 + $0x50] sm:$0xff]
        %v1630 = vld [vmem:[#allocation7 + $0x58] sm:$0xff]
        %v1631 = vld [vmem:[#allocation7 + $0x60] sm:$0xff]
        %v1632 = vld [vmem:[#allocation7 + $0x68] sm:$0xff]
        %v1633 = vld [vmem:[#allocation7 + $0x70] sm:$0xff]
        %v1634 = vld [vmem:[#allocation7 + $0x78] sm:$0xff]
        %v1635 = vld [vmem:[#allocation7 + $0x80] sm:$0xff]
        %v1636 = vld [vmem:[#allocation7 + $0x88] sm:$0xff]
        %v1637 = vld [vmem:[#allocation7 + $0x90] sm:$0xff]
        %v1638 = vld [vmem:[#allocation7 + $0x98] sm:$0xff]
        %v1639 = vld [vmem:[#allocation7 + $0xa0] sm:$0xff]
        %v1640 = vld [vmem:[#allocation7 + $0xa8] sm:$0xff]
        %v1641 = vld [vmem:[#allocation7 + $0xb0] sm:$0xff]
        %v1642 = vld [vmem:[#allocation7 + $0xb8] sm:$0xff]
        %v1643 = vld [vmem:[#allocation7 + $0xc0] sm:$0xff]
        %v1644 = vld [vmem:[#allocation7 + $0xc8] sm:$0xff]
        %v1645 = vld [vmem:[#allocation7 + $0xd0] sm:$0xff]
        %v1646 = vld [vmem:[#allocation7 + $0xd8] sm:$0xff]
        %v1647 = vld [vmem:[#allocation7 + $0xe0] sm:$0xff]
        %v1648 = vld [vmem:[#allocation7 + $0xe8] sm:$0xff]
        %v1649 = vld [vmem:[#allocation7 + $0xf0] sm:$0xff]
        %v1650 = vld [vmem:[#allocation7 + $0xf8] sm:$0xff]
        %v1651 = vld [vmem:[#allocation7 + $0x100] sm:$0xff]
        %v1652 = vld [vmem:[#allocation7 + $0x108] sm:$0xff]
        %v1653 = vld [vmem:[#allocation7 + $0x110] sm:$0xff]
        %v1654 = vld [vmem:[#allocation7 + $0x118] sm:$0xff]
        %v1655 = vld [vmem:[#allocation7 + $0x120] sm:$0xff]
        %v1656 = vld [vmem:[#allocation7 + $0x128] sm:$0xff]
        %v1657 = vld [vmem:[#allocation7 + $0x130] sm:$0xff]
        %v1658 = vld [vmem:[#allocation7 + $0x138] sm:$0xff]
        %v1659 = vld [vmem:[#allocation7 + $0x140] sm:$0xff]
        %v1660 = vld [vmem:[#allocation7 + $0x148] sm:$0xff]
        %v1661 = vld [vmem:[#allocation7 + $0x150] sm:$0xff]
        %v1662 = vld [vmem:[#allocation7 + $0x158] sm:$0xff]
        %v1663 = vld [vmem:[#allocation7 + $0x160] sm:$0xff]
        %v1664 = vld [vmem:[#allocation7 + $0x168] sm:$0xff]
        %v1665 = vld [vmem:[#allocation7 + $0x170] sm:$0xff]
        %v1666 = vld [vmem:[#allocation7 + $0x178] sm:$0xff]
        %v1667 = vld [vmem:[#allocation7 + $0x180] sm:$0xff]
        %v1668 = vld [vmem:[#allocation7 + $0x188] sm:$0xff]
        %v1669 = vld [vmem:[#allocation7 + $0x190] sm:$0xff]
        %v1670 = vld [vmem:[#allocation7 + $0x198] sm:$0xff]
        %v1671 = vld [vmem:[#allocation7 + $0x1a0] sm:$0xff]
        %v1672 = vld [vmem:[#allocation7 + $0x1a8] sm:$0xff]
        %v1673 = vld [vmem:[#allocation7 + $0x1b0] sm:$0xff]
        %v1674 = vld [vmem:[#allocation7 + $0x1b8] sm:$0xff]
        %v1675 = vld [vmem:[#allocation7 + $0x1c0] sm:$0xff]
        %v1676 = vld [vmem:[#allocation7 + $0x1c8] sm:$0xff]
        %v1677 = vld [vmem:[#allocation7 + $0x1d0] sm:$0xff]
        %v1678 = vld [vmem:[#allocation7 + $0x1d8] sm:$0xff]
        %v1679 = vld [vmem:[#allocation7 + $0x1e0] sm:$0xff]
        %v1680 = vld [vmem:[#allocation7 + $0x1e8] sm:$0xff]
        %v1681 = vld [vmem:[#allocation7 + $0x1f0] sm:$0xff]
        %v1682 = vld [vmem:[#allocation7 + $0x1f8] sm:$0xff]
        %v1683 = vld [vmem:[%s9] sm:$0xf]
        %v1685 = vperm.slane %v1683, 0
        %v1686 = vperm.slane %v1683, 1
        %v1687 = vperm.slane %v1683, 2
        %v1688 = vperm.slane %v1683, 3
        %v1757 = vunpack.c.l.b16 %v1619
        %v1758 = vunpack.c.h.b16 %v1619
        %v1759 = vunpack.c.l.b16 %v1620
        %v1760 = vunpack.c.h.b16 %v1620
        %v1761 = vunpack.c.l.b16 %v1621
        %v1762 = vunpack.c.h.b16 %v1621
        %v1763 = vunpack.c.l.b16 %v1622
        %v1764 = vunpack.c.h.b16 %v1622
        %v1765 = vunpack.c.l.b16 %v1623
        %v1766 = vunpack.c.h.b16 %v1623
        %v1767 = vunpack.c.l.b16 %v1624
        %v1768 = vunpack.c.h.b16 %v1624
        %v1769 = vunpack.c.l.b16 %v1625
        %v1770 = vunpack.c.h.b16 %v1625
        %v1771 = vunpack.c.l.b16 %v1626
        %v1772 = vunpack.c.h.b16 %v1626
        %v1773 = vunpack.c.l.b16 %v1627
        %v1774 = vunpack.c.h.b16 %v1627
        %v1775 = vunpack.c.l.b16 %v1628
        %v1776 = vunpack.c.h.b16 %v1628
        %v1777 = vunpack.c.l.b16 %v1629
        %v1778 = vunpack.c.h.b16 %v1629
        %v1779 = vunpack.c.l.b16 %v1630
        %v1780 = vunpack.c.h.b16 %v1630
        %v1781 = vunpack.c.l.b16 %v1631
        %v1782 = vunpack.c.h.b16 %v1631
        %v1783 = vunpack.c.l.b16 %v1632
        %v1784 = vunpack.c.h.b16 %v1632
        %v1785 = vunpack.c.l.b16 %v1633
        %v1786 = vunpack.c.h.b16 %v1633
        %v1787 = vunpack.c.l.b16 %v1634
        %v1788 = vunpack.c.h.b16 %v1634
        %v1789 = vunpack.c.l.b16 %v1635
        %v1790 = vunpack.c.h.b16 %v1635
        %v1791 = vunpack.c.l.b16 %v1636
        %v1792 = vunpack.c.h.b16 %v1636
        %v1793 = vunpack.c.l.b16 %v1637
        %v1794 = vunpack.c.h.b16 %v1637
        %v1795 = vunpack.c.l.b16 %v1638
        %v1796 = vunpack.c.h.b16 %v1638
        %v1797 = vunpack.c.l.b16 %v1639
        %v1798 = vunpack.c.h.b16 %v1639
        %v1799 = vunpack.c.l.b16 %v1640
        %v1800 = vunpack.c.h.b16 %v1640
        %v1801 = vunpack.c.l.b16 %v1641
        %v1802 = vunpack.c.h.b16 %v1641
        %v1803 = vunpack.c.l.b16 %v1642
        %v1804 = vunpack.c.h.b16 %v1642
        %v1805 = vunpack.c.l.b16 %v1643
        %v1806 = vunpack.c.h.b16 %v1643
        %v1807 = vunpack.c.l.b16 %v1644
        %v1808 = vunpack.c.h.b16 %v1644
        %v1809 = vunpack.c.l.b16 %v1645
        %v1810 = vunpack.c.h.b16 %v1645
        %v1811 = vunpack.c.l.b16 %v1646
        %v1812 = vunpack.c.h.b16 %v1646
        %v1813 = vunpack.c.l.b16 %v1647
        %v1814 = vunpack.c.h.b16 %v1647
        %v1815 = vunpack.c.l.b16 %v1648
        %v1816 = vunpack.c.h.b16 %v1648
        %v1817 = vunpack.c.l.b16 %v1649
        %v1818 = vunpack.c.h.b16 %v1649
        %v1819 = vunpack.c.l.b16 %v1650
        %v1820 = vunpack.c.h.b16 %v1650
        %v1821 = vunpack.c.l.b16 %v1651
        %v1822 = vunpack.c.h.b16 %v1651
        %v1823 = vunpack.c.l.b16 %v1652
        %v1824 = vunpack.c.h.b16 %v1652
        %v1825 = vunpack.c.l.b16 %v1653
        %v1826 = vunpack.c.h.b16 %v1653
        %v1827 = vunpack.c.l.b16 %v1654
        %v1828 = vunpack.c.h.b16 %v1654
        %v1829 = vunpack.c.l.b16 %v1655
        %v1830 = vunpack.c.h.b16 %v1655
        %v1831 = vunpack.c.l.b16 %v1656
        %v1832 = vunpack.c.h.b16 %v1656
        %v1833 = vunpack.c.l.b16 %v1657
        %v1834 = vunpack.c.h.b16 %v1657
        %v1835 = vunpack.c.l.b16 %v1658
        %v1836 = vunpack.c.h.b16 %v1658
        %v1837 = vunpack.c.l.b16 %v1659
        %v1838 = vunpack.c.h.b16 %v1659
        %v1839 = vunpack.c.l.b16 %v1660
        %v1840 = vunpack.c.h.b16 %v1660
        %v1841 = vunpack.c.l.b16 %v1661
        %v1842 = vunpack.c.h.b16 %v1661
        %v1843 = vunpack.c.l.b16 %v1662
        %v1844 = vunpack.c.h.b16 %v1662
        %v1845 = vunpack.c.l.b16 %v1663
        %v1846 = vunpack.c.h.b16 %v1663
        %v1847 = vunpack.c.l.b16 %v1664
        %v1848 = vunpack.c.h.b16 %v1664
        %v1849 = vunpack.c.l.b16 %v1665
        %v1850 = vunpack.c.h.b16 %v1665
        %v1851 = vunpack.c.l.b16 %v1666
        %v1852 = vunpack.c.h.b16 %v1666
        %v1853 = vunpack.c.l.b16 %v1667
        %v1854 = vunpack.c.h.b16 %v1667
        %v1855 = vunpack.c.l.b16 %v1668
        %v1856 = vunpack.c.h.b16 %v1668
        %v1857 = vunpack.c.l.b16 %v1669
        %v1858 = vunpack.c.h.b16 %v1669
        %v1859 = vunpack.c.l.b16 %v1670
        %v1860 = vunpack.c.h.b16 %v1670
        %v1861 = vunpack.c.l.b16 %v1671
        %v1862 = vunpack.c.h.b16 %v1671
        %v1863 = vunpack.c.l.b16 %v1672
        %v1864 = vunpack.c.h.b16 %v1672
        %v1865 = vunpack.c.l.b16 %v1673
        %v1866 = vunpack.c.h.b16 %v1673
        %v1867 = vunpack.c.l.b16 %v1674
        %v1868 = vunpack.c.h.b16 %v1674
        %v1869 = vunpack.c.l.b16 %v1675
        %v1870 = vunpack.c.h.b16 %v1675
        %v1871 = vunpack.c.l.b16 %v1676
        %v1872 = vunpack.c.h.b16 %v1676
        %v1873 = vunpack.c.l.b16 %v1677
        %v1874 = vunpack.c.h.b16 %v1677
        %v1875 = vunpack.c.l.b16 %v1678
        %v1876 = vunpack.c.h.b16 %v1678
        %v1877 = vunpack.c.l.b16 %v1679
        %v1878 = vunpack.c.h.b16 %v1679
        %v1879 = vunpack.c.l.b16 %v1680
        %v1880 = vunpack.c.h.b16 %v1680
        %v1881 = vunpack.c.l.b16 %v1681
        %v1882 = vunpack.c.h.b16 %v1681
        %v1883 = vunpack.c.l.b16 %v1682
        %v1884 = vunpack.c.h.b16 %v1682
        %v1885 = vpack.c.b16 %v1761, %v1757
        %v1886 = vpack.c.b16 %v1762, %v1758
        %v1887 = vpack.c.b16 %v1763, %v1759
        %v1888 = vpack.c.b16 %v1764, %v1760
        %v1889 = vpack.c.b16 %v1769, %v1765
        %v1890 = vpack.c.b16 %v1770, %v1766
        %v1891 = vpack.c.b16 %v1771, %v1767
        %v1892 = vpack.c.b16 %v1772, %v1768
        %v1893 = vpack.c.b16 %v1777, %v1773
        %v1894 = vpack.c.b16 %v1778, %v1774
        %v1895 = vpack.c.b16 %v1779, %v1775
        %v1896 = vpack.c.b16 %v1780, %v1776
        %v1897 = vpack.c.b16 %v1785, %v1781
        %v1898 = vpack.c.b16 %v1786, %v1782
        %v1899 = vpack.c.b16 %v1787, %v1783
        %v1900 = vpack.c.b16 %v1788, %v1784
        %v1901 = vpack.c.b16 %v1793, %v1789
        %v1902 = vpack.c.b16 %v1794, %v1790
        %v1903 = vpack.c.b16 %v1795, %v1791
        %v1904 = vpack.c.b16 %v1796, %v1792
        %v1905 = vpack.c.b16 %v1801, %v1797
        %v1906 = vpack.c.b16 %v1802, %v1798
        %v1907 = vpack.c.b16 %v1803, %v1799
        %v1908 = vpack.c.b16 %v1804, %v1800
        %v1909 = vpack.c.b16 %v1809, %v1805
        %v1910 = vpack.c.b16 %v1810, %v1806
        %v1911 = vpack.c.b16 %v1811, %v1807
        %v1912 = vpack.c.b16 %v1812, %v1808
        %v1913 = vpack.c.b16 %v1817, %v1813
        %v1914 = vpack.c.b16 %v1818, %v1814
        %v1915 = vpack.c.b16 %v1819, %v1815
        %v1916 = vpack.c.b16 %v1820, %v1816
        %v1917 = vpack.c.b16 %v1825, %v1821
        %v1918 = vpack.c.b16 %v1826, %v1822
        %v1919 = vpack.c.b16 %v1827, %v1823
        %v1920 = vpack.c.b16 %v1828, %v1824
        %v1921 = vpack.c.b16 %v1833, %v1829
        %v1922 = vpack.c.b16 %v1834, %v1830
        %v1923 = vpack.c.b16 %v1835, %v1831
        %v1924 = vpack.c.b16 %v1836, %v1832
        %v1925 = vpack.c.b16 %v1841, %v1837
        %v1926 = vpack.c.b16 %v1842, %v1838
        %v1927 = vpack.c.b16 %v1843, %v1839
        %v1928 = vpack.c.b16 %v1844, %v1840
        %v1929 = vpack.c.b16 %v1849, %v1845
        %v1930 = vpack.c.b16 %v1850, %v1846
        %v1931 = vpack.c.b16 %v1851, %v1847
        %v1932 = vpack.c.b16 %v1852, %v1848
        %v1933 = vpack.c.b16 %v1857, %v1853
        %v1934 = vpack.c.b16 %v1858, %v1854
        %v1935 = vpack.c.b16 %v1859, %v1855
        %v1936 = vpack.c.b16 %v1860, %v1856
        %v1937 = vpack.c.b16 %v1865, %v1861
        %v1938 = vpack.c.b16 %v1866, %v1862
        %v1939 = vpack.c.b16 %v1867, %v1863
        %v1940 = vpack.c.b16 %v1868, %v1864
        %v1941 = vpack.c.b16 %v1873, %v1869
        %v1942 = vpack.c.b16 %v1874, %v1870
        %v1943 = vpack.c.b16 %v1875, %v1871
        %v1944 = vpack.c.b16 %v1876, %v1872
        %v1945 = vpack.c.b16 %v1881, %v1877
        %v1946 = vpack.c.b16 %v1882, %v1878
        %v1947 = vpack.c.b16 %v1883, %v1879
        %v1948 = vpack.c.b16 %v1884, %v1880
        %2013 = vmatpush.bf16.msra.mxu0 %v1913
        %2014 = vmatpush.bf16.msra.mxu0 %v1909
        %2015 = vmatpush.bf16.msra.mxu0 %v1905
        %2016 = vmatpush.bf16.msra.mxu0 %v1901
        %2017 = vmatpush.bf16.msra.mxu0 %v1897
        %2018 = vmatpush.bf16.msra.mxu0 %v1893
        %2019 = vmatpush.bf16.msra.mxu0 %v1889
        %2020 = vmatpush.bf16.msra.mxu0 %v1885
        %2021 = vmatmul.bf16.gmra.mxu0 %v1611
        %v2022 = vpop.f32.mrf.mxu0
        %v2023 = vadd.f32 %v1685, %v2022
        %v2024 = vpop.f32.mrf.mxu0
        %v2025 = vadd.f32 %v1685, %v2024
        %2026 = vmatmul.bf16.gmra.mxu0 %v1613
        %v2027 = vpop.f32.mrf.mxu0
        %v2028 = vadd.f32 %v1685, %v2027
        %v2029 = vpop.f32.mrf.mxu0
        %v2030 = vadd.f32 %v1685, %v2029
        %2031 = vmatmul.bf16.gmra.mxu0 %v1615
        %v2032 = vpop.f32.mrf.mxu0
        %v2033 = vadd.f32 %v1685, %v2032
        %v2034 = vpop.f32.mrf.mxu0
        %v2035 = vadd.f32 %v1685, %v2034
        %2036 = vmatmul.bf16.gmra.mxu0 %v1617
        %v2037 = vpop.f32.mrf.mxu0
        %v2038 = vadd.f32 %v1685, %v2037
        %v2039 = vpop.f32.mrf.mxu0
        %v2040 = vadd.f32 %v1685, %v2039
        %2041 = vdwg.mxu0
        %2042 = vmatpush.bf16.msra.mxu0 %v1945
        %2043 = vmatpush.bf16.msra.mxu0 %v1941
        %2044 = vmatpush.bf16.msra.mxu0 %v1937
        %2045 = vmatpush.bf16.msra.mxu0 %v1933
        %2046 = vmatpush.bf16.msra.mxu0 %v1929
        %2047 = vmatpush.bf16.msra.mxu0 %v1925
        %2048 = vmatpush.bf16.msra.mxu0 %v1921
        %2049 = vmatpush.bf16.msra.mxu0 %v1917
        %2050 = vmatmul.bf16.gmra.mxu0 %v1612
        %v2051 = vpop.f32.mrf.mxu0
        %v2052 = vadd.f32 %v2023, %v2051
        %v2053 = vpop.f32.mrf.mxu0
        %v2054 = vadd.f32 %v2025, %v2053
        %2055 = vmatmul.bf16.gmra.mxu0 %v1614
        %v2056 = vpop.f32.mrf.mxu0
        %v2057 = vadd.f32 %v2028, %v2056
        %v2058 = vpop.f32.mrf.mxu0
        %v2059 = vadd.f32 %v2030, %v2058
        %2060 = vmatmul.bf16.gmra.mxu0 %v1616
        %v2061 = vpop.f32.mrf.mxu0
        %v2062 = vadd.f32 %v2033, %v2061
        %v2063 = vpop.f32.mrf.mxu0
        %v2064 = vadd.f32 %v2035, %v2063
        %2065 = vmatmul.bf16.gmra.mxu0 %v1618
        %v2066 = vpop.f32.mrf.mxu0
        %v2067 = vadd.f32 %v2038, %v2066
        %v2068 = vpop.f32.mrf.mxu0
        %v2069 = vadd.f32 %v2040, %v2068
        %2070 = vdwg.mxu0
        %2071 = vmatpush.bf16.msra.mxu0 %v1914
        %2072 = vmatpush.bf16.msra.mxu0 %v1910
        %2073 = vmatpush.bf16.msra.mxu0 %v1906
        %2074 = vmatpush.bf16.msra.mxu0 %v1902
        %2075 = vmatpush.bf16.msra.mxu0 %v1898
        %2076 = vmatpush.bf16.msra.mxu0 %v1894
        %2077 = vmatpush.bf16.msra.mxu0 %v1890
        %2078 = vmatpush.bf16.msra.mxu0 %v1886
        %2079 = vmatmul.bf16.gmra.mxu0 %v1611
        %v2080 = vpop.f32.mrf.mxu0
        %v2081 = vadd.f32 %v1686, %v2080
        %v2082 = vpop.f32.mrf.mxu0
        %v2083 = vadd.f32 %v1686, %v2082
        %2084 = vmatmul.bf16.gmra.mxu0 %v1613
        %v2085 = vpop.f32.mrf.mxu0
        %v2086 = vadd.f32 %v1686, %v2085
        %v2087 = vpop.f32.mrf.mxu0
        %v2088 = vadd.f32 %v1686, %v2087
        %2089 = vmatmul.bf16.gmra.mxu0 %v1615
        %v2090 = vpop.f32.mrf.mxu0
        %v2091 = vadd.f32 %v1686, %v2090
        %v2092 = vpop.f32.mrf.mxu0
        %v2093 = vadd.f32 %v1686, %v2092
        %2094 = vmatmul.bf16.gmra.mxu0 %v1617
        %v2095 = vpop.f32.mrf.mxu0
        %v2096 = vadd.f32 %v1686, %v2095
        %v2097 = vpop.f32.mrf.mxu0
        %v2098 = vadd.f32 %v1686, %v2097
        %2099 = vdwg.mxu0
        %2100 = vmatpush.bf16.msra.mxu0 %v1946
        %2101 = vmatpush.bf16.msra.mxu0 %v1942
        %2102 = vmatpush.bf16.msra.mxu0 %v1938
        %2103 = vmatpush.bf16.msra.mxu0 %v1934
        %2104 = vmatpush.bf16.msra.mxu0 %v1930
        %2105 = vmatpush.bf16.msra.mxu0 %v1926
        %2106 = vmatpush.bf16.msra.mxu0 %v1922
        %2107 = vmatpush.bf16.msra.mxu0 %v1918
        %2108 = vmatmul.bf16.gmra.mxu0 %v1612
        %v2109 = vpop.f32.mrf.mxu0
        %v2110 = vadd.f32 %v2081, %v2109
        %v2111 = vpop.f32.mrf.mxu0
        %v2112 = vadd.f32 %v2083, %v2111
        %2113 = vmatmul.bf16.gmra.mxu0 %v1614
        %v2114 = vpop.f32.mrf.mxu0
        %v2115 = vadd.f32 %v2086, %v2114
        %v2116 = vpop.f32.mrf.mxu0
        %v2117 = vadd.f32 %v2088, %v2116
        %2118 = vmatmul.bf16.gmra.mxu0 %v1616
        %v2119 = vpop.f32.mrf.mxu0
        %v2120 = vadd.f32 %v2091, %v2119
        %v2121 = vpop.f32.mrf.mxu0
        %v2122 = vadd.f32 %v2093, %v2121
        %2123 = vmatmul.bf16.gmra.mxu0 %v1618
        %v2124 = vpop.f32.mrf.mxu0
        %v2125 = vadd.f32 %v2096, %v2124
        %v2126 = vpop.f32.mrf.mxu0
        %v2127 = vadd.f32 %v2098, %v2126
        %2128 = vdwg.mxu0
        %2129 = vmatpush.bf16.msra.mxu0 %v1915
        %2130 = vmatpush.bf16.msra.mxu0 %v1911
        %2131 = vmatpush.bf16.msra.mxu0 %v1907
        %2132 = vmatpush.bf16.msra.mxu0 %v1903
        %2133 = vmatpush.bf16.msra.mxu0 %v1899
        %2134 = vmatpush.bf16.msra.mxu0 %v1895
        %2135 = vmatpush.bf16.msra.mxu0 %v1891
        %2136 = vmatpush.bf16.msra.mxu0 %v1887
        %2137 = vmatmul.bf16.gmra.mxu0 %v1611
        %v2138 = vpop.f32.mrf.mxu0
        %v2139 = vadd.f32 %v1687, %v2138
        %v2140 = vpop.f32.mrf.mxu0
        %v2141 = vadd.f32 %v1687, %v2140
        %2142 = vmatmul.bf16.gmra.mxu0 %v1613
        %v2143 = vpop.f32.mrf.mxu0
        %v2144 = vadd.f32 %v1687, %v2143
        %v2145 = vpop.f32.mrf.mxu0
        %v2146 = vadd.f32 %v1687, %v2145
        %2147 = vmatmul.bf16.gmra.mxu0 %v1615
        %v2148 = vpop.f32.mrf.mxu0
        %v2149 = vadd.f32 %v1687, %v2148
        %v2150 = vpop.f32.mrf.mxu0
        %v2151 = vadd.f32 %v1687, %v2150
        %2152 = vmatmul.bf16.gmra.mxu0 %v1617
        %v2153 = vpop.f32.mrf.mxu0
        %v2154 = vadd.f32 %v1687, %v2153
        %v2155 = vpop.f32.mrf.mxu0
        %v2156 = vadd.f32 %v1687, %v2155
        %2157 = vdwg.mxu0
        %2158 = vmatpush.bf16.msra.mxu0 %v1947
        %2159 = vmatpush.bf16.msra.mxu0 %v1943
        %2160 = vmatpush.bf16.msra.mxu0 %v1939
        %2161 = vmatpush.bf16.msra.mxu0 %v1935
        %2162 = vmatpush.bf16.msra.mxu0 %v1931
        %2163 = vmatpush.bf16.msra.mxu0 %v1927
        %2164 = vmatpush.bf16.msra.mxu0 %v1923
        %2165 = vmatpush.bf16.msra.mxu0 %v1919
        %2166 = vmatmul.bf16.gmra.mxu0 %v1612
        %v2167 = vpop.f32.mrf.mxu0
        %v2168 = vadd.f32 %v2139, %v2167
        %v2169 = vpop.f32.mrf.mxu0
        %v2170 = vadd.f32 %v2141, %v2169
        %2171 = vmatmul.bf16.gmra.mxu0 %v1614
        %v2172 = vpop.f32.mrf.mxu0
        %v2173 = vadd.f32 %v2144, %v2172
        %v2174 = vpop.f32.mrf.mxu0
        %v2175 = vadd.f32 %v2146, %v2174
        %2176 = vmatmul.bf16.gmra.mxu0 %v1616
        %v2177 = vpop.f32.mrf.mxu0
        %v2178 = vadd.f32 %v2149, %v2177
        %v2179 = vpop.f32.mrf.mxu0
        %v2180 = vadd.f32 %v2151, %v2179
        %2181 = vmatmul.bf16.gmra.mxu0 %v1618
        %v2182 = vpop.f32.mrf.mxu0
        %v2183 = vadd.f32 %v2154, %v2182
        %v2184 = vpop.f32.mrf.mxu0
        %v2185 = vadd.f32 %v2156, %v2184
        %2186 = vdwg.mxu0
        %2187 = vmatpush.bf16.msra.mxu0 %v1916
        %2188 = vmatpush.bf16.msra.mxu0 %v1912
        %2189 = vmatpush.bf16.msra.mxu0 %v1908
        %2190 = vmatpush.bf16.msra.mxu0 %v1904
        %2191 = vmatpush.bf16.msra.mxu0 %v1900
        %2192 = vmatpush.bf16.msra.mxu0 %v1896
        %2193 = vmatpush.bf16.msra.mxu0 %v1892
        %2194 = vmatpush.bf16.msra.mxu0 %v1888
        %2195 = vmatmul.bf16.gmra.mxu0 %v1611
        %v2196 = vpop.f32.mrf.mxu0
        %v2197 = vadd.f32 %v1688, %v2196
        %v2198 = vpop.f32.mrf.mxu0
        %v2199 = vadd.f32 %v1688, %v2198
        %2200 = vmatmul.bf16.gmra.mxu0 %v1613
        %v2201 = vpop.f32.mrf.mxu0
        %v2202 = vadd.f32 %v1688, %v2201
        %v2203 = vpop.f32.mrf.mxu0
        %v2204 = vadd.f32 %v1688, %v2203
        %2205 = vmatmul.bf16.gmra.mxu0 %v1615
        %v2206 = vpop.f32.mrf.mxu0
        %v2207 = vadd.f32 %v1688, %v2206
        %v2208 = vpop.f32.mrf.mxu0
        %v2209 = vadd.f32 %v1688, %v2208
        %2210 = vmatmul.bf16.gmra.mxu0 %v1617
        %v2211 = vpop.f32.mrf.mxu0
        %v2212 = vadd.f32 %v1688, %v2211
        %v2213 = vpop.f32.mrf.mxu0
        %v2214 = vadd.f32 %v1688, %v2213
        %2215 = vdwg.mxu0
        %2216 = vmatpush.bf16.msra.mxu0 %v1948
        %2217 = vmatpush.bf16.msra.mxu0 %v1944
        %2218 = vmatpush.bf16.msra.mxu0 %v1940
        %2219 = vmatpush.bf16.msra.mxu0 %v1936
        %2220 = vmatpush.bf16.msra.mxu0 %v1932
        %2221 = vmatpush.bf16.msra.mxu0 %v1928
        %2222 = vmatpush.bf16.msra.mxu0 %v1924
        %2223 = vmatpush.bf16.msra.mxu0 %v1920
        %2224 = vmatmul.bf16.gmra.mxu0 %v1612
        %v2225 = vpop.f32.mrf.mxu0
        %v2226 = vadd.f32 %v2197, %v2225
        %v2227 = vpop.f32.mrf.mxu0
        %v2228 = vadd.f32 %v2199, %v2227
        %2229 = vmatmul.bf16.gmra.mxu0 %v1614
        %v2230 = vpop.f32.mrf.mxu0
        %v2231 = vadd.f32 %v2202, %v2230
        %v2232 = vpop.f32.mrf.mxu0
        %v2233 = vadd.f32 %v2204, %v2232
        %2234 = vmatmul.bf16.gmra.mxu0 %v1616
        %v2235 = vpop.f32.mrf.mxu0
        %v2236 = vadd.f32 %v2207, %v2235
        %v2237 = vpop.f32.mrf.mxu0
        %v2238 = vadd.f32 %v2209, %v2237
        %2239 = vmatmul.bf16.gmra.mxu0 %v1618
        %v2240 = vpop.f32.mrf.mxu0
        %v2241 = vadd.f32 %v2212, %v2240
        %v2242 = vpop.f32.mrf.mxu0
        %v2243 = vadd.f32 %v2214, %v2242
        %2244 = vdwg.mxu0
        %v2245 = vpack.c.bf16 %v2110, %v2052
        %v2246 = vpack.c.bf16 %v2226, %v2168
        %v2247 = vpack.c.bf16 %v2112, %v2054
        %v2248 = vpack.c.bf16 %v2228, %v2170
        %v2249 = vpack.c.bf16 %v2115, %v2057
        %v2250 = vpack.c.bf16 %v2231, %v2173
        %v2251 = vpack.c.bf16 %v2117, %v2059
        %v2252 = vpack.c.bf16 %v2233, %v2175
        %v2253 = vpack.c.bf16 %v2120, %v2062
        %v2254 = vpack.c.bf16 %v2236, %v2178
        %v2255 = vpack.c.bf16 %v2122, %v2064
        %v2256 = vpack.c.bf16 %v2238, %v2180
        %v2257 = vpack.c.bf16 %v2125, %v2067
        %v2258 = vpack.c.bf16 %v2241, %v2183
        %v2259 = vpack.c.bf16 %v2127, %v2069
        %v2260 = vpack.c.bf16 %v2243, %v2185
        %2261 = vst [vmem:[%s460] sm:$0xff] %v2245
        %2262 = vst [vmem:[%s460 + $0x8] sm:$0xff] %v2246
        %2263 = vst [vmem:[%s460 + $0x10] sm:$0xff] %v2247
        %2264 = vst [vmem:[%s460 + $0x18] sm:$0xff] %v2248
        %2265 = vst [vmem:[%s460 + $0x20] sm:$0xff] %v2249
        %2266 = vst [vmem:[%s460 + $0x28] sm:$0xff] %v2250
        %2267 = vst [vmem:[%s460 + $0x30] sm:$0xff] %v2251
        %2268 = vst [vmem:[%s460 + $0x38] sm:$0xff] %v2252
        %2269 = vst [vmem:[%s460 + $0x40] sm:$0xff] %v2253
        %2270 = vst [vmem:[%s460 + $0x48] sm:$0xff] %v2254
        %2271 = vst [vmem:[%s460 + $0x50] sm:$0xff] %v2255
        %2272 = vst [vmem:[%s460 + $0x58] sm:$0xff] %v2256
        %2273 = vst [vmem:[%s460 + $0x60] sm:$0xff] %v2257
        %2274 = vst [vmem:[%s460 + $0x68] sm:$0xff] %v2258
        %2275 = vst [vmem:[%s460 + $0x70] sm:$0xff] %v2259
        %2276 = vst [vmem:[%s460 + $0x78] sm:$0xff] %v2260
        %2277 = vst [vmem:[%s467] sm:$0xff] %v1391
        %2278 = vst [vmem:[%s467 + $0x8] sm:$0xff] %v1393
        %2279 = vst [vmem:[%s467 + $0x10] sm:$0xff] %v1396
        %2280 = vst [vmem:[%s467 + $0x18] sm:$0xff] %v1398
        %2281 = vst [vmem:[%s467 + $0x20] sm:$0xff] %v1401
        %2282 = vst [vmem:[%s467 + $0x28] sm:$0xff] %v1403
        %2283 = vst [vmem:[%s467 + $0x30] sm:$0xff] %v1406
        %2284 = vst [vmem:[%s467 + $0x38] sm:$0xff] %v1408
        %s2285 = sand.u32 %s261, 1
        %s2286 = scalar_lea.sflag [#allocation4], %s2285
        %s2287 = sand.u32 %s261, 1
        %s2288 = smul.addr %s2287, 128
        %s2289 = scalar_lea.vmem [#allocation8], %s2288
        %s2290 = sand.u32 %s287, 1
        %s2291 = scalar_lea.sflag [#allocation10], %s2290
        %s2292 = sand.u32 %s287, 1
        %s2293 = smul.addr %s2292, 64
        %s2294 = scalar_lea.vmem [#allocation9], %s2293
        // Predicated region
        $region73: #{tpu_custom_call.1} parent=59 // pred_check
          %p2295 = pneg %p271
        $region74: #{tpu_custom_call.1} parent=59 // pred_check_branch
          %2297 = sbr.rel (%p2295) target = $region76
        $region75: #{tpu_custom_call.1} parent=59 // pred_region
          %s2298 = smul.u32 8, %s33
          %2300 = vsyncadd %s2286, 0
          %s2301 = smul.addr %s2298, 4
          %s2302 = smul.addr %s2301, 4
          %s2303 = scalar_lea.hbm %s10, %s2302
          %s2304 = sshll.u32 %s2289, 4
          %s2305 = int_to_ptr.vmem [resolvable:$true] %s2304
          %s2306 = sshll.u32 %s2303, 4
          %s2307 = int_to_ptr.hbm [resolvable:$true] %s2306
          %2312 = dma.vmem_to_hbm [thread:$0]  %s2305, 2048, %s2307, %s2286, 256, 256, 16
        $region76: #{tpu_custom_call.1} parent=59 // pred_fallthru
          _
        // Predicated region
        $region77: #{tpu_custom_call.1} parent=59 // pred_check
          %p2313 = pneg %p297
        $region78: #{tpu_custom_call.1} parent=59 // pred_check_branch
          %2315 = sbr.rel (%p2313) target = $region80
        $region79: #{tpu_custom_call.1} parent=59 // pred_region
          %s2316 = smul.u32 8, %s33
          %2318 = vsyncadd %s2291, 0
          %s2319 = smul.addr %s2316, 8
          %s2320 = scalar_lea.hbm %s11, %s2319
          %s2321 = sshll.u32 %s2294, 4
          %s2322 = int_to_ptr.vmem [resolvable:$true] %s2321
          %s2323 = sshll.u32 %s2320, 4
          %s2324 = int_to_ptr.hbm [resolvable:$true] %s2323
          %2329 = dma.vmem_to_hbm [thread:$0]  %s2322, 1024, %s2324, %s2291, 128, 128, 8
        $region80: #{tpu_custom_call.1} parent=59 // pred_fallthru
          _
      $region60: #{tpu_custom_call.1} parent=5 // pred_fallthru
        _
      %p2330 = scmp.le.s32.totalorder 2, %s28
      // Predicated region
      $region81: #{tpu_custom_call.1} parent=5 // pred_check
        %p2331 = pneg %p2330
      $region82: #{tpu_custom_call.1} parent=5 // pred_check_branch
        %2333 = sbr.rel (%p2331) target = $region84
      $region83: #{tpu_custom_call.1} parent=5 // pred_region
        %s2334 = ssub.s32 %s28, 2
        // Predicated region
        $region85: #{tpu_custom_call.1} parent=83 // pred_check
          %p2335 = pneg %p277
        $region86: #{tpu_custom_call.1} parent=83 // pred_check_branch
          %2337 = sbr.rel (%p2335) target = $region88
        $region87: #{tpu_custom_call.1} parent=83 // pred_region
          %s2338 = sand.u32 %s262, 1
          %s2339 = scalar_lea.sflag [#allocation4], %s2338
          %s2340 = sand.u32 %s262, 1
          %s2341 = smul.addr %s2340, 128
          %s2342 = scalar_lea.vmem [#allocation8], %s2341
          %2344 = dma.done %s2339, 2048
        $region88: #{tpu_custom_call.1} parent=83 // pred_fallthru
          _
        // Predicated region
        $region89: #{tpu_custom_call.1} parent=83 // pred_check
          %p2345 = pneg %p303
        $region90: #{tpu_custom_call.1} parent=83 // pred_check_branch
          %2347 = sbr.rel (%p2345) target = $region92
        $region91: #{tpu_custom_call.1} parent=83 // pred_region
          %s2348 = sand.u32 %s288, 1
          %s2349 = scalar_lea.sflag [#allocation10], %s2348
          %s2350 = sand.u32 %s288, 1
          %s2351 = smul.addr %s2350, 64
          %s2352 = scalar_lea.vmem [#allocation9], %s2351
          %2354 = dma.done %s2349, 1024
        $region92: #{tpu_custom_call.1} parent=83 // pred_fallthru
          _
      $region84: #{tpu_custom_call.1} parent=5 // pred_fallthru
        _
    $region6: #{tpu_custom_call.1} parent=1 // loop_footer
      %s32 = sadd.s32 1, %s28
    $region7: #{tpu_custom_call.1} parent=1 // loop_footer_branch
      %27 = sbr.rel target = $region3
    $region8: #{tpu_custom_call.1} parent=1 // loop_exit
      _
    %2355 = vsyncpa [#allocation3], 1
    %s2356 = scalar_lea.sflag [#allocation3], 1
    %2357 = vsyncpa %s2356, 1
    %2358 = vsyncpa [#allocation6], 1
    %2359 = vsyncpa [#allocation4], 1
    %s2360 = scalar_lea.sflag [#allocation4], 1
    %2361 = vsyncpa %s2360, 1
    %2362 = vsyncpa [#allocation10], 1
    %s2363 = scalar_lea.sflag [#allocation10], 1
    %2364 = vsyncpa %s2363, 1

// kernel: tpu_custom_call.1
$region0: #{tpu_custom_call.1}
  #allocation0 [shape = 'u32[]', space=smem, size = 0x4, offset = 0x4, fixed_abs, tag = 'smem constant byte address 0x4 - core index']
  #allocation1 [shape = 'u32[72,128]{1,0:T(1,128)}', space=vmem, size = 0x9000, scoped, tag = 'internal scratch']
  %s0 = inlined_call_operand.hbm [shape: bf16[256,512], index: 0, kind: input, shape index: {}]
  %s1 = inlined_call_operand.hbm [shape: bf16[512,256], index: 1, kind: input, shape index: {}]
  %s2 = inlined_call_operand.vmem [shape: f32[1,256], index: 2, kind: input, shape index: {}]
  %s3 = inlined_call_operand.vmem [shape: bf16[256,128], index: 3, kind: input, shape index: {}]
  %s4 = inlined_call_operand.vmem [shape: f32[1,128], index: 4, kind: input, shape index: {}]
  %s5 = inlined_call_operand.vmem [shape: f32[256,32], index: 5, kind: input, shape index: {}]
  %s6 = inlined_call_operand.vmem [shape: bf16[32,256], index: 6, kind: input, shape index: {}]
  %s7 = inlined_call_operand.vmem [shape: f32[1,256], index: 7, kind: input, shape index: {}]
  %s8 = inlined_call_operand.hbm [shape: bf16[256,512], index: 8, kind: input, shape index: {}]
  %s9 = inlined_call_operand.vmem [shape: f32[1,512], index: 9, kind: input, shape index: {}]
  %s10 = inlined_call_operand.hbm [shape: bf16[256,512], index: 10, kind: output, shape index: {0}]
  %s11 = inlined_call_operand.hbm [shape: f32[256,128], index: 11, kind: output, shape index: {1}]
  %12 = xla_tuple %s10, %s11
  %s13 = sld [smem:[#allocation0]]
  $region93: #{tpu_custom_call.1} parent=0
    _
  %s15 = ssub.s32 1, %s13
  %s16 = scalar_select 0, %s15, %s13
  $region1: #{tpu_custom_call.1} parent=0
    #allocation2 [shape = 'u8[131072]{0}', space=vmem, size = 0x20000, scoped, tag = 'input window, operand 0']
    #allocation3 [shape = 's32[2]{0}', space=sflag, size = 0x8, scoped, tag = 'scoped memory for tpu_custom_call.1']
    #allocation4 [shape = 's32[2]{0}', space=sflag, size = 0x8, scoped, tag = 'scoped memory for tpu_custom_call.1']
    #allocation5 [shape = 'u8[262144]{0}', space=vmem, size = 0x40000, scoped, tag = 'input window, operand 1, single buffered']
    #allocation6 [shape = 's32[1]{0}', space=sflag, size = 0x4, scoped, tag = 'scoped memory for tpu_custom_call.1']
    #allocation7 [shape = 'u8[262144]{0}', space=vmem, size = 0x40000, scoped, tag = 'input window, operand 8, single buffered']
    #allocation8 [shape = 'u8[131072]{0}', space=vmem, size = 0x20000, scoped, tag = 'output window, operand 0']
    #allocation9 [shape = 'u8[65536]{0}', space=vmem, size = 0x10000, scoped, tag = 'output window, operand 1']
    #allocation10 [shape = 's32[2]{0}', space=sflag, size = 0x8, scoped, tag = 'scoped memory for tpu_custom_call.1']
    %17 = vsyncpa [#allocation3], 0
    %s18 = scalar_lea.sflag [#allocation3], 1
    %19 = vsyncpa %s18, 0
    %20 = vsyncpa [#allocation6], 0
    %21 = vsyncpa [#allocation4], 0
    %s22 = scalar_lea.sflag [#allocation4], 1
    %23 = vsyncpa %s22, 0
    %24 = vsyncpa [#allocation10], 0
    %s25 = scalar_lea.sflag [#allocation10], 1
    %26 = vsyncpa %s25, 0
    loop: start=0, step=1, limit=6
    $region2: #{tpu_custom_call.1} parent=1 // loop_pre_header
      _
    $region3: #{tpu_custom_call.1} parent=1 // loop_header
      %s28 = sphi 0, %s32
      %p29 = scmp.ge.s32.totalorder %s28, 6
      %s38 = sphi 0, %s40
      %s41 = sphi 0, %s38
      %s42 = sphi 0, %s41
      %s58 = sphi 0, %s42
      %s62 = sphi 0, %s62
      %s64 = sphi 0, %s62
      %s65 = sphi 0, %s64
      %s79 = sphi 0, %s65
      %s83 = sphi 0, %s83
      %s85 = sphi 0, %s83
      %s86 = sphi 0, %s85
      %s100 = sphi 0, %s86
      %s104 = sphi 0, %s104
      %s106 = sphi 0, %s104
      %s107 = sphi 0, %s106
      %s121 = sphi 0, %s107
      %s125 = sphi 0, %s125
      %s127 = sphi 0, %s125
      %s128 = sphi 0, %s127
      %s142 = sphi 0, %s128
      %s148 = sphi 0, %s150
      %s151 = sphi 0, %s148
      %s152 = sphi 0, %s151
      %s168 = sphi 0, %s152
      %s172 = sphi 0, %s172
      %s174 = sphi 0, %s172
      %s175 = sphi 0, %s174
      %s189 = sphi 0, %s175
      %s193 = sphi 0, %s193
      %s195 = sphi 0, %s193
      %s196 = sphi 0, %s195
      %s210 = sphi 0, %s196
      %s214 = sphi 0, %s214
      %s216 = sphi 0, %s214
      %s217 = sphi 0, %s216
      %s231 = sphi 0, %s217
      %s235 = sphi 0, %s235
      %s237 = sphi 0, %s235
      %s238 = sphi 0, %s237
      %s252 = sphi 0, %s238
      %s258 = sphi 0, %s260
      %s261 = sphi 0, %s258
      %s262 = sphi 0, %s261
      %s278 = sphi 0, %s262
      %s284 = sphi 0, %s286
      %s287 = sphi 0, %s284
      %s288 = sphi 0, %s287
      %s304 = sphi 0, %s288
    $region4: #{tpu_custom_call.1} parent=1 // loop_header_branch
      %31 = sbr.rel (%p29) target = $region8
    $region5: #{tpu_custom_call.1} parent=1 // loop_body
      %s33 = ssub.s32 %s28, 1
      %s34 = ssub.s32 %s28, 2
      %s35 = sadd.s32 %s28, 1
      %s36 = ssub.s32 %s28, %s35
      %p37 = scmp.eq.s32.totalorder %s36, 0
      %s39 = sadd.s32 %s38, 1
      %s40 = scalar_select %p37, %s38, %s39
      %p43 = pneg %p37
      %p44 = scmp.eq.s32.totalorder %s28, 3
      %p45 = por %p43, %p44
      %p46 = scmp.ne.s32.totalorder %s38, %s41
      %p47 = scmp.eq.s32.totalorder %s28, 0
      %p48 = por %p46, %p47
      %p49 = scmp.ne.s32.totalorder %s38, %s41
      %p50 = scmp.eq.s32.totalorder %s33, 3
      %p51 = por %p49, %p50
      %p52 = scmp.ne.s32.totalorder %s41, %s42
      %p53 = scmp.eq.s32.totalorder %s33, 0
      %p54 = por %p52, %p53
      %p55 = scmp.ne.s32.totalorder %s41, %s42
      %p56 = scmp.eq.s32.totalorder %s34, 3
      %p57 = por %p55, %p56
      %p59 = scmp.ne.s32.totalorder %s42, %s58
      %p60 = scmp.eq.s32.totalorder %s34, 0
      %p61 = por %p59, %p60
      %s63 = sadd.s32 %s62, 1
      %p66 = scmp.eq.s32.totalorder %s28, 3
      %p67 = scmp.ne.s32.totalorder %s62, %s64
      %p68 = scmp.eq.s32.totalorder %s28, 0
      %p69 = por %p67, %p68
      %p70 = scmp.ne.s32.totalorder %s62, %s64
      %p71 = scmp.eq.s32.totalorder %s33, 3
      %p72 = por %p70, %p71
      %p73 = scmp.ne.s32.totalorder %s64, %s65
      %p74 = scmp.eq.s32.totalorder %s33, 0
      %p75 = por %p73, %p74
      %p76 = scmp.ne.s32.totalorder %s64, %s65
      %p77 = scmp.eq.s32.totalorder %s34, 3
      %p78 = por %p76, %p77
      %p80 = scmp.ne.s32.totalorder %s65, %s79
      %p81 = scmp.eq.s32.totalorder %s34, 0
      %p82 = por %p80, %p81
      %s84 = sadd.s32 %s83, 1
      %p87 = scmp.eq.s32.totalorder %s28, 3
      %p88 = scmp.ne.s32.totalorder %s83, %s85
      %p89 = scmp.eq.s32.totalorder %s28, 0
      %p90 = por %p88, %p89
      %p91 = scmp.ne.s32.totalorder %s83, %s85
      %p92 = scmp.eq.s32.totalorder %s33, 3
      %p93 = por %p91, %p92
      %p94 = scmp.ne.s32.totalorder %s85, %s86
      %p95 = scmp.eq.s32.totalorder %s33, 0
      %p96 = por %p94, %p95
      %p97 = scmp.ne.s32.totalorder %s85, %s86
      %p98 = scmp.eq.s32.totalorder %s34, 3
      %p99 = por %p97, %p98
      %p101 = scmp.ne.s32.totalorder %s86, %s100
      %p102 = scmp.eq.s32.totalorder %s34, 0
      %p103 = por %p101, %p102
      %s105 = sadd.s32 %s104, 1
      %p108 = scmp.eq.s32.totalorder %s28, 3
      %p109 = scmp.ne.s32.totalorder %s104, %s106
      %p110 = scmp.eq.s32.totalorder %s28, 0
      %p111 = por %p109, %p110
      %p112 = scmp.ne.s32.totalorder %s104, %s106
      %p113 = scmp.eq.s32.totalorder %s33, 3
      %p114 = por %p112, %p113
      %p115 = scmp.ne.s32.totalorder %s106, %s107
      %p116 = scmp.eq.s32.totalorder %s33, 0
      %p117 = por %p115, %p116
      %p118 = scmp.ne.s32.totalorder %s106, %s107
      %p119 = scmp.eq.s32.totalorder %s34, 3
      %p120 = por %p118, %p119
      %p122 = scmp.ne.s32.totalorder %s107, %s121
      %p123 = scmp.eq.s32.totalorder %s34, 0
      %p124 = por %p122, %p123
      %s126 = sadd.s32 %s125, 1
      %p129 = scmp.eq.s32.totalorder %s28, 3
      %p130 = scmp.ne.s32.totalorder %s125, %s127
      %p131 = scmp.eq.s32.totalorder %s28, 0
      %p132 = por %p130, %p131
      %p133 = scmp.ne.s32.totalorder %s125, %s127
      %p134 = scmp.eq.s32.totalorder %s33, 3
      %p135 = por %p133, %p134
      %p136 = scmp.ne.s32.totalorder %s127, %s128
      %p137 = scmp.eq.s32.totalorder %s33, 0
      %p138 = por %p136, %p137
      %p139 = scmp.ne.s32.totalorder %s127, %s128
      %p140 = scmp.eq.s32.totalorder %s34, 3
      %p141 = por %p139, %p140
      %p143 = scmp.ne.s32.totalorder %s128, %s142
      %p144 = scmp.eq.s32.totalorder %s34, 0
      %p145 = por %p143, %p144
      %s146 = ssub.s32 %s28, %s35
      %p147 = scmp.eq.s32.totalorder %s146, 0
      %s149 = sadd.s32 %s148, 1
      %s150 = scalar_select %p147, %s148, %s149
      %p153 = pneg %p147
      %p154 = scmp.eq.s32.totalorder %s28, 3
      %p155 = por %p153, %p154
      %p156 = scmp.ne.s32.totalorder %s148, %s151
      %p157 = scmp.eq.s32.totalorder %s28, 0
      %p158 = por %p156, %p157
      %p159 = scmp.ne.s32.totalorder %s148, %s151
      %p160 = scmp.eq.s32.totalorder %s33, 3
      %p161 = por %p159, %p160
      %p162 = scmp.ne.s32.totalorder %s151, %s152
      %p163 = scmp.eq.s32.totalorder %s33, 0
      %p164 = por %p162, %p163
      %p165 = scmp.ne.s32.totalorder %s151, %s152
      %p166 = scmp.eq.s32.totalorder %s34, 3
      %p167 = por %p165, %p166
      %p169 = scmp.ne.s32.totalorder %s152, %s168
      %p170 = scmp.eq.s32.totalorder %s34, 0
      %p171 = por %p169, %p170
      %s173 = sadd.s32 %s172, 1
      %p176 = scmp.eq.s32.totalorder %s28, 3
      %p177 = scmp.ne.s32.totalorder %s172, %s174
      %p178 = scmp.eq.s32.totalorder %s28, 0
      %p179 = por %p177, %p178
      %p180 = scmp.ne.s32.totalorder %s172, %s174
      %p181 = scmp.eq.s32.totalorder %s33, 3
      %p182 = por %p180, %p181
      %p183 = scmp.ne.s32.totalorder %s174, %s175
      %p184 = scmp.eq.s32.totalorder %s33, 0
      %p185 = por %p183, %p184
      %p186 = scmp.ne.s32.totalorder %s174, %s175
      %p187 = scmp.eq.s32.totalorder %s34, 3
      %p188 = por %p186, %p187
      %p190 = scmp.ne.s32.totalorder %s175, %s189
      %p191 = scmp.eq.s32.totalorder %s34, 0
      %p192 = por %p190, %p191
      %s194 = sadd.s32 %s193, 1
      %p197 = scmp.eq.s32.totalorder %s28, 3
      %p198 = scmp.ne.s32.totalorder %s193, %s195
      %p199 = scmp.eq.s32.totalorder %s28, 0
      %p200 = por %p198, %p199
      %p201 = scmp.ne.s32.totalorder %s193, %s195
      %p202 = scmp.eq.s32.totalorder %s33, 3
      %p203 = por %p201, %p202
      %p204 = scmp.ne.s32.totalorder %s195, %s196
      %p205 = scmp.eq.s32.totalorder %s33, 0
      %p206 = por %p204, %p205
      %p207 = scmp.ne.s32.totalorder %s195, %s196
      %p208 = scmp.eq.s32.totalorder %s34, 3
      %p209 = por %p207, %p208
      %p211 = scmp.ne.s32.totalorder %s196, %s210
      %p212 = scmp.eq.s32.totalorder %s34, 0
      %p213 = por %p211, %p212
      %s215 = sadd.s32 %s214, 1
      %p218 = scmp.eq.s32.totalorder %s28, 3
      %p219 = scmp.ne.s32.totalorder %s214, %s216
      %p220 = scmp.eq.s32.totalorder %s28, 0
      %p221 = por %p219, %p220
      %p222 = scmp.ne.s32.totalorder %s214, %s216
      %p223 = scmp.eq.s32.totalorder %s33, 3
      %p224 = por %p222, %p223
      %p225 = scmp.ne.s32.totalorder %s216, %s217
      %p226 = scmp.eq.s32.totalorder %s33, 0
      %p227 = por %p225, %p226
      %p228 = scmp.ne.s32.totalorder %s216, %s217
      %p229 = scmp.eq.s32.totalorder %s34, 3
      %p230 = por %p228, %p229
      %p232 = scmp.ne.s32.totalorder %s217, %s231
      %p233 = scmp.eq.s32.totalorder %s34, 0
      %p234 = por %p232, %p233
      %s236 = sadd.s32 %s235, 1
      %p239 = scmp.eq.s32.totalorder %s28, 3
      %p240 = scmp.ne.s32.totalorder %s235, %s237
      %p241 = scmp.eq.s32.totalorder %s28, 0
      %p242 = por %p240, %p241
      %p243 = scmp.ne.s32.totalorder %s235, %s237
      %p244 = scmp.eq.s32.totalorder %s33, 3
      %p245 = por %p243, %p244
      %p246 = scmp.ne.s32.totalorder %s237, %s238
      %p247 = scmp.eq.s32.totalorder %s33, 0
      %p248 = por %p246, %p247
      %p249 = scmp.ne.s32.totalorder %s237, %s238
      %p250 = scmp.eq.s32.totalorder %s34, 3
      %p251 = por %p249, %p250
      %p253 = scmp.ne.s32.totalorder %s238, %s252
      %p254 = scmp.eq.s32.totalorder %s34, 0
      %p255 = por %p253, %p254
      %s256 = ssub.s32 %s28, %s35
      %p257 = scmp.eq.s32.totalorder %s256, 0
      %s259 = sadd.s32 %s258, 1
      %s260 = scalar_select %p257, %s258, %s259
      %p263 = pneg %p257
      %p264 = scmp.eq.s32.totalorder %s28, 3
      %p265 = por %p263, %p264
      %p266 = scmp.ne.s32.totalorder %s258, %s261
      %p267 = scmp.eq.s32.totalorder %s28, 0
      %p268 = por %p266, %p267
      %p269 = scmp.ne.s32.totalorder %s258, %s261
      %p270 = scmp.eq.s32.totalorder %s33, 3
      %p271 = por %p269, %p270
      %p272 = scmp.ne.s32.totalorder %s261, %s262
      %p273 = scmp.eq.s32.totalorder %s33, 0
      %p274 = por %p272, %p273
      %p275 = scmp.ne.s32.totalorder %s261, %s262
      %p276 = scmp.eq.s32.totalorder %s34, 3
      %p277 = por %p275, %p276
      %p279 = scmp.ne.s32.totalorder %s262, %s278
      %p280 = scmp.eq.s32.totalorder %s34, 0
      %p281 = por %p279, %p280
      %s282 = ssub.s32 %s28, %s35
      %p283 = scmp.eq.s32.totalorder %s282, 0
      %s285 = sadd.s32 %s284, 1
      %s286 = scalar_select %p283, %s284, %s285
      %p289 = pneg %p283
      %p290 = scmp.eq.s32.totalorder %s28, 3
      %p291 = por %p289, %p290
      %p292 = scmp.ne.s32.totalorder %s284, %s287
      %p293 = scmp.eq.s32.totalorder %s28, 0
      %p294 = por %p292, %p293
      %p295 = scmp.ne.s32.totalorder %s284, %s287
      %p296 = scmp.eq.s32.totalorder %s33, 3
      %p297 = por %p295, %p296
      %p298 = scmp.ne.s32.totalorder %s287, %s288
      %p299 = scmp.eq.s32.totalorder %s33, 0
      %p300 = por %p298, %p299
      %p301 = scmp.ne.s32.totalorder %s287, %s288
      %p302 = scmp.eq.s32.totalorder %s34, 3
      %p303 = por %p301, %p302
      %p305 = scmp.ne.s32.totalorder %s288, %s304
      %p306 = scmp.eq.s32.totalorder %s34, 0
      %p307 = por %p305, %p306
      %p308 = scmp.le.s32.totalorder 1, %s28
      %p309 = scmp.lt.s32.totalorder %s28, 5
      %p310 = pnand %p308, %p309
      %p311 = pneg %p310
      // Predicated region
      $region9: #{tpu_custom_call.1} parent=5 // pred_check
        _
      $region10: #{tpu_custom_call.1} parent=5 // pred_check_branch
        %313 = sbr.rel (%p310) target = $region12
      $region11: #{tpu_custom_call.1} parent=5 // pred_region
        %s314 = ssub.s32 %s28, 1
        // Predicated region
        $region13: #{tpu_custom_call.1} parent=11 // pred_check
          %p315 = pneg %p75
        $region14: #{tpu_custom_call.1} parent=11 // pred_check_branch
          %317 = sbr.rel (%p315) target = $region16
        $region15: #{tpu_custom_call.1} parent=11 // pred_region
          %319 = vsyncadd [#allocation6], 0
          %s320 = sshll.u32 %s1, 4
          %s321 = int_to_ptr.hbm [resolvable:$true] %s320
          %s322 = sshll.u32 [#allocation5], 4
          %s323 = int_to_ptr.vmem [resolvable:$true] %s322
          %328 = dma.hbm_to_vmem [thread:$0]  %s321, 8192, %s323, [#allocation6], 128, 128, 8
        $region16: #{tpu_custom_call.1} parent=11 // pred_fallthru
          _
        // Predicated region
        $region17: #{tpu_custom_call.1} parent=11 // pred_check
          %p329 = pneg %p96
        $region18: #{tpu_custom_call.1} parent=11 // pred_check_branch
          %331 = sbr.rel (%p329) target = $region20
        $region19: #{tpu_custom_call.1} parent=11 // pred_region
          _
        $region20: #{tpu_custom_call.1} parent=11 // pred_fallthru
          _
        // Predicated region
        $region21: #{tpu_custom_call.1} parent=11 // pred_check
          %p332 = pneg %p117
        $region22: #{tpu_custom_call.1} parent=11 // pred_check_branch
          %334 = sbr.rel (%p332) target = $region24
        $region23: #{tpu_custom_call.1} parent=11 // pred_region
          _
        $region24: #{tpu_custom_call.1} parent=11 // pred_fallthru
          _
        // Predicated region
        $region25: #{tpu_custom_call.1} parent=11 // pred_check
          %p335 = pneg %p138
        $region26: #{tpu_custom_call.1} parent=11 // pred_check_branch
          %337 = sbr.rel (%p335) target = $region28
        $region27: #{tpu_custom_call.1} parent=11 // pred_region
          _
        $region28: #{tpu_custom_call.1} parent=11 // pred_fallthru
          _
        // Predicated region
        $region29: #{tpu_custom_call.1} parent=11 // pred_check
          %p338 = pneg %p185
        $region30: #{tpu_custom_call.1} parent=11 // pred_check_branch
          %340 = sbr.rel (%p338) target = $region32
        $region31: #{tpu_custom_call.1} parent=11 // pred_region
          _
        $region32: #{tpu_custom_call.1} parent=11 // pred_fallthru
          _
        // Predicated region
        $region33: #{tpu_custom_call.1} parent=11 // pred_check
          %p341 = pneg %p206
        $region34: #{tpu_custom_call.1} parent=11 // pred_check_branch
          %343 = sbr.rel (%p341) target = $region36
        $region35: #{tpu_custom_call.1} parent=11 // pred_region
          _
        $region36: #{tpu_custom_call.1} parent=11 // pred_fallthru
          _
        // Predicated region
        $region37: #{tpu_custom_call.1} parent=11 // pred_check
          %p344 = pneg %p227
        $region38: #{tpu_custom_call.1} parent=11 // pred_check_branch
          %346 = sbr.rel (%p344) target = $region40
        $region39: #{tpu_custom_call.1} parent=11 // pred_region
          %348 = vsyncadd [#allocation6], 0
          %s349 = sshll.u32 %s8, 4
          %s350 = int_to_ptr.hbm [resolvable:$true] %s349
          %s351 = sshll.u32 [#allocation7], 4
          %s352 = int_to_ptr.vmem [resolvable:$true] %s351
          %357 = dma.hbm_to_vmem [thread:$0]  %s350, 8192, %s352, [#allocation6], 256, 256, 16
        $region40: #{tpu_custom_call.1} parent=11 // pred_fallthru
          _
        // Predicated region
        $region41: #{tpu_custom_call.1} parent=11 // pred_check
          %p358 = pneg %p248
        $region42: #{tpu_custom_call.1} parent=11 // pred_check_branch
          %360 = sbr.rel (%p358) target = $region44
        $region43: #{tpu_custom_call.1} parent=11 // pred_region
          _
        $region44: #{tpu_custom_call.1} parent=11 // pred_fallthru
          _
      $region12: #{tpu_custom_call.1} parent=5 // pred_fallthru
        _
      %p361 = scmp.lt.s32.totalorder %s28, 4
      // Predicated region
      $region45: #{tpu_custom_call.1} parent=5 // pred_check
        %p362 = pneg %p361
      $region46: #{tpu_custom_call.1} parent=5 // pred_check_branch
        %364 = sbr.rel (%p362) target = $region48
      $region47: #{tpu_custom_call.1} parent=5 // pred_region
        // Predicated region
        $region49: #{tpu_custom_call.1} parent=47 // pred_check
          %p365 = pneg %p48
        $region50: #{tpu_custom_call.1} parent=47 // pred_check_branch
          %367 = sbr.rel (%p365) target = $region52
        $region51: #{tpu_custom_call.1} parent=47 // pred_region
          %s368 = sand.u32 %s38, 1
          %s369 = scalar_lea.sflag [#allocation3], %s368
          %s370 = sand.u32 %s38, 1
          %s371 = smul.addr %s370, 128
          %s372 = scalar_lea.vmem [#allocation2], %s371
          %s373 = smul.u32 8, %s28
          %375 = vsyncadd %s369, 0
          %s376 = smul.addr %s373, 4
          %s377 = smul.addr %s376, 4
          %s378 = scalar_lea.hbm %s0, %s377
          %s379 = sshll.u32 %s378, 4
          %s380 = int_to_ptr.hbm [resolvable:$true] %s379
          %s381 = sshll.u32 %s372, 4
          %s382 = int_to_ptr.vmem [resolvable:$true] %s381
          %387 = dma.hbm_to_vmem [thread:$0]  %s380, 2048, %s382, %s369, 256, 256, 16
        $region52: #{tpu_custom_call.1} parent=47 // pred_fallthru
          _
        // Predicated region
        $region53: #{tpu_custom_call.1} parent=47 // pred_check
          %p388 = pneg %p158
        $region54: #{tpu_custom_call.1} parent=47 // pred_check_branch
          %390 = sbr.rel (%p388) target = $region56
        $region55: #{tpu_custom_call.1} parent=47 // pred_region
          %s391 = smul.u32 8, %s28
          %p392 = scmp.lt.s32.totalorder %s391, 31
          %s393 = scalar_select %p392, %s391, 31
          %s394 = smul.addr %s393, 8
          %s395 = scalar_lea.vmem %s5, %s394
          %s396 = smul.u32 8, %s28
        $region56: #{tpu_custom_call.1} parent=47 // pred_fallthru
          _
      $region48: #{tpu_custom_call.1} parent=5 // pred_fallthru
        _
      %p397 = scmp.le.s32.totalorder 1, %s28
      %p398 = scmp.lt.s32.totalorder %s28, 5
      %p399 = pnand %p397, %p398
      %p400 = pneg %p399
      // Predicated region
      $region57: #{tpu_custom_call.1} parent=5 // pred_check
        _
      $region58: #{tpu_custom_call.1} parent=5 // pred_check_branch
        %402 = sbr.rel (%p399) target = $region60
      $region59: #{tpu_custom_call.1} parent=5 // pred_region
        %s403 = ssub.s32 %s28, 1
        %s404 = sand.u32 %s41, 1
        %s405 = scalar_lea.sflag [#allocation3], %s404
        %s406 = sand.u32 %s41, 1
        %s407 = smul.addr %s406, 128
        %s408 = scalar_lea.vmem [#allocation2], %s407
        // Predicated region
        $region61: #{tpu_custom_call.1} parent=59 // pred_check
          %p409 = pneg %p54
        $region62: #{tpu_custom_call.1} parent=59 // pred_check_branch
          %411 = sbr.rel (%p409) target = $region64
        $region63: #{tpu_custom_call.1} parent=59 // pred_region
          %413 = dma.done %s405, 2048
        $region64: #{tpu_custom_call.1} parent=59 // pred_fallthru
          _
        // Predicated region
        $region65: #{tpu_custom_call.1} parent=59 // pred_check
          %p414 = pneg %p75
        $region66: #{tpu_custom_call.1} parent=59 // pred_check_branch
          %416 = sbr.rel (%p414) target = $region68
        $region67: #{tpu_custom_call.1} parent=59 // pred_region
          %418 = dma.done [#allocation6], 8192
        $region68: #{tpu_custom_call.1} parent=59 // pred_fallthru
          _
        // Predicated region
        $region69: #{tpu_custom_call.1} parent=59 // pred_check
          %p419 = pneg %p227
        $region70: #{tpu_custom_call.1} parent=59 // pred_check_branch
          %421 = sbr.rel (%p419) target = $region72
        $region71: #{tpu_custom_call.1} parent=59 // pred_region
          %423 = dma.done [#allocation6], 8192
        $region72: #{tpu_custom_call.1} parent=59 // pred_fallthru
          _
        %s424 = sand.u32 %s41, 1
        %s425 = scalar_lea.sflag [#allocation3], %s424
        %s426 = sand.u32 %s41, 1
        %s427 = smul.addr %s426, 128
        %s428 = scalar_lea.vmem [#allocation2], %s427
        %p429 = pneg %p54
        %p430 = pneg %p51
        %p431 = pneg %p75
        %p432 = pneg %p72
        %p433 = pneg %p96
        %p434 = pneg %p93
        %p435 = pneg %p117
        %p436 = pneg %p114
        %p437 = pneg %p138
        %p438 = pneg %p135
        %s439 = smul.u32 8, %s33
        %p440 = scmp.lt.s32.totalorder %s439, 31
        %s441 = scalar_select %p440, %s439, 31
        %s442 = smul.addr %s441, 8
        %s443 = scalar_lea.vmem %s5, %s442
        %p444 = pneg %p164
        %p445 = pneg %p161
        %p446 = pneg %p185
        %p447 = pneg %p182
        %p448 = pneg %p206
        %p449 = pneg %p203
        %p450 = pneg %p227
        %p451 = pneg %p224
        %p452 = pneg %p248
        %p453 = pneg %p245
        %p454 = pneg %p274
        %p455 = pneg %p271
        %s456 = sand.u32 %s261, 1
        %s457 = scalar_lea.sflag [#allocation4], %s456
        %s458 = sand.u32 %s261, 1
        %s459 = smul.addr %s458, 128
        %s460 = scalar_lea.vmem [#allocation8], %s459
        %p461 = pneg %p300
        %p462 = pneg %p297
        %s463 = sand.u32 %s287, 1
        %s464 = scalar_lea.sflag [#allocation10], %s463
        %s465 = sand.u32 %s287, 1
        %s466 = smul.addr %s465, 64
        %s467 = scalar_lea.vmem [#allocation9], %s466
        %s468 = smul.u32 8, %s33
        %s469 = smul.u32 8, %s33
        %p470 = scmp.lt.s32.totalorder %s469, 31
        %s471 = scalar_select %p470, %s469, 31
        %s472 = smul.addr %s471, 8
        %s473 = scalar_lea.vmem %s5, %s472
        %s474 = smul.u32 8, %s33
        %s475 = smul.u32 8, %s33
        %s476 = smul.u32 8, %s33
        %v478 = vld [vmem:[%s408] sm:$0xff]
        %v479 = vld [vmem:[%s408 + $0x8] sm:$0xff]
        %v480 = vld [vmem:[%s408 + $0x10] sm:$0xff]
        %v481 = vld [vmem:[%s408 + $0x18] sm:$0xff]
        %v482 = vld [vmem:[%s408 + $0x20] sm:$0xff]
        %v483 = vld [vmem:[%s408 + $0x28] sm:$0xff]
        %v484 = vld [vmem:[%s408 + $0x30] sm:$0xff]
        %v485 = vld [vmem:[%s408 + $0x38] sm:$0xff]
        %v486 = vld [vmem:[%s408 + $0x40] sm:$0xff]
        %v487 = vld [vmem:[%s408 + $0x48] sm:$0xff]
        %v488 = vld [vmem:[%s408 + $0x50] sm:$0xff]
        %v489 = vld [vmem:[%s408 + $0x58] sm:$0xff]
        %v490 = vld [vmem:[%s408 + $0x60] sm:$0xff]
        %v491 = vld [vmem:[%s408 + $0x68] sm:$0xff]
        %v492 = vld [vmem:[%s408 + $0x70] sm:$0xff]
        %v493 = vld [vmem:[%s408 + $0x78] sm:$0xff]
        %v494 = vld [vmem:[#allocation5] sm:$0xff]
        %v495 = vld [vmem:[#allocation5 + $0x8] sm:$0xff]
        %v496 = vld [vmem:[#allocation5 + $0x10] sm:$0xff]
        %v497 = vld [vmem:[#allocation5 + $0x18] sm:$0xff]
        %v498 = vld [vmem:[#allocation5 + $0x20] sm:$0xff]
        %v499 = vld [vmem:[#allocation5 + $0x28] sm:$0xff]
        %v500 = vld [vmem:[#allocation5 + $0x30] sm:$0xff]
        %v501 = vld [vmem:[#allocation5 + $0x38] sm:$0xff]
        %v502 = vld [vmem:[#allocation5 + $0x40] sm:$0xff]
        %v503 = vld [vmem:[#allocation5 + $0x48] sm:$0xff]
        %v504 = vld [vmem:[#allocation5 + $0x50] sm:$0xff]
        %v505 = vld [vmem:[#allocation5 + $0x58] sm:$0xff]
        %v506 = vld [vmem:[#allocation5 + $0x60] sm:$0xff]
        %v507 = vld [vmem:[#allocation5 + $0x68] sm:$0xff]
        %v508 = vld [vmem:[#allocation5 + $0x70] sm:$0xff]
        %v509 = vld [vmem:[#allocation5 + $0x78] sm:$0xff]
        %v510 = vld [vmem:[#allocation5 + $0x80] sm:$0xff]
        %v511 = vld [vmem:[#allocation5 + $0x88] sm:$0xff]
        %v512 = vld [vmem:[#allocation5 + $0x90] sm:$0xff]
        %v513 = vld [vmem:[#allocation5 + $0x98] sm:$0xff]
        %v514 = vld [vmem:[#allocation5 + $0xa0] sm:$0xff]
        %v515 = vld [vmem:[#allocation5 + $0xa8] sm:$0xff]
        %v516 = vld [vmem:[#allocation5 + $0xb0] sm:$0xff]
        %v517 = vld [vmem:[#allocation5 + $0xb8] sm:$0xff]
        %v518 = vld [vmem:[#allocation5 + $0xc0] sm:$0xff]
        %v519 = vld [vmem:[#allocation5 + $0xc8] sm:$0xff]
        %v520 = vld [vmem:[#allocation5 + $0xd0] sm:$0xff]
        %v521 = vld [vmem:[#allocation5 + $0xd8] sm:$0xff]
        %v522 = vld [vmem:[#allocation5 + $0xe0] sm:$0xff]
        %v523 = vld [vmem:[#allocation5 + $0xe8] sm:$0xff]
        %v524 = vld [vmem:[#allocation5 + $0xf0] sm:$0xff]
        %v525 = vld [vmem:[#allocation5 + $0xf8] sm:$0xff]
        %v526 = vld [vmem:[#allocation5 + $0x100] sm:$0xff]
        %v527 = vld [vmem:[#allocation5 + $0x108] sm:$0xff]
        %v528 = vld [vmem:[#allocation5 + $0x110] sm:$0xff]
        %v529 = vld [vmem:[#allocation5 + $0x118] sm:$0xff]
        %v530 = vld [vmem:[#allocation5 + $0x120] sm:$0xff]
        %v531 = vld [vmem:[#allocation5 + $0x128] sm:$0xff]
        %v532 = vld [vmem:[#allocation5 + $0x130] sm:$0xff]
        %v533 = vld [vmem:[#allocation5 + $0x138] sm:$0xff]
        %v534 = vld [vmem:[#allocation5 + $0x140] sm:$0xff]
        %v535 = vld [vmem:[#allocation5 + $0x148] sm:$0xff]
        %v536 = vld [vmem:[#allocation5 + $0x150] sm:$0xff]
        %v537 = vld [vmem:[#allocation5 + $0x158] sm:$0xff]
        %v538 = vld [vmem:[#allocation5 + $0x160] sm:$0xff]
        %v539 = vld [vmem:[#allocation5 + $0x168] sm:$0xff]
        %v540 = vld [vmem:[#allocation5 + $0x170] sm:$0xff]
        %v541 = vld [vmem:[#allocation5 + $0x178] sm:$0xff]
        %v542 = vld [vmem:[#allocation5 + $0x180] sm:$0xff]
        %v543 = vld [vmem:[#allocation5 + $0x188] sm:$0xff]
        %v544 = vld [vmem:[#allocation5 + $0x190] sm:$0xff]
        %v545 = vld [vmem:[#allocation5 + $0x198] sm:$0xff]
        %v546 = vld [vmem:[#allocation5 + $0x1a0] sm:$0xff]
        %v547 = vld [vmem:[#allocation5 + $0x1a8] sm:$0xff]
        %v548 = vld [vmem:[#allocation5 + $0x1b0] sm:$0xff]
        %v549 = vld [vmem:[#allocation5 + $0x1b8] sm:$0xff]
        %v550 = vld [vmem:[#allocation5 + $0x1c0] sm:$0xff]
        %v551 = vld [vmem:[#allocation5 + $0x1c8] sm:$0xff]
        %v552 = vld [vmem:[#allocation5 + $0x1d0] sm:$0xff]
        %v553 = vld [vmem:[#allocation5 + $0x1d8] sm:$0xff]
        %v554 = vld [vmem:[#allocation5 + $0x1e0] sm:$0xff]
        %v555 = vld [vmem:[#allocation5 + $0x1e8] sm:$0xff]
        %v556 = vld [vmem:[#allocation5 + $0x1f0] sm:$0xff]
        %v557 = vld [vmem:[#allocation5 + $0x1f8] sm:$0xff]
        %v558 = vld [vmem:[%s2] sm:$0x3]
        %v560 = vperm.slane %v558, 0
        %v561 = vperm.slane %v558, 1
        %v580 = vunpack.c.l.b16 %v478
        %v581 = vunpack.c.h.b16 %v478
        %v582 = vunpack.c.l.b16 %v479
        %v583 = vunpack.c.h.b16 %v479
        %v584 = vunpack.c.l.b16 %v480
        %v585 = vunpack.c.h.b16 %v480
        %v586 = vunpack.c.l.b16 %v481
        %v587 = vunpack.c.h.b16 %v481
        %v588 = vunpack.c.l.b16 %v482
        %v589 = vunpack.c.h.b16 %v482
        %v590 = vunpack.c.l.b16 %v483
        %v591 = vunpack.c.h.b16 %v483
        %v592 = vunpack.c.l.b16 %v484
        %v593 = vunpack.c.h.b16 %v484
        %v594 = vunpack.c.l.b16 %v485
        %v595 = vunpack.c.h.b16 %v485
        %v596 = vunpack.c.l.b16 %v486
        %v597 = vunpack.c.h.b16 %v486
        %v598 = vunpack.c.l.b16 %v487
        %v599 = vunpack.c.h.b16 %v487
        %v600 = vunpack.c.l.b16 %v488
        %v601 = vunpack.c.h.b16 %v488
        %v602 = vunpack.c.l.b16 %v489
        %v603 = vunpack.c.h.b16 %v489
        %v604 = vunpack.c.l.b16 %v490
        %v605 = vunpack.c.h.b16 %v490
        %v606 = vunpack.c.l.b16 %v491
        %v607 = vunpack.c.h.b16 %v491
        %v608 = vunpack.c.l.b16 %v492
        %v609 = vunpack.c.h.b16 %v492
        %v610 = vunpack.c.l.b16 %v493
        %v611 = vunpack.c.h.b16 %v493
        %v612 = vpack.c.b16 %v584, %v580
        %v613 = vpack.c.b16 %v585, %v581
        %v614 = vpack.c.b16 %v586, %v582
        %v615 = vpack.c.b16 %v587, %v583
        %v616 = vpack.c.b16 %v592, %v588
        %v617 = vpack.c.b16 %v593, %v589
        %v618 = vpack.c.b16 %v594, %v590
        %v619 = vpack.c.b16 %v595, %v591
        %v620 = vpack.c.b16 %v600, %v596
        %v621 = vpack.c.b16 %v601, %v597
        %v622 = vpack.c.b16 %v602, %v598
        %v623 = vpack.c.b16 %v603, %v599
        %v624 = vpack.c.b16 %v608, %v604
        %v625 = vpack.c.b16 %v609, %v605
        %v626 = vpack.c.b16 %v610, %v606
        %v627 = vpack.c.b16 %v611, %v607
        %v708 = vunpack.c.l.b16 %v494
        %v709 = vunpack.c.h.b16 %v494
        %v710 = vunpack.c.l.b16 %v495
        %v711 = vunpack.c.h.b16 %v495
        %v712 = vunpack.c.l.b16 %v496
        %v713 = vunpack.c.h.b16 %v496
        %v714 = vunpack.c.l.b16 %v497
        %v715 = vunpack.c.h.b16 %v497
        %v716 = vunpack.c.l.b16 %v498
        %v717 = vunpack.c.h.b16 %v498
        %v718 = vunpack.c.l.b16 %v499
        %v719 = vunpack.c.h.b16 %v499
        %v720 = vunpack.c.l.b16 %v500
        %v721 = vunpack.c.h.b16 %v500
        %v722 = vunpack.c.l.b16 %v501
        %v723 = vunpack.c.h.b16 %v501
        %v724 = vunpack.c.l.b16 %v502
        %v725 = vunpack.c.h.b16 %v502
        %v726 = vunpack.c.l.b16 %v503
        %v727 = vunpack.c.h.b16 %v503
        %v728 = vunpack.c.l.b16 %v504
        %v729 = vunpack.c.h.b16 %v504
        %v730 = vunpack.c.l.b16 %v505
        %v731 = vunpack.c.h.b16 %v505
        %v732 = vunpack.c.l.b16 %v506
        %v733 = vunpack.c.h.b16 %v506
        %v734 = vunpack.c.l.b16 %v507
        %v735 = vunpack.c.h.b16 %v507
        %v736 = vunpack.c.l.b16 %v508
        %v737 = vunpack.c.h.b16 %v508
        %v738 = vunpack.c.l.b16 %v509
        %v739 = vunpack.c.h.b16 %v509
        %v740 = vunpack.c.l.b16 %v510
        %v741 = vunpack.c.h.b16 %v510
        %v742 = vunpack.c.l.b16 %v511
        %v743 = vunpack.c.h.b16 %v511
        %v744 = vunpack.c.l.b16 %v512
        %v745 = vunpack.c.h.b16 %v512
        %v746 = vunpack.c.l.b16 %v513
        %v747 = vunpack.c.h.b16 %v513
        %v748 = vunpack.c.l.b16 %v514
        %v749 = vunpack.c.h.b16 %v514
        %v750 = vunpack.c.l.b16 %v515
        %v751 = vunpack.c.h.b16 %v515
        %v752 = vunpack.c.l.b16 %v516
        %v753 = vunpack.c.h.b16 %v516
        %v754 = vunpack.c.l.b16 %v517
        %v755 = vunpack.c.h.b16 %v517
        %v756 = vunpack.c.l.b16 %v518
        %v757 = vunpack.c.h.b16 %v518
        %v758 = vunpack.c.l.b16 %v519
        %v759 = vunpack.c.h.b16 %v519
        %v760 = vunpack.c.l.b16 %v520
        %v761 = vunpack.c.h.b16 %v520
        %v762 = vunpack.c.l.b16 %v521
        %v763 = vunpack.c.h.b16 %v521
        %v764 = vunpack.c.l.b16 %v522
        %v765 = vunpack.c.h.b16 %v522
        %v766 = vunpack.c.l.b16 %v523
        %v767 = vunpack.c.h.b16 %v523
        %v768 = vunpack.c.l.b16 %v524
        %v769 = vunpack.c.h.b16 %v524
        %v770 = vunpack.c.l.b16 %v525
        %v771 = vunpack.c.h.b16 %v525
        %v772 = vunpack.c.l.b16 %v526
        %v773 = vunpack.c.h.b16 %v526
        %v774 = vunpack.c.l.b16 %v527
        %v775 = vunpack.c.h.b16 %v527
        %v776 = vunpack.c.l.b16 %v528
        %v777 = vunpack.c.h.b16 %v528
        %v778 = vunpack.c.l.b16 %v529
        %v779 = vunpack.c.h.b16 %v529
        %v780 = vunpack.c.l.b16 %v530
        %v781 = vunpack.c.h.b16 %v530
        %v782 = vunpack.c.l.b16 %v531
        %v783 = vunpack.c.h.b16 %v531
        %v784 = vunpack.c.l.b16 %v532
        %v785 = vunpack.c.h.b16 %v532
        %v786 = vunpack.c.l.b16 %v533
        %v787 = vunpack.c.h.b16 %v533
        %v788 = vunpack.c.l.b16 %v534
        %v789 = vunpack.c.h.b16 %v534
        %v790 = vunpack.c.l.b16 %v535
        %v791 = vunpack.c.h.b16 %v535
        %v792 = vunpack.c.l.b16 %v536
        %v793 = vunpack.c.h.b16 %v536
        %v794 = vunpack.c.l.b16 %v537
        %v795 = vunpack.c.h.b16 %v537
        %v796 = vunpack.c.l.b16 %v538
        %v797 = vunpack.c.h.b16 %v538
        %v798 = vunpack.c.l.b16 %v539
        %v799 = vunpack.c.h.b16 %v539
        %v800 = vunpack.c.l.b16 %v540
        %v801 = vunpack.c.h.b16 %v540
        %v802 = vunpack.c.l.b16 %v541
        %v803 = vunpack.c.h.b16 %v541
        %v804 = vunpack.c.l.b16 %v542
        %v805 = vunpack.c.h.b16 %v542
        %v806 = vunpack.c.l.b16 %v543
        %v807 = vunpack.c.h.b16 %v543
        %v808 = vunpack.c.l.b16 %v544
        %v809 = vunpack.c.h.b16 %v544
        %v810 = vunpack.c.l.b16 %v545
        %v811 = vunpack.c.h.b16 %v545
        %v812 = vunpack.c.l.b16 %v546
        %v813 = vunpack.c.h.b16 %v546
        %v814 = vunpack.c.l.b16 %v547
        %v815 = vunpack.c.h.b16 %v547
        %v816 = vunpack.c.l.b16 %v548
        %v817 = vunpack.c.h.b16 %v548
        %v818 = vunpack.c.l.b16 %v549
        %v819 = vunpack.c.h.b16 %v549
        %v820 = vunpack.c.l.b16 %v550
        %v821 = vunpack.c.h.b16 %v550
        %v822 = vunpack.c.l.b16 %v551
        %v823 = vunpack.c.h.b16 %v551
        %v824 = vunpack.c.l.b16 %v552
        %v825 = vunpack.c.h.b16 %v552
        %v826 = vunpack.c.l.b16 %v553
        %v827 = vunpack.c.h.b16 %v553
        %v828 = vunpack.c.l.b16 %v554
        %v829 = vunpack.c.h.b16 %v554
        %v830 = vunpack.c.l.b16 %v555
        %v831 = vunpack.c.h.b16 %v555
        %v832 = vunpack.c.l.b16 %v556
        %v833 = vunpack.c.h.b16 %v556
        %v834 = vunpack.c.l.b16 %v557
        %v835 = vunpack.c.h.b16 %v557
        %v836 = vpack.c.b16 %v710, %v708
        %v837 = vpack.c.b16 %v711, %v709
        %v838 = vpack.c.b16 %v714, %v712
        %v839 = vpack.c.b16 %v715, %v713
        %v840 = vpack.c.b16 %v718, %v716
        %v841 = vpack.c.b16 %v719, %v717
        %v842 = vpack.c.b16 %v722, %v720
        %v843 = vpack.c.b16 %v723, %v721
        %v844 = vpack.c.b16 %v726, %v724
        %v845 = vpack.c.b16 %v727, %v725
        %v846 = vpack.c.b16 %v730, %v728
        %v847 = vpack.c.b16 %v731, %v729
        %v848 = vpack.c.b16 %v734, %v732
        %v849 = vpack.c.b16 %v735, %v733
        %v850 = vpack.c.b16 %v738, %v736
        %v851 = vpack.c.b16 %v739, %v737
        %v852 = vpack.c.b16 %v742, %v740
        %v853 = vpack.c.b16 %v743, %v741
        %v854 = vpack.c.b16 %v746, %v744
        %v855 = vpack.c.b16 %v747, %v745
        %v856 = vpack.c.b16 %v750, %v748
        %v857 = vpack.c.b16 %v751, %v749
        %v858 = vpack.c.b16 %v754, %v752
        %v859 = vpack.c.b16 %v755, %v753
        %v860 = vpack.c.b16 %v758, %v756
        %v861 = vpack.c.b16 %v759, %v757
        %v862 = vpack.c.b16 %v762, %v760
        %v863 = vpack.c.b16 %v763, %v761
        %v864 = vpack.c.b16 %v766, %v764
        %v865 = vpack.c.b16 %v767, %v765
        %v866 = vpack.c.b16 %v770, %v768
        %v867 = vpack.c.b16 %v771, %v769
        %v868 = vpack.c.b16 %v774, %v772
        %v869 = vpack.c.b16 %v775, %v773
        %v870 = vpack.c.b16 %v778, %v776
        %v871 = vpack.c.b16 %v779, %v777
        %v872 = vpack.c.b16 %v782, %v780
        %v873 = vpack.c.b16 %v783, %v781
        %v874 = vpack.c.b16 %v786, %v784
        %v875 = vpack.c.b16 %v787, %v785
        %v876 = vpack.c.b16 %v790, %v788
        %v877 = vpack.c.b16 %v791, %v789
        %v878 = vpack.c.b16 %v794, %v792
        %v879 = vpack.c.b16 %v795, %v793
        %v880 = vpack.c.b16 %v798, %v796
        %v881 = vpack.c.b16 %v799, %v797
        %v882 = vpack.c.b16 %v802, %v800
        %v883 = vpack.c.b16 %v803, %v801
        %v884 = vpack.c.b16 %v806, %v804
        %v885 = vpack.c.b16 %v807, %v805
        %v886 = vpack.c.b16 %v810, %v808
        %v887 = vpack.c.b16 %v811, %v809
        %v888 = vpack.c.b16 %v814, %v812
        %v889 = vpack.c.b16 %v815, %v813
        %v890 = vpack.c.b16 %v818, %v816
        %v891 = vpack.c.b16 %v819, %v817
        %v892 = vpack.c.b16 %v822, %v820
        %v893 = vpack.c.b16 %v823, %v821
        %v894 = vpack.c.b16 %v826, %v824
        %v895 = vpack.c.b16 %v827, %v825
        %v896 = vpack.c.b16 %v830, %v828
        %v897 = vpack.c.b16 %v831, %v829
        %v898 = vpack.c.b16 %v834, %v832
        %v899 = vpack.c.b16 %v835, %v833
        %964 = vmatpush.bf16.msra.mxu0 %v850
        %965 = vmatpush.bf16.msra.mxu0 %v848
        %966 = vmatpush.bf16.msra.mxu0 %v846
        %967 = vmatpush.bf16.msra.mxu0 %v844
        %968 = vmatpush.bf16.msra.mxu0 %v842
        %969 = vmatpush.bf16.msra.mxu0 %v840
        %970 = vmatpush.bf16.msra.mxu0 %v838
        %971 = vmatpush.bf16.msra.mxu0 %v836
        %972 = vmatmul.bf16.gmra.mxu0 %v612
        %v973 = vpop.f32.mrf.mxu0
        %v974 = vadd.f32 %v560, %v973
        %v975 = vpop.f32.mrf.mxu0
        %v976 = vadd.f32 %v560, %v975
        %977 = vmatmul.bf16.gmra.mxu0 %v616
        %v978 = vpop.f32.mrf.mxu0
        %v979 = vadd.f32 %v560, %v978
        %v980 = vpop.f32.mrf.mxu0
        %v981 = vadd.f32 %v560, %v980
        %982 = vmatmul.bf16.gmra.mxu0 %v620
        %v983 = vpop.f32.mrf.mxu0
        %v984 = vadd.f32 %v560, %v983
        %v985 = vpop.f32.mrf.mxu0
        %v986 = vadd.f32 %v560, %v985
        %987 = vmatmul.bf16.gmra.mxu0 %v624
        %v988 = vpop.f32.mrf.mxu0
        %v989 = vadd.f32 %v560, %v988
        %v990 = vpop.f32.mrf.mxu0
        %v991 = vadd.f32 %v560, %v990
        %992 = vdwg.mxu0
        %993 = vmatpush.bf16.msra.mxu0 %v866
        %994 = vmatpush.bf16.msra.mxu0 %v864
        %995 = vmatpush.bf16.msra.mxu0 %v862
        %996 = vmatpush.bf16.msra.mxu0 %v860
        %997 = vmatpush.bf16.msra.mxu0 %v858
        %998 = vmatpush.bf16.msra.mxu0 %v856
        %999 = vmatpush.bf16.msra.mxu0 %v854
        %1000 = vmatpush.bf16.msra.mxu0 %v852
        %1001 = vmatmul.bf16.gmra.mxu0 %v613
        %v1002 = vpop.f32.mrf.mxu0
        %v1003 = vadd.f32 %v974, %v1002
        %v1004 = vpop.f32.mrf.mxu0
        %v1005 = vadd.f32 %v976, %v1004
        %1006 = vmatmul.bf16.gmra.mxu0 %v617
        %v1007 = vpop.f32.mrf.mxu0
        %v1008 = vadd.f32 %v979, %v1007
        %v1009 = vpop.f32.mrf.mxu0
        %v1010 = vadd.f32 %v981, %v1009
        %1011 = vmatmul.bf16.gmra.mxu0 %v621
        %v1012 = vpop.f32.mrf.mxu0
        %v1013 = vadd.f32 %v984, %v1012
        %v1014 = vpop.f32.mrf.mxu0
        %v1015 = vadd.f32 %v986, %v1014
        %1016 = vmatmul.bf16.gmra.mxu0 %v625
        %v1017 = vpop.f32.mrf.mxu0
        %v1018 = vadd.f32 %v989, %v1017
        %v1019 = vpop.f32.mrf.mxu0
        %v1020 = vadd.f32 %v991, %v1019
        %1021 = vdwg.mxu0
        %1022 = vmatpush.bf16.msra.mxu0 %v882
        %1023 = vmatpush.bf16.msra.mxu0 %v880
        %1024 = vmatpush.bf16.msra.mxu0 %v878
        %1025 = vmatpush.bf16.msra.mxu0 %v876
        %1026 = vmatpush.bf16.msra.mxu0 %v874
        %1027 = vmatpush.bf16.msra.mxu0 %v872
        %1028 = vmatpush.bf16.msra.mxu0 %v870
        %1029 = vmatpush.bf16.msra.mxu0 %v868
        %1030 = vmatmul.bf16.gmra.mxu0 %v614
        %v1031 = vpop.f32.mrf.mxu0
        %v1032 = vadd.f32 %v1003, %v1031
        %v1033 = vpop.f32.mrf.mxu0
        %v1034 = vadd.f32 %v1005, %v1033
        %1035 = vmatmul.bf16.gmra.mxu0 %v618
        %v1036 = vpop.f32.mrf.mxu0
        %v1037 = vadd.f32 %v1008, %v1036
        %v1038 = vpop.f32.mrf.mxu0
        %v1039 = vadd.f32 %v1010, %v1038
        %1040 = vmatmul.bf16.gmra.mxu0 %v622
        %v1041 = vpop.f32.mrf.mxu0
        %v1042 = vadd.f32 %v1013, %v1041
        %v1043 = vpop.f32.mrf.mxu0
        %v1044 = vadd.f32 %v1015, %v1043
        %1045 = vmatmul.bf16.gmra.mxu0 %v626
        %v1046 = vpop.f32.mrf.mxu0
        %v1047 = vadd.f32 %v1018, %v1046
        %v1048 = vpop.f32.mrf.mxu0
        %v1049 = vadd.f32 %v1020, %v1048
        %1050 = vdwg.mxu0
        %1051 = vmatpush.bf16.msra.mxu0 %v898
        %1052 = vmatpush.bf16.msra.mxu0 %v896
        %1053 = vmatpush.bf16.msra.mxu0 %v894
        %1054 = vmatpush.bf16.msra.mxu0 %v892
        %1055 = vmatpush.bf16.msra.mxu0 %v890
        %1056 = vmatpush.bf16.msra.mxu0 %v888
        %1057 = vmatpush.bf16.msra.mxu0 %v886
        %1058 = vmatpush.bf16.msra.mxu0 %v884
        %1059 = vmatmul.bf16.gmra.mxu0 %v615
        %v1060 = vpop.f32.mrf.mxu0
        %v1061 = vadd.f32 %v1032, %v1060
        %v1062 = vpop.f32.mrf.mxu0
        %v1063 = vadd.f32 %v1034, %v1062
        %1064 = vmatmul.bf16.gmra.mxu0 %v619
        %v1065 = vpop.f32.mrf.mxu0
        %v1066 = vadd.f32 %v1037, %v1065
        %v1067 = vpop.f32.mrf.mxu0
        %v1068 = vadd.f32 %v1039, %v1067
        %1069 = vmatmul.bf16.gmra.mxu0 %v623
        %v1070 = vpop.f32.mrf.mxu0
        %v1071 = vadd.f32 %v1042, %v1070
        %v1072 = vpop.f32.mrf.mxu0
        %v1073 = vadd.f32 %v1044, %v1072
        %1074 = vmatmul.bf16.gmra.mxu0 %v627
        %v1075 = vpop.f32.mrf.mxu0
        %v1076 = vadd.f32 %v1047, %v1075
        %v1077 = vpop.f32.mrf.mxu0
        %v1078 = vadd.f32 %v1049, %v1077
        %1079 = vdwg.mxu0
        %1080 = vmatpush.bf16.msra.mxu0 %v851
        %1081 = vmatpush.bf16.msra.mxu0 %v849
        %1082 = vmatpush.bf16.msra.mxu0 %v847
        %1083 = vmatpush.bf16.msra.mxu0 %v845
        %1084 = vmatpush.bf16.msra.mxu0 %v843
        %1085 = vmatpush.bf16.msra.mxu0 %v841
        %1086 = vmatpush.bf16.msra.mxu0 %v839
        %1087 = vmatpush.bf16.msra.mxu0 %v837
        %1088 = vmatmul.bf16.gmra.mxu0 %v612
        %v1089 = vpop.f32.mrf.mxu0
        %v1090 = vadd.f32 %v561, %v1089
        %v1091 = vpop.f32.mrf.mxu0
        %v1092 = vadd.f32 %v561, %v1091
        %1093 = vmatmul.bf16.gmra.mxu0 %v616
        %v1094 = vpop.f32.mrf.mxu0
        %v1095 = vadd.f32 %v561, %v1094
        %v1096 = vpop.f32.mrf.mxu0
        %v1097 = vadd.f32 %v561, %v1096
        %1098 = vmatmul.bf16.gmra.mxu0 %v620
        %v1099 = vpop.f32.mrf.mxu0
        %v1100 = vadd.f32 %v561, %v1099
        %v1101 = vpop.f32.mrf.mxu0
        %v1102 = vadd.f32 %v561, %v1101
        %1103 = vmatmul.bf16.gmra.mxu0 %v624
        %v1104 = vpop.f32.mrf.mxu0
        %v1105 = vadd.f32 %v561, %v1104
        %v1106 = vpop.f32.mrf.mxu0
        %v1107 = vadd.f32 %v561, %v1106
        %1108 = vdwg.mxu0
        %1109 = vmatpush.bf16.msra.mxu0 %v867
        %1110 = vmatpush.bf16.msra.mxu0 %v865
        %1111 = vmatpush.bf16.msra.mxu0 %v863
        %1112 = vmatpush.bf16.msra.mxu0 %v861
        %1113 = vmatpush.bf16.msra.mxu0 %v859
        %1114 = vmatpush.bf16.msra.mxu0 %v857
        %1115 = vmatpush.bf16.msra.mxu0 %v855
        %1116 = vmatpush.bf16.msra.mxu0 %v853
        %1117 = vmatmul.bf16.gmra.mxu0 %v613
        %v1118 = vpop.f32.mrf.mxu0
        %v1119 = vadd.f32 %v1090, %v1118
        %v1120 = vpop.f32.mrf.mxu0
        %v1121 = vadd.f32 %v1092, %v1120
        %1122 = vmatmul.bf16.gmra.mxu0 %v617
        %v1123 = vpop.f32.mrf.mxu0
        %v1124 = vadd.f32 %v1095, %v1123
        %v1125 = vpop.f32.mrf.mxu0
        %v1126 = vadd.f32 %v1097, %v1125
        %1127 = vmatmul.bf16.gmra.mxu0 %v621
        %v1128 = vpop.f32.mrf.mxu0
        %v1129 = vadd.f32 %v1100, %v1128
        %v1130 = vpop.f32.mrf.mxu0
        %v1131 = vadd.f32 %v1102, %v1130
        %1132 = vmatmul.bf16.gmra.mxu0 %v625
        %v1133 = vpop.f32.mrf.mxu0
        %v1134 = vadd.f32 %v1105, %v1133
        %v1135 = vpop.f32.mrf.mxu0
        %v1136 = vadd.f32 %v1107, %v1135
        %1137 = vdwg.mxu0
        %1138 = vmatpush.bf16.msra.mxu0 %v883
        %1139 = vmatpush.bf16.msra.mxu0 %v881
        %1140 = vmatpush.bf16.msra.mxu0 %v879
        %1141 = vmatpush.bf16.msra.mxu0 %v877
        %1142 = vmatpush.bf16.msra.mxu0 %v875
        %1143 = vmatpush.bf16.msra.mxu0 %v873
        %1144 = vmatpush.bf16.msra.mxu0 %v871
        %1145 = vmatpush.bf16.msra.mxu0 %v869
        %1146 = vmatmul.bf16.gmra.mxu0 %v614
        %v1147 = vpop.f32.mrf.mxu0
        %v1148 = vadd.f32 %v1119, %v1147
        %v1149 = vpop.f32.mrf.mxu0
        %v1150 = vadd.f32 %v1121, %v1149
        %1151 = vmatmul.bf16.gmra.mxu0 %v618
        %v1152 = vpop.f32.mrf.mxu0
        %v1153 = vadd.f32 %v1124, %v1152
        %v1154 = vpop.f32.mrf.mxu0
        %v1155 = vadd.f32 %v1126, %v1154
        %1156 = vmatmul.bf16.gmra.mxu0 %v622
        %v1157 = vpop.f32.mrf.mxu0
        %v1158 = vadd.f32 %v1129, %v1157
        %v1159 = vpop.f32.mrf.mxu0
        %v1160 = vadd.f32 %v1131, %v1159
        %1161 = vmatmul.bf16.gmra.mxu0 %v626
        %v1162 = vpop.f32.mrf.mxu0
        %v1163 = vadd.f32 %v1134, %v1162
        %v1164 = vpop.f32.mrf.mxu0
        %v1165 = vadd.f32 %v1136, %v1164
        %1166 = vdwg.mxu0
        %1167 = vmatpush.bf16.msra.mxu0 %v899
        %1168 = vmatpush.bf16.msra.mxu0 %v897
        %1169 = vmatpush.bf16.msra.mxu0 %v895
        %1170 = vmatpush.bf16.msra.mxu0 %v893
        %1171 = vmatpush.bf16.msra.mxu0 %v891
        %1172 = vmatpush.bf16.msra.mxu0 %v889
        %1173 = vmatpush.bf16.msra.mxu0 %v887
        %1174 = vmatpush.bf16.msra.mxu0 %v885
        %1175 = vmatmul.bf16.gmra.mxu0 %v615
        %v1176 = vpop.f32.mrf.mxu0
        %v1177 = vadd.f32 %v1148, %v1176
        %v1178 = vpop.f32.mrf.mxu0
        %v1179 = vadd.f32 %v1150, %v1178
        %1180 = vmatmul.bf16.gmra.mxu0 %v619
        %v1181 = vpop.f32.mrf.mxu0
        %v1182 = vadd.f32 %v1153, %v1181
        %v1183 = vpop.f32.mrf.mxu0
        %v1184 = vadd.f32 %v1155, %v1183
        %1185 = vmatmul.bf16.gmra.mxu0 %v623
        %v1186 = vpop.f32.mrf.mxu0
        %v1187 = vadd.f32 %v1158, %v1186
        %v1188 = vpop.f32.mrf.mxu0
        %v1189 = vadd.f32 %v1160, %v1188
        %1190 = vmatmul.bf16.gmra.mxu0 %v627
        %v1191 = vpop.f32.mrf.mxu0
        %v1192 = vadd.f32 %v1163, %v1191
        %v1193 = vpop.f32.mrf.mxu0
        %v1194 = vadd.f32 %v1165, %v1193
        %1195 = vdwg.mxu0
        %v1196 = vmax.f32 %v1061, 0.0
        %v1197 = vmax.f32 %v1177, 0.0
        %v1198 = vmax.f32 %v1063, 0.0
        %v1199 = vmax.f32 %v1179, 0.0
        %v1200 = vmax.f32 %v1066, 0.0
        %v1201 = vmax.f32 %v1182, 0.0
        %v1202 = vmax.f32 %v1068, 0.0
        %v1203 = vmax.f32 %v1184, 0.0
        %v1204 = vmax.f32 %v1071, 0.0
        %v1205 = vmax.f32 %v1187, 0.0
        %v1206 = vmax.f32 %v1073, 0.0
        %v1207 = vmax.f32 %v1189, 0.0
        %v1208 = vmax.f32 %v1076, 0.0
        %v1209 = vmax.f32 %v1192, 0.0
        %v1210 = vmax.f32 %v1078, 0.0
        %v1211 = vmax.f32 %v1194, 0.0
        %v1212 = vpack.c.bf16 %v1198, %v1196
        %v1213 = vpack.c.bf16 %v1199, %v1197
        %v1214 = vpack.c.bf16 %v1202, %v1200
        %v1215 = vpack.c.bf16 %v1203, %v1201
        %v1216 = vpack.c.bf16 %v1206, %v1204
        %v1217 = vpack.c.bf16 %v1207, %v1205
        %v1218 = vpack.c.bf16 %v1210, %v1208
        %v1219 = vpack.c.bf16 %v1211, %v1209
        %v1220 = vld [vmem:[%s3] sm:$0xf]
        %v1221 = vld [vmem:[%s3 + $0x4] sm:$0xf]
        %v1222 = vld [vmem:[%s3 + $0x8] sm:$0xf]
        %v1223 = vld [vmem:[%s3 + $0xc] sm:$0xf]
        %v1224 = vld [vmem:[%s3 + $0x10] sm:$0xf]
        %v1225 = vld [vmem:[%s3 + $0x14] sm:$0xf]
        %v1226 = vld [vmem:[%s3 + $0x18] sm:$0xf]
        %v1227 = vld [vmem:[%s3 + $0x1c] sm:$0xf]
        %v1228 = vld [vmem:[%s3 + $0x20] sm:$0xf]
        %v1229 = vld [vmem:[%s3 + $0x24] sm:$0xf]
        %v1230 = vld [vmem:[%s3 + $0x28] sm:$0xf]
        %v1231 = vld [vmem:[%s3 + $0x2c] sm:$0xf]
        %v1232 = vld [vmem:[%s3 + $0x30] sm:$0xf]
        %v1233 = vld [vmem:[%s3 + $0x34] sm:$0xf]
        %v1234 = vld [vmem:[%s3 + $0x38] sm:$0xf]
        %v1235 = vld [vmem:[%s3 + $0x3c] sm:$0xf]
        %v1236 = vld [vmem:[%s3 + $0x40] sm:$0xf]
        %v1237 = vld [vmem:[%s3 + $0x44] sm:$0xf]
        %v1238 = vld [vmem:[%s3 + $0x48] sm:$0xf]
        %v1239 = vld [vmem:[%s3 + $0x4c] sm:$0xf]
        %v1240 = vld [vmem:[%s3 + $0x50] sm:$0xf]
        %v1241 = vld [vmem:[%s3 + $0x54] sm:$0xf]
        %v1242 = vld [vmem:[%s3 + $0x58] sm:$0xf]
        %v1243 = vld [vmem:[%s3 + $0x5c] sm:$0xf]
        %v1244 = vld [vmem:[%s3 + $0x60] sm:$0xf]
        %v1245 = vld [vmem:[%s3 + $0x64] sm:$0xf]
        %v1246 = vld [vmem:[%s3 + $0x68] sm:$0xf]
        %v1247 = vld [vmem:[%s3 + $0x6c] sm:$0xf]
        %v1248 = vld [vmem:[%s3 + $0x70] sm:$0xf]
        %v1249 = vld [vmem:[%s3 + $0x74] sm:$0xf]
        %v1250 = vld [vmem:[%s3 + $0x78] sm:$0xf]
        %v1251 = vld [vmem:[%s3 + $0x7c] sm:$0xf]
        %v1252 = vld [vmem:[%s4] sm:$0x1]
        %v1254 = vperm.slane %v1252, 0
        %v1288 = vunpack.c.l.b16 %v1220
        %v1289 = vunpack.c.l.b16 %v1221
        %v1290 = vunpack.c.l.b16 %v1222
        %v1291 = vunpack.c.l.b16 %v1223
        %v1292 = vunpack.c.l.b16 %v1224
        %v1293 = vunpack.c.l.b16 %v1225
        %v1294 = vunpack.c.l.b16 %v1226
        %v1295 = vunpack.c.l.b16 %v1227
        %v1296 = vunpack.c.l.b16 %v1228
        %v1297 = vunpack.c.l.b16 %v1229
        %v1298 = vunpack.c.l.b16 %v1230
        %v1299 = vunpack.c.l.b16 %v1231
        %v1300 = vunpack.c.l.b16 %v1232
        %v1301 = vunpack.c.l.b16 %v1233
        %v1302 = vunpack.c.l.b16 %v1234
        %v1303 = vunpack.c.l.b16 %v1235
        %v1304 = vunpack.c.l.b16 %v1236
        %v1305 = vunpack.c.l.b16 %v1237
        %v1306 = vunpack.c.l.b16 %v1238
        %v1307 = vunpack.c.l.b16 %v1239
        %v1308 = vunpack.c.l.b16 %v1240
        %v1309 = vunpack.c.l.b16 %v1241
        %v1310 = vunpack.c.l.b16 %v1242
        %v1311 = vunpack.c.l.b16 %v1243
        %v1312 = vunpack.c.l.b16 %v1244
        %v1313 = vunpack.c.l.b16 %v1245
        %v1314 = vunpack.c.l.b16 %v1246
        %v1315 = vunpack.c.l.b16 %v1247
        %v1316 = vunpack.c.l.b16 %v1248
        %v1317 = vunpack.c.l.b16 %v1249
        %v1318 = vunpack.c.l.b16 %v1250
        %v1319 = vunpack.c.l.b16 %v1251
        %v1320 = vpack.c.b16 %v1289, %v1288
        %v1321 = vpack.c.b16 %v1291, %v1290
        %v1322 = vpack.c.b16 %v1293, %v1292
        %v1323 = vpack.c.b16 %v1295, %v1294
        %v1324 = vpack.c.b16 %v1297, %v1296
        %v1325 = vpack.c.b16 %v1299, %v1298
        %v1326 = vpack.c.b16 %v1301, %v1300
        %v1327 = vpack.c.b16 %v1303, %v1302
        %v1328 = vpack.c.b16 %v1305, %v1304
        %v1329 = vpack.c.b16 %v1307, %v1306
        %v1330 = vpack.c.b16 %v1309, %v1308
        %v1331 = vpack.c.b16 %v1311, %v1310
        %v1332 = vpack.c.b16 %v1313, %v1312
        %v1333 = vpack.c.b16 %v1315, %v1314
        %v1334 = vpack.c.b16 %v1317, %v1316
        %v1335 = vpack.c.b16 %v1319, %v1318
        %1352 = vmatpush.bf16.msra.mxu0 %v1327
        %1353 = vmatpush.bf16.msra.mxu0 %v1326
        %1354 = vmatpush.bf16.msra.mxu0 %v1325
        %1355 = vmatpush.bf16.msra.mxu0 %v1324
        %1356 = vmatpush.bf16.msra.mxu0 %v1323
        %1357 = vmatpush.bf16.msra.mxu0 %v1322
        %1358 = vmatpush.bf16.msra.mxu0 %v1321
        %1359 = vmatpush.bf16.msra.mxu0 %v1320
        %1360 = vmatmul.bf16.gmra.mxu0 %v1212
        %v1361 = vpop.f32.mrf.mxu0
        %v1362 = vadd.f32 %v1254, %v1361
        %v1363 = vpop.f32.mrf.mxu0
        %v1364 = vadd.f32 %v1254, %v1363
        %1365 = vmatmul.bf16.gmra.mxu0 %v1214
        %v1366 = vpop.f32.mrf.mxu0
        %v1367 = vadd.f32 %v1254, %v1366
        %v1368 = vpop.f32.mrf.mxu0
        %v1369 = vadd.f32 %v1254, %v1368
        %1370 = vmatmul.bf16.gmra.mxu0 %v1216
        %v1371 = vpop.f32.mrf.mxu0
        %v1372 = vadd.f32 %v1254, %v1371
        %v1373 = vpop.f32.mrf.mxu0
        %v1374 = vadd.f32 %v1254, %v1373
        %1375 = vmatmul.bf16.gmra.mxu0 %v1218
        %v1376 = vpop.f32.mrf.mxu0
        %v1377 = vadd.f32 %v1254, %v1376
        %v1378 = vpop.f32.mrf.mxu0
        %v1379 = vadd.f32 %v1254, %v1378
        %1380 = vdwg.mxu0
        %1381 = vmatpush.bf16.msra.mxu0 %v1335
        %1382 = vmatpush.bf16.msra.mxu0 %v1334
        %1383 = vmatpush.bf16.msra.mxu0 %v1333
        %1384 = vmatpush.bf16.msra.mxu0 %v1332
        %1385 = vmatpush.bf16.msra.mxu0 %v1331
        %1386 = vmatpush.bf16.msra.mxu0 %v1330
        %1387 = vmatpush.bf16.msra.mxu0 %v1329
        %1388 = vmatpush.bf16.msra.mxu0 %v1328
        %1389 = vmatmul.bf16.gmra.mxu0 %v1213
        %v1390 = vpop.f32.mrf.mxu0
        %v1391 = vadd.f32 %v1362, %v1390
        %v1392 = vpop.f32.mrf.mxu0
        %v1393 = vadd.f32 %v1364, %v1392
        %1394 = vmatmul.bf16.gmra.mxu0 %v1215
        %v1395 = vpop.f32.mrf.mxu0
        %v1396 = vadd.f32 %v1367, %v1395
        %v1397 = vpop.f32.mrf.mxu0
        %v1398 = vadd.f32 %v1369, %v1397
        %1399 = vmatmul.bf16.gmra.mxu0 %v1217
        %v1400 = vpop.f32.mrf.mxu0
        %v1401 = vadd.f32 %v1372, %v1400
        %v1402 = vpop.f32.mrf.mxu0
        %v1403 = vadd.f32 %v1374, %v1402
        %1404 = vmatmul.bf16.gmra.mxu0 %v1219
        %v1405 = vpop.f32.mrf.mxu0
        %v1406 = vadd.f32 %v1377, %v1405
        %v1407 = vpop.f32.mrf.mxu0
        %v1408 = vadd.f32 %v1379, %v1407
        %1409 = vdwg.mxu0
        %v1410 = vld [vmem:[%s473] sm:$0xff]
        %v1411 = vld [vmem:[%s473 + $0x8] sm:$0xff]
        %v1412 = vld [vmem:[%s473 + $0x10] sm:$0xff]
        %v1413 = vld [vmem:[%s473 + $0x18] sm:$0xff]
        %v1414 = vld [vmem:[%s473 + $0x20] sm:$0xff]
        %v1415 = vld [vmem:[%s473 + $0x28] sm:$0xff]
        %v1416 = vld [vmem:[%s473 + $0x30] sm:$0xff]
        %v1417 = vld [vmem:[%s473 + $0x38] sm:$0xff]
        %v1418 = vmul.f32 %v1391, 0.5
        %v1419 = vmul.f32 %v1393, 0.5
        %v1420 = vmul.f32 %v1396, 0.5
        %v1421 = vmul.f32 %v1398, 0.5
        %v1422 = vmul.f32 %v1401, 0.5
        %v1423 = vmul.f32 %v1403, 0.5
        %v1424 = vmul.f32 %v1406, 0.5
        %v1425 = vmul.f32 %v1408, 0.5
        %v1426 = vmul.f32 %v1418, 1.442695
        %v1427 = vpow.pop %v1426
        %v1428 = vmul.f32 %v1419, 1.442695
        %v1429 = vpow.pop %v1428
        %v1430 = vmul.f32 %v1420, 1.442695
        %v1431 = vpow.pop %v1430
        %v1432 = vmul.f32 %v1421, 1.442695
        %v1433 = vpow.pop %v1432
        %v1434 = vmul.f32 %v1422, 1.442695
        %v1435 = vpow.pop %v1434
        %v1436 = vmul.f32 %v1423, 1.442695
        %v1437 = vpow.pop %v1436
        %v1438 = vmul.f32 %v1424, 1.442695
        %v1439 = vpow.pop %v1438
        %v1440 = vmul.f32 %v1425, 1.442695
        %v1441 = vpow.pop %v1440
        %1450 = vrot.lane.b32.xlu0 %v1427, 96
        %v1451 = vpop.permute.xlu0 %1450
        %1452 = vrot.lane.b32.xlu0 %v1429, 96
        %v1453 = vpop.permute.xlu0 %1452
        %1454 = vrot.lane.b32.xlu0 %v1431, 96
        %v1455 = vpop.permute.xlu0 %1454
        %1456 = vrot.lane.b32.xlu0 %v1433, 96
        %v1457 = vpop.permute.xlu0 %1456
        %1458 = vrot.lane.b32.xlu0 %v1435, 96
        %v1459 = vpop.permute.xlu0 %1458
        %1460 = vrot.lane.b32.xlu0 %v1437, 96
        %v1461 = vpop.permute.xlu0 %1460
        %1462 = vrot.lane.b32.xlu0 %v1439, 96
        %v1463 = vpop.permute.xlu0 %1462
        %1464 = vrot.lane.b32.xlu0 %v1441, 96
        %v1465 = vpop.permute.xlu0 %1464
        %v1474 = vmul.f32 %v1410, %v1451
        %v1475 = vmul.f32 %v1411, %v1453
        %v1476 = vmul.f32 %v1412, %v1455
        %v1477 = vmul.f32 %v1413, %v1457
        %v1478 = vmul.f32 %v1414, %v1459
        %v1479 = vmul.f32 %v1415, %v1461
        %v1480 = vmul.f32 %v1416, %v1463
        %v1481 = vmul.f32 %v1417, %v1465
        %v1482 = vadd.f32 %v1391, %v1474
        %v1483 = vadd.f32 %v1393, %v1475
        %v1484 = vadd.f32 %v1396, %v1476
        %v1485 = vadd.f32 %v1398, %v1477
        %v1486 = vadd.f32 %v1401, %v1478
        %v1487 = vadd.f32 %v1403, %v1479
        %v1488 = vadd.f32 %v1406, %v1480
        %v1489 = vadd.f32 %v1408, %v1481
        %v1490 = vpack.c.bf16 %v1483, %v1482
        %v1491 = vpack.c.bf16 %v1485, %v1484
        %v1492 = vpack.c.bf16 %v1487, %v1486
        %v1493 = vpack.c.bf16 %v1489, %v1488
        %v1494 = vld [vmem:[%s6] sm:$0xff]
        %v1495 = vld [vmem:[%s6 + $0x8] sm:$0xff]
        %v1496 = vld [vmem:[%s6 + $0x10] sm:$0xff]
        %v1497 = vld [vmem:[%s6 + $0x18] sm:$0xff]
        %v1498 = vld [vmem:[%s7] sm:$0x3]
        %v1500 = vperm.slane %v1498, 0
        %v1501 = vperm.slane %v1498, 1
        %v1508 = vunpack.c.l.b16 %v1494
        %v1509 = vunpack.c.h.b16 %v1494
        %v1510 = vunpack.c.l.b16 %v1495
        %v1511 = vunpack.c.h.b16 %v1495
        %v1512 = vunpack.c.l.b16 %v1496
        %v1513 = vunpack.c.h.b16 %v1496
        %v1514 = vunpack.c.l.b16 %v1497
        %v1515 = vunpack.c.h.b16 %v1497
        %v1516 = vpack.c.b16 %v1510, %v1508
        %v1517 = vpack.c.b16 %v1511, %v1509
        %v1518 = vpack.c.b16 %v1514, %v1512
        %v1519 = vpack.c.b16 %v1515, %v1513
        %vm1524 = vcmask 261120
        %v1526 = vsel %vm1524, %v1490, 0
        %v1529 = vsel %vm1524, %v1491, 0
        %v1532 = vsel %vm1524, %v1492, 0
        %v1535 = vsel %vm1524, %v1493, 0
        %1537 = vmatpush.bf16.msra.mxu0 0
        %1538 = vmatpush.bf16.msra.mxu0 0
        %1539 = vmatpush.bf16.msra.mxu0 0
        %1540 = vmatpush.bf16.msra.mxu0 0
        %1541 = vmatpush.bf16.msra.mxu0 0
        %1542 = vmatpush.bf16.msra.mxu0 0
        %1543 = vmatpush.bf16.msra.mxu0 %v1518
        %1544 = vmatpush.bf16.msra.mxu0 %v1516
        %1545 = vmatmul.bf16.gmra.mxu0 %v1526
        %v1546 = vpop.f32.mrf.mxu0
        %v1547 = vadd.f32 %v1500, %v1546
        %v1548 = vpop.f32.mrf.mxu0
        %v1549 = vadd.f32 %v1500, %v1548
        %1550 = vmatmul.bf16.gmra.mxu0 %v1529
        %v1551 = vpop.f32.mrf.mxu0
        %v1552 = vadd.f32 %v1500, %v1551
        %v1553 = vpop.f32.mrf.mxu0
        %v1554 = vadd.f32 %v1500, %v1553
        %1555 = vmatmul.bf16.gmra.mxu0 %v1532
        %v1556 = vpop.f32.mrf.mxu0
        %v1557 = vadd.f32 %v1500, %v1556
        %v1558 = vpop.f32.mrf.mxu0
        %v1559 = vadd.f32 %v1500, %v1558
        %1560 = vmatmul.bf16.gmra.mxu0 %v1535
        %v1561 = vpop.f32.mrf.mxu0
        %v1562 = vadd.f32 %v1500, %v1561
        %v1563 = vpop.f32.mrf.mxu0
        %v1564 = vadd.f32 %v1500, %v1563
        %1565 = vdwg.mxu0
        %1566 = vmatpush.bf16.msra.mxu0 0
        %1567 = vmatpush.bf16.msra.mxu0 0
        %1568 = vmatpush.bf16.msra.mxu0 0
        %1569 = vmatpush.bf16.msra.mxu0 0
        %1570 = vmatpush.bf16.msra.mxu0 0
        %1571 = vmatpush.bf16.msra.mxu0 0
        %1572 = vmatpush.bf16.msra.mxu0 %v1519
        %1573 = vmatpush.bf16.msra.mxu0 %v1517
        %1574 = vmatmul.bf16.gmra.mxu0 %v1526
        %v1575 = vpop.f32.mrf.mxu0
        %v1576 = vadd.f32 %v1501, %v1575
        %v1577 = vpop.f32.mrf.mxu0
        %v1578 = vadd.f32 %v1501, %v1577
        %1579 = vmatmul.bf16.gmra.mxu0 %v1529
        %v1580 = vpop.f32.mrf.mxu0
        %v1581 = vadd.f32 %v1501, %v1580
        %v1582 = vpop.f32.mrf.mxu0
        %v1583 = vadd.f32 %v1501, %v1582
        %1584 = vmatmul.bf16.gmra.mxu0 %v1532
        %v1585 = vpop.f32.mrf.mxu0
        %v1586 = vadd.f32 %v1501, %v1585
        %v1587 = vpop.f32.mrf.mxu0
        %v1588 = vadd.f32 %v1501, %v1587
        %1589 = vmatmul.bf16.gmra.mxu0 %v1535
        %v1590 = vpop.f32.mrf.mxu0
        %v1591 = vadd.f32 %v1501, %v1590
        %v1592 = vpop.f32.mrf.mxu0
        %v1593 = vadd.f32 %v1501, %v1592
        %1594 = vdwg.mxu0
        %v1595 = vmax.f32 %v1547, 0.0
        %v1596 = vmax.f32 %v1576, 0.0
        %v1597 = vmax.f32 %v1549, 0.0
        %v1598 = vmax.f32 %v1578, 0.0
        %v1599 = vmax.f32 %v1552, 0.0
        %v1600 = vmax.f32 %v1581, 0.0
        %v1601 = vmax.f32 %v1554, 0.0
        %v1602 = vmax.f32 %v1583, 0.0
        %v1603 = vmax.f32 %v1557, 0.0
        %v1604 = vmax.f32 %v1586, 0.0
        %v1605 = vmax.f32 %v1559, 0.0
        %v1606 = vmax.f32 %v1588, 0.0
        %v1607 = vmax.f32 %v1562, 0.0
        %v1608 = vmax.f32 %v1591, 0.0
        %v1609 = vmax.f32 %v1564, 0.0
        %v1610 = vmax.f32 %v1593, 0.0
        %v1611 = vpack.c.bf16 %v1597, %v1595
        %v1612 = vpack.c.bf16 %v1598, %v1596
        %v1613 = vpack.c.bf16 %v1601, %v1599
        %v1614 = vpack.c.bf16 %v1602, %v1600
        %v1615 = vpack.c.bf16 %v1605, %v1603
        %v1616 = vpack.c.bf16 %v1606, %v1604
        %v1617 = vpack.c.bf16 %v1609, %v1607
        %v1618 = vpack.c.bf16 %v1610, %v1608
        %v1619 = vld [vmem:[#allocation7] sm:$0xff]
        %v1620 = vld [vmem:[#allocation7 + $0x8] sm:$0xff]
        %v1621 = vld [vmem:[#allocation7 + $0x10] sm:$0xff]
        %v1622 = vld [vmem:[#allocation7 + $0x18] sm:$0xff]
        %v1623 = vld [vmem:[#allocation7 + $0x20] sm:$0xff]
        %v1624 = vld [vmem:[#allocation7 + $0x28] sm:$0xff]
        %v1625 = vld [vmem:[#allocation7 + $0x30] sm:$0xff]
        %v1626 = vld [vmem:[#allocation7 + $0x38] sm:$0xff]
        %v1627 = vld [vmem:[#allocation7 + $0x40] sm:$0xff]
        %v1628 = vld [vmem:[#allocation7 + $0x48] sm:$0xff]
        %v1629 = vld [vmem:[#allocation7 + $0x50] sm:$0xff]
        %v1630 = vld [vmem:[#allocation7 + $0x58] sm:$0xff]
        %v1631 = vld [vmem:[#allocation7 + $0x60] sm:$0xff]
        %v1632 = vld [vmem:[#allocation7 + $0x68] sm:$0xff]
        %v1633 = vld [vmem:[#allocation7 + $0x70] sm:$0xff]
        %v1634 = vld [vmem:[#allocation7 + $0x78] sm:$0xff]
        %v1635 = vld [vmem:[#allocation7 + $0x80] sm:$0xff]
        %v1636 = vld [vmem:[#allocation7 + $0x88] sm:$0xff]
        %v1637 = vld [vmem:[#allocation7 + $0x90] sm:$0xff]
        %v1638 = vld [vmem:[#allocation7 + $0x98] sm:$0xff]
        %v1639 = vld [vmem:[#allocation7 + $0xa0] sm:$0xff]
        %v1640 = vld [vmem:[#allocation7 + $0xa8] sm:$0xff]
        %v1641 = vld [vmem:[#allocation7 + $0xb0] sm:$0xff]
        %v1642 = vld [vmem:[#allocation7 + $0xb8] sm:$0xff]
        %v1643 = vld [vmem:[#allocation7 + $0xc0] sm:$0xff]
        %v1644 = vld [vmem:[#allocation7 + $0xc8] sm:$0xff]
        %v1645 = vld [vmem:[#allocation7 + $0xd0] sm:$0xff]
        %v1646 = vld [vmem:[#allocation7 + $0xd8] sm:$0xff]
        %v1647 = vld [vmem:[#allocation7 + $0xe0] sm:$0xff]
        %v1648 = vld [vmem:[#allocation7 + $0xe8] sm:$0xff]
        %v1649 = vld [vmem:[#allocation7 + $0xf0] sm:$0xff]
        %v1650 = vld [vmem:[#allocation7 + $0xf8] sm:$0xff]
        %v1651 = vld [vmem:[#allocation7 + $0x100] sm:$0xff]
        %v1652 = vld [vmem:[#allocation7 + $0x108] sm:$0xff]
        %v1653 = vld [vmem:[#allocation7 + $0x110] sm:$0xff]
        %v1654 = vld [vmem:[#allocation7 + $0x118] sm:$0xff]
        %v1655 = vld [vmem:[#allocation7 + $0x120] sm:$0xff]
        %v1656 = vld [vmem:[#allocation7 + $0x128] sm:$0xff]
        %v1657 = vld [vmem:[#allocation7 + $0x130] sm:$0xff]
        %v1658 = vld [vmem:[#allocation7 + $0x138] sm:$0xff]
        %v1659 = vld [vmem:[#allocation7 + $0x140] sm:$0xff]
        %v1660 = vld [vmem:[#allocation7 + $0x148] sm:$0xff]
        %v1661 = vld [vmem:[#allocation7 + $0x150] sm:$0xff]
        %v1662 = vld [vmem:[#allocation7 + $0x158] sm:$0xff]
        %v1663 = vld [vmem:[#allocation7 + $0x160] sm:$0xff]
        %v1664 = vld [vmem:[#allocation7 + $0x168] sm:$0xff]
        %v1665 = vld [vmem:[#allocation7 + $0x170] sm:$0xff]
        %v1666 = vld [vmem:[#allocation7 + $0x178] sm:$0xff]
        %v1667 = vld [vmem:[#allocation7 + $0x180] sm:$0xff]
        %v1668 = vld [vmem:[#allocation7 + $0x188] sm:$0xff]
        %v1669 = vld [vmem:[#allocation7 + $0x190] sm:$0xff]
        %v1670 = vld [vmem:[#allocation7 + $0x198] sm:$0xff]
        %v1671 = vld [vmem:[#allocation7 + $0x1a0] sm:$0xff]
        %v1672 = vld [vmem:[#allocation7 + $0x1a8] sm:$0xff]
        %v1673 = vld [vmem:[#allocation7 + $0x1b0] sm:$0xff]
        %v1674 = vld [vmem:[#allocation7 + $0x1b8] sm:$0xff]
        %v1675 = vld [vmem:[#allocation7 + $0x1c0] sm:$0xff]
        %v1676 = vld [vmem:[#allocation7 + $0x1c8] sm:$0xff]
        %v1677 = vld [vmem:[#allocation7 + $0x1d0] sm:$0xff]
        %v1678 = vld [vmem:[#allocation7 + $0x1d8] sm:$0xff]
        %v1679 = vld [vmem:[#allocation7 + $0x1e0] sm:$0xff]
        %v1680 = vld [vmem:[#allocation7 + $0x1e8] sm:$0xff]
        %v1681 = vld [vmem:[#allocation7 + $0x1f0] sm:$0xff]
        %v1682 = vld [vmem:[#allocation7 + $0x1f8] sm:$0xff]
        %v1683 = vld [vmem:[%s9] sm:$0xf]
        %v1685 = vperm.slane %v1683, 0
        %v1686 = vperm.slane %v1683, 1
        %v1687 = vperm.slane %v1683, 2
        %v1688 = vperm.slane %v1683, 3
        %v1757 = vunpack.c.l.b16 %v1619
        %v1758 = vunpack.c.h.b16 %v1619
        %v1759 = vunpack.c.l.b16 %v1620
        %v1760 = vunpack.c.h.b16 %v1620
        %v1761 = vunpack.c.l.b16 %v1621
        %v1762 = vunpack.c.h.b16 %v1621
        %v1763 = vunpack.c.l.b16 %v1622
        %v1764 = vunpack.c.h.b16 %v1622
        %v1765 = vunpack.c.l.b16 %v1623
        %v1766 = vunpack.c.h.b16 %v1623
        %v1767 = vunpack.c.l.b16 %v1624
        %v1768 = vunpack.c.h.b16 %v1624
        %v1769 = vunpack.c.l.b16 %v1625
        %v1770 = vunpack.c.h.b16 %v1625
        %v1771 = vunpack.c.l.b16 %v1626
        %v1772 = vunpack.c.h.b16 %v1626
        %v1773 = vunpack.c.l.b16 %v1627
        %v1774 = vunpack.c.h.b16 %v1627
        %v1775 = vunpack.c.l.b16 %v1628
        %v1776 = vunpack.c.h.b16 %v1628
        %v1777 = vunpack.c.l.b16 %v1629
        %v1778 = vunpack.c.h.b16 %v1629
        %v1779 = vunpack.c.l.b16 %v1630
        %v1780 = vunpack.c.h.b16 %v1630
        %v1781 = vunpack.c.l.b16 %v1631
        %v1782 = vunpack.c.h.b16 %v1631
        %v1783 = vunpack.c.l.b16 %v1632
        %v1784 = vunpack.c.h.b16 %v1632
        %v1785 = vunpack.c.l.b16 %v1633
        %v1786 = vunpack.c.h.b16 %v1633
        %v1787 = vunpack.c.l.b16 %v1634
        %v1788 = vunpack.c.h.b16 %v1634
        %v1789 = vunpack.c.l.b16 %v1635
        %v1790 = vunpack.c.h.b16 %v1635
        %v1791 = vunpack.c.l.b16 %v1636
        %v1792 = vunpack.c.h.b16 %v1636
        %v1793 = vunpack.c.l.b16 %v1637
        %v1794 = vunpack.c.h.b16 %v1637
        %v1795 = vunpack.c.l.b16 %v1638
        %v1796 = vunpack.c.h.b16 %v1638
        %v1797 = vunpack.c.l.b16 %v1639
        %v1798 = vunpack.c.h.b16 %v1639
        %v1799 = vunpack.c.l.b16 %v1640
        %v1800 = vunpack.c.h.b16 %v1640
        %v1801 = vunpack.c.l.b16 %v1641
        %v1802 = vunpack.c.h.b16 %v1641
        %v1803 = vunpack.c.l.b16 %v1642
        %v1804 = vunpack.c.h.b16 %v1642
        %v1805 = vunpack.c.l.b16 %v1643
        %v1806 = vunpack.c.h.b16 %v1643
        %v1807 = vunpack.c.l.b16 %v1644
        %v1808 = vunpack.c.h.b16 %v1644
        %v1809 = vunpack.c.l.b16 %v1645
        %v1810 = vunpack.c.h.b16 %v1645
        %v1811 = vunpack.c.l.b16 %v1646
        %v1812 = vunpack.c.h.b16 %v1646
        %v1813 = vunpack.c.l.b16 %v1647
        %v1814 = vunpack.c.h.b16 %v1647
        %v1815 = vunpack.c.l.b16 %v1648
        %v1816 = vunpack.c.h.b16 %v1648
        %v1817 = vunpack.c.l.b16 %v1649
        %v1818 = vunpack.c.h.b16 %v1649
        %v1819 = vunpack.c.l.b16 %v1650
        %v1820 = vunpack.c.h.b16 %v1650
        %v1821 = vunpack.c.l.b16 %v1651
        %v1822 = vunpack.c.h.b16 %v1651
        %v1823 = vunpack.c.l.b16 %v1652
        %v1824 = vunpack.c.h.b16 %v1652
        %v1825 = vunpack.c.l.b16 %v1653
        %v1826 = vunpack.c.h.b16 %v1653
        %v1827 = vunpack.c.l.b16 %v1654
        %v1828 = vunpack.c.h.b16 %v1654
        %v1829 = vunpack.c.l.b16 %v1655
        %v1830 = vunpack.c.h.b16 %v1655
        %v1831 = vunpack.c.l.b16 %v1656
        %v1832 = vunpack.c.h.b16 %v1656
        %v1833 = vunpack.c.l.b16 %v1657
        %v1834 = vunpack.c.h.b16 %v1657
        %v1835 = vunpack.c.l.b16 %v1658
        %v1836 = vunpack.c.h.b16 %v1658
        %v1837 = vunpack.c.l.b16 %v1659
        %v1838 = vunpack.c.h.b16 %v1659
        %v1839 = vunpack.c.l.b16 %v1660
        %v1840 = vunpack.c.h.b16 %v1660
        %v1841 = vunpack.c.l.b16 %v1661
        %v1842 = vunpack.c.h.b16 %v1661
        %v1843 = vunpack.c.l.b16 %v1662
        %v1844 = vunpack.c.h.b16 %v1662
        %v1845 = vunpack.c.l.b16 %v1663
        %v1846 = vunpack.c.h.b16 %v1663
        %v1847 = vunpack.c.l.b16 %v1664
        %v1848 = vunpack.c.h.b16 %v1664
        %v1849 = vunpack.c.l.b16 %v1665
        %v1850 = vunpack.c.h.b16 %v1665
        %v1851 = vunpack.c.l.b16 %v1666
        %v1852 = vunpack.c.h.b16 %v1666
        %v1853 = vunpack.c.l.b16 %v1667
        %v1854 = vunpack.c.h.b16 %v1667
        %v1855 = vunpack.c.l.b16 %v1668
        %v1856 = vunpack.c.h.b16 %v1668
        %v1857 = vunpack.c.l.b16 %v1669
        %v1858 = vunpack.c.h.b16 %v1669
        %v1859 = vunpack.c.l.b16 %v1670
        %v1860 = vunpack.c.h.b16 %v1670
        %v1861 = vunpack.c.l.b16 %v1671
        %v1862 = vunpack.c.h.b16 %v1671
        %v1863 = vunpack.c.l.b16 %v1672
        %v1864 = vunpack.c.h.b16 %v1672
        %v1865 = vunpack.c.l.b16 %v1673
        %v1866 = vunpack.c.h.b16 %v1673
        %v1867 = vunpack.c.l.b16 %v1674
        %v1868 = vunpack.c.h.b16 %v1674
        %v1869 = vunpack.c.l.b16 %v1675
        %v1870 = vunpack.c.h.b16 %v1675
        %v1871 = vunpack.c.l.b16 %v1676
        %v1872 = vunpack.c.h.b16 %v1676
        %v1873 = vunpack.c.l.b16 %v1677
        %v1874 = vunpack.c.h.b16 %v1677
        %v1875 = vunpack.c.l.b16 %v1678
        %v1876 = vunpack.c.h.b16 %v1678
        %v1877 = vunpack.c.l.b16 %v1679
        %v1878 = vunpack.c.h.b16 %v1679
        %v1879 = vunpack.c.l.b16 %v1680
        %v1880 = vunpack.c.h.b16 %v1680
        %v1881 = vunpack.c.l.b16 %v1681
        %v1882 = vunpack.c.h.b16 %v1681
        %v1883 = vunpack.c.l.b16 %v1682
        %v1884 = vunpack.c.h.b16 %v1682
        %v1885 = vpack.c.b16 %v1761, %v1757
        %v1886 = vpack.c.b16 %v1762, %v1758
        %v1887 = vpack.c.b16 %v1763, %v1759
        %v1888 = vpack.c.b16 %v1764, %v1760
        %v1889 = vpack.c.b16 %v1769, %v1765
        %v1890 = vpack.c.b16 %v1770, %v1766
        %v1891 = vpack.c.b16 %v1771, %v1767
        %v1892 = vpack.c.b16 %v1772, %v1768
        %v1893 = vpack.c.b16 %v1777, %v1773
        %v1894 = vpack.c.b16 %v1778, %v1774
        %v1895 = vpack.c.b16 %v1779, %v1775
        %v1896 = vpack.c.b16 %v1780, %v1776
        %v1897 = vpack.c.b16 %v1785, %v1781
        %v1898 = vpack.c.b16 %v1786, %v1782
        %v1899 = vpack.c.b16 %v1787, %v1783
        %v1900 = vpack.c.b16 %v1788, %v1784
        %v1901 = vpack.c.b16 %v1793, %v1789
        %v1902 = vpack.c.b16 %v1794, %v1790
        %v1903 = vpack.c.b16 %v1795, %v1791
        %v1904 = vpack.c.b16 %v1796, %v1792
        %v1905 = vpack.c.b16 %v1801, %v1797
        %v1906 = vpack.c.b16 %v1802, %v1798
        %v1907 = vpack.c.b16 %v1803, %v1799
        %v1908 = vpack.c.b16 %v1804, %v1800
        %v1909 = vpack.c.b16 %v1809, %v1805
        %v1910 = vpack.c.b16 %v1810, %v1806
        %v1911 = vpack.c.b16 %v1811, %v1807
        %v1912 = vpack.c.b16 %v1812, %v1808
        %v1913 = vpack.c.b16 %v1817, %v1813
        %v1914 = vpack.c.b16 %v1818, %v1814
        %v1915 = vpack.c.b16 %v1819, %v1815
        %v1916 = vpack.c.b16 %v1820, %v1816
        %v1917 = vpack.c.b16 %v1825, %v1821
        %v1918 = vpack.c.b16 %v1826, %v1822
        %v1919 = vpack.c.b16 %v1827, %v1823
        %v1920 = vpack.c.b16 %v1828, %v1824
        %v1921 = vpack.c.b16 %v1833, %v1829
        %v1922 = vpack.c.b16 %v1834, %v1830
        %v1923 = vpack.c.b16 %v1835, %v1831
        %v1924 = vpack.c.b16 %v1836, %v1832
        %v1925 = vpack.c.b16 %v1841, %v1837
        %v1926 = vpack.c.b16 %v1842, %v1838
        %v1927 = vpack.c.b16 %v1843, %v1839
        %v1928 = vpack.c.b16 %v1844, %v1840
        %v1929 = vpack.c.b16 %v1849, %v1845
        %v1930 = vpack.c.b16 %v1850, %v1846
        %v1931 = vpack.c.b16 %v1851, %v1847
        %v1932 = vpack.c.b16 %v1852, %v1848
        %v1933 = vpack.c.b16 %v1857, %v1853
        %v1934 = vpack.c.b16 %v1858, %v1854
        %v1935 = vpack.c.b16 %v1859, %v1855
        %v1936 = vpack.c.b16 %v1860, %v1856
        %v1937 = vpack.c.b16 %v1865, %v1861
        %v1938 = vpack.c.b16 %v1866, %v1862
        %v1939 = vpack.c.b16 %v1867, %v1863
        %v1940 = vpack.c.b16 %v1868, %v1864
        %v1941 = vpack.c.b16 %v1873, %v1869
        %v1942 = vpack.c.b16 %v1874, %v1870
        %v1943 = vpack.c.b16 %v1875, %v1871
        %v1944 = vpack.c.b16 %v1876, %v1872
        %v1945 = vpack.c.b16 %v1881, %v1877
        %v1946 = vpack.c.b16 %v1882, %v1878
        %v1947 = vpack.c.b16 %v1883, %v1879
        %v1948 = vpack.c.b16 %v1884, %v1880
        %2013 = vmatpush.bf16.msra.mxu0 %v1913
        %2014 = vmatpush.bf16.msra.mxu0 %v1909
        %2015 = vmatpush.bf16.msra.mxu0 %v1905
        %2016 = vmatpush.bf16.msra.mxu0 %v1901
        %2017 = vmatpush.bf16.msra.mxu0 %v1897
        %2018 = vmatpush.bf16.msra.mxu0 %v1893
        %2019 = vmatpush.bf16.msra.mxu0 %v1889
        %2020 = vmatpush.bf16.msra.mxu0 %v1885
        %2021 = vmatmul.bf16.gmra.mxu0 %v1611
        %v2022 = vpop.f32.mrf.mxu0
        %v2023 = vadd.f32 %v1685, %v2022
        %v2024 = vpop.f32.mrf.mxu0
        %v2025 = vadd.f32 %v1685, %v2024
        %2026 = vmatmul.bf16.gmra.mxu0 %v1613
        %v2027 = vpop.f32.mrf.mxu0
        %v2028 = vadd.f32 %v1685, %v2027
        %v2029 = vpop.f32.mrf.mxu0
        %v2030 = vadd.f32 %v1685, %v2029
        %2031 = vmatmul.bf16.gmra.mxu0 %v1615
        %v2032 = vpop.f32.mrf.mxu0
        %v2033 = vadd.f32 %v1685, %v2032
        %v2034 = vpop.f32.mrf.mxu0
        %v2035 = vadd.f32 %v1685, %v2034
        %2036 = vmatmul.bf16.gmra.mxu0 %v1617
        %v2037 = vpop.f32.mrf.mxu0
        %v2038 = vadd.f32 %v1685, %v2037
        %v2039 = vpop.f32.mrf.mxu0
        %v2040 = vadd.f32 %v1685, %v2039
        %2041 = vdwg.mxu0
        %2042 = vmatpush.bf16.msra.mxu0 %v1945
        %2043 = vmatpush.bf16.msra.mxu0 %v1941
        %2044 = vmatpush.bf16.msra.mxu0 %v1937
        %2045 = vmatpush.bf16.msra.mxu0 %v1933
        %2046 = vmatpush.bf16.msra.mxu0 %v1929
        %2047 = vmatpush.bf16.msra.mxu0 %v1925
        %2048 = vmatpush.bf16.msra.mxu0 %v1921
        %2049 = vmatpush.bf16.msra.mxu0 %v1917
        %2050 = vmatmul.bf16.gmra.mxu0 %v1612
        %v2051 = vpop.f32.mrf.mxu0
        %v2052 = vadd.f32 %v2023, %v2051
        %v2053 = vpop.f32.mrf.mxu0
        %v2054 = vadd.f32 %v2025, %v2053
        %2055 = vmatmul.bf16.gmra.mxu0 %v1614
        %v2056 = vpop.f32.mrf.mxu0
        %v2057 = vadd.f32 %v2028, %v2056
        %v2058 = vpop.f32.mrf.mxu0
        %v2059 = vadd.f32 %v2030, %v2058
        %2060 = vmatmul.bf16.gmra.mxu0 %v1616
        %v2061 = vpop.f32.mrf.mxu0
        %v2062 = vadd.f32 %v2033, %v2061
        %v2063 = vpop.f32.mrf.mxu0
        %v2064 = vadd.f32 %v2035, %v2063
        %2065 = vmatmul.bf16.gmra.mxu0 %v1618
        %v2066 = vpop.f32.mrf.mxu0
        %v2067 = vadd.f32 %v2038, %v2066
        %v2068 = vpop.f32.mrf.mxu0
        %v2069 = vadd.f32 %v2040, %v2068
        %2070 = vdwg.mxu0
        %2071 = vmatpush.bf16.msra.mxu0 %v1914
        %2072 = vmatpush.bf16.msra.mxu0 %v1910
        %2073 = vmatpush.bf16.msra.mxu0 %v1906
        %2074 = vmatpush.bf16.msra.mxu0 %v1902
        %2075 = vmatpush.bf16.msra.mxu0 %v1898
        %2076 = vmatpush.bf16.msra.mxu0 %v1894
        %2077 = vmatpush.bf16.msra.mxu0 %v1890
        %2078 = vmatpush.bf16.msra.mxu0 %v1886
        %2079 = vmatmul.bf16.gmra.mxu0 %v1611
        %v2080 = vpop.f32.mrf.mxu0
        %v2081 = vadd.f32 %v1686, %v2080
        %v2082 = vpop.f32.mrf.mxu0
        %v2083 = vadd.f32 %v1686, %v2082
        %2084 = vmatmul.bf16.gmra.mxu0 %v1613
        %v2085 = vpop.f32.mrf.mxu0
        %v2086 = vadd.f32 %v1686, %v2085
        %v2087 = vpop.f32.mrf.mxu0
        %v2088 = vadd.f32 %v1686, %v2087
        %2089 = vmatmul.bf16.gmra.mxu0 %v1615
        %v2090 = vpop.f32.mrf.mxu0
        %v2091 = vadd.f32 %v1686, %v2090
        %v2092 = vpop.f32.mrf.mxu0
        %v2093 = vadd.f32 %v1686, %v2092
        %2094 = vmatmul.bf16.gmra.mxu0 %v1617
        %v2095 = vpop.f32.mrf.mxu0
        %v2096 = vadd.f32 %v1686, %v2095
        %v2097 = vpop.f32.mrf.mxu0
        %v2098 = vadd.f32 %v1686, %v2097
        %2099 = vdwg.mxu0
        %2100 = vmatpush.bf16.msra.mxu0 %v1946
        %2101 = vmatpush.bf16.msra.mxu0 %v1942
        %2102 = vmatpush.bf16.msra.mxu0 %v1938
        %2103 = vmatpush.bf16.msra.mxu0 %v1934
        %2104 = vmatpush.bf16.msra.mxu0 %v1930
        %2105 = vmatpush.bf16.msra.mxu0 %v1926
        %2106 = vmatpush.bf16.msra.mxu0 %v1922
        %2107 = vmatpush.bf16.msra.mxu0 %v1918
        %2108 = vmatmul.bf16.gmra.mxu0 %v1612
        %v2109 = vpop.f32.mrf.mxu0
        %v2110 = vadd.f32 %v2081, %v2109
        %v2111 = vpop.f32.mrf.mxu0
        %v2112 = vadd.f32 %v2083, %v2111
        %2113 = vmatmul.bf16.gmra.mxu0 %v1614
        %v2114 = vpop.f32.mrf.mxu0
        %v2115 = vadd.f32 %v2086, %v2114
        %v2116 = vpop.f32.mrf.mxu0
        %v2117 = vadd.f32 %v2088, %v2116
        %2118 = vmatmul.bf16.gmra.mxu0 %v1616
        %v2119 = vpop.f32.mrf.mxu0
        %v2120 = vadd.f32 %v2091, %v2119
        %v2121 = vpop.f32.mrf.mxu0
        %v2122 = vadd.f32 %v2093, %v2121
        %2123 = vmatmul.bf16.gmra.mxu0 %v1618
        %v2124 = vpop.f32.mrf.mxu0
        %v2125 = vadd.f32 %v2096, %v2124
        %v2126 = vpop.f32.mrf.mxu0
        %v2127 = vadd.f32 %v2098, %v2126
        %2128 = vdwg.mxu0
        %2129 = vmatpush.bf16.msra.mxu0 %v1915
        %2130 = vmatpush.bf16.msra.mxu0 %v1911
        %2131 = vmatpush.bf16.msra.mxu0 %v1907
        %2132 = vmatpush.bf16.msra.mxu0 %v1903
        %2133 = vmatpush.bf16.msra.mxu0 %v1899
        %2134 = vmatpush.bf16.msra.mxu0 %v1895
        %2135 = vmatpush.bf16.msra.mxu0 %v1891
        %2136 = vmatpush.bf16.msra.mxu0 %v1887
        %2137 = vmatmul.bf16.gmra.mxu0 %v1611
        %v2138 = vpop.f32.mrf.mxu0
        %v2139 = vadd.f32 %v1687, %v2138
        %v2140 = vpop.f32.mrf.mxu0
        %v2141 = vadd.f32 %v1687, %v2140
        %2142 = vmatmul.bf16.gmra.mxu0 %v1613
        %v2143 = vpop.f32.mrf.mxu0
        %v2144 = vadd.f32 %v1687, %v2143
        %v2145 = vpop.f32.mrf.mxu0
        %v2146 = vadd.f32 %v1687, %v2145
        %2147 = vmatmul.bf16.gmra.mxu0 %v1615
        %v2148 = vpop.f32.mrf.mxu0
        %v2149 = vadd.f32 %v1687, %v2148
        %v2150 = vpop.f32.mrf.mxu0
        %v2151 = vadd.f32 %v1687, %v2150
        %2152 = vmatmul.bf16.gmra.mxu0 %v1617
        %v2153 = vpop.f32.mrf.mxu0
        %v2154 = vadd.f32 %v1687, %v2153
        %v2155 = vpop.f32.mrf.mxu0
        %v2156 = vadd.f32 %v1687, %v2155
        %2157 = vdwg.mxu0
        %2158 = vmatpush.bf16.msra.mxu0 %v1947
        %2159 = vmatpush.bf16.msra.mxu0 %v1943
        %2160 = vmatpush.bf16.msra.mxu0 %v1939
        %2161 = vmatpush.bf16.msra.mxu0 %v1935
        %2162 = vmatpush.bf16.msra.mxu0 %v1931
        %2163 = vmatpush.bf16.msra.mxu0 %v1927
        %2164 = vmatpush.bf16.msra.mxu0 %v1923
        %2165 = vmatpush.bf16.msra.mxu0 %v1919
        %2166 = vmatmul.bf16.gmra.mxu0 %v1612
        %v2167 = vpop.f32.mrf.mxu0
        %v2168 = vadd.f32 %v2139, %v2167
        %v2169 = vpop.f32.mrf.mxu0
        %v2170 = vadd.f32 %v2141, %v2169
        %2171 = vmatmul.bf16.gmra.mxu0 %v1614
        %v2172 = vpop.f32.mrf.mxu0
        %v2173 = vadd.f32 %v2144, %v2172
        %v2174 = vpop.f32.mrf.mxu0
        %v2175 = vadd.f32 %v2146, %v2174
        %2176 = vmatmul.bf16.gmra.mxu0 %v1616
        %v2177 = vpop.f32.mrf.mxu0
        %v2178 = vadd.f32 %v2149, %v2177
        %v2179 = vpop.f32.mrf.mxu0
        %v2180 = vadd.f32 %v2151, %v2179
        %2181 = vmatmul.bf16.gmra.mxu0 %v1618
        %v2182 = vpop.f32.mrf.mxu0
        %v2183 = vadd.f32 %v2154, %v2182
        %v2184 = vpop.f32.mrf.mxu0
        %v2185 = vadd.f32 %v2156, %v2184
        %2186 = vdwg.mxu0
        %2187 = vmatpush.bf16.msra.mxu0 %v1916
        %2188 = vmatpush.bf16.msra.mxu0 %v1912
        %2189 = vmatpush.bf16.msra.mxu0 %v1908
        %2190 = vmatpush.bf16.msra.mxu0 %v1904
        %2191 = vmatpush.bf16.msra.mxu0 %v1900
        %2192 = vmatpush.bf16.msra.mxu0 %v1896
        %2193 = vmatpush.bf16.msra.mxu0 %v1892
        %2194 = vmatpush.bf16.msra.mxu0 %v1888
        %2195 = vmatmul.bf16.gmra.mxu0 %v1611
        %v2196 = vpop.f32.mrf.mxu0
        %v2197 = vadd.f32 %v1688, %v2196
        %v2198 = vpop.f32.mrf.mxu0
        %v2199 = vadd.f32 %v1688, %v2198
        %2200 = vmatmul.bf16.gmra.mxu0 %v1613
        %v2201 = vpop.f32.mrf.mxu0
        %v2202 = vadd.f32 %v1688, %v2201
        %v2203 = vpop.f32.mrf.mxu0
        %v2204 = vadd.f32 %v1688, %v2203
        %2205 = vmatmul.bf16.gmra.mxu0 %v1615
        %v2206 = vpop.f32.mrf.mxu0
        %v2207 = vadd.f32 %v1688, %v2206
        %v2208 = vpop.f32.mrf.mxu0
        %v2209 = vadd.f32 %v1688, %v2208
        %2210 = vmatmul.bf16.gmra.mxu0 %v1617
        %v2211 = vpop.f32.mrf.mxu0
        %v2212 = vadd.f32 %v1688, %v2211
        %v2213 = vpop.f32.mrf.mxu0
        %v2214 = vadd.f32 %v1688, %v2213
        %2215 = vdwg.mxu0
        %2216 = vmatpush.bf16.msra.mxu0 %v1948
        %2217 = vmatpush.bf16.msra.mxu0 %v1944
        %2218 = vmatpush.bf16.msra.mxu0 %v1940
        %2219 = vmatpush.bf16.msra.mxu0 %v1936
        %2220 = vmatpush.bf16.msra.mxu0 %v1932
        %2221 = vmatpush.bf16.msra.mxu0 %v1928
        %2222 = vmatpush.bf16.msra.mxu0 %v1924
        %2223 = vmatpush.bf16.msra.mxu0 %v1920
        %2224 = vmatmul.bf16.gmra.mxu0 %v1612
        %v2225 = vpop.f32.mrf.mxu0
        %v2226 = vadd.f32 %v2197, %v2225
        %v2227 = vpop.f32.mrf.mxu0
        %v2228 = vadd.f32 %v2199, %v2227
        %2229 = vmatmul.bf16.gmra.mxu0 %v1614
        %v2230 = vpop.f32.mrf.mxu0
        %v2231 = vadd.f32 %v2202, %v2230
        %v2232 = vpop.f32.mrf.mxu0
        %v2233 = vadd.f32 %v2204, %v2232
        %2234 = vmatmul.bf16.gmra.mxu0 %v1616
        %v2235 = vpop.f32.mrf.mxu0
        %v2236 = vadd.f32 %v2207, %v2235
        %v2237 = vpop.f32.mrf.mxu0
        %v2238 = vadd.f32 %v2209, %v2237
        %2239 = vmatmul.bf16.gmra.mxu0 %v1618
        %v2240 = vpop.f32.mrf.mxu0
        %v2241 = vadd.f32 %v2212, %v2240
        %v2242 = vpop.f32.mrf.mxu0
        %v2243 = vadd.f32 %v2214, %v2242
        %2244 = vdwg.mxu0
        %v2245 = vpack.c.bf16 %v2110, %v2052
        %v2246 = vpack.c.bf16 %v2226, %v2168
        %v2247 = vpack.c.bf16 %v2112, %v2054
        %v2248 = vpack.c.bf16 %v2228, %v2170
        %v2249 = vpack.c.bf16 %v2115, %v2057
        %v2250 = vpack.c.bf16 %v2231, %v2173
        %v2251 = vpack.c.bf16 %v2117, %v2059
        %v2252 = vpack.c.bf16 %v2233, %v2175
        %v2253 = vpack.c.bf16 %v2120, %v2062
        %v2254 = vpack.c.bf16 %v2236, %v2178
        %v2255 = vpack.c.bf16 %v2122, %v2064
        %v2256 = vpack.c.bf16 %v2238, %v2180
        %v2257 = vpack.c.bf16 %v2125, %v2067
        %v2258 = vpack.c.bf16 %v2241, %v2183
        %v2259 = vpack.c.bf16 %v2127, %v2069
        %v2260 = vpack.c.bf16 %v2243, %v2185
        %2261 = vst [vmem:[%s460] sm:$0xff] %v2245
        %2262 = vst [vmem:[%s460 + $0x8] sm:$0xff] %v2246
        %2263 = vst [vmem:[%s460 + $0x10] sm:$0xff] %v2247
        %2264 = vst [vmem:[%s460 + $0x18] sm:$0xff] %v2248
        %2265 = vst [vmem:[%s460 + $0x20] sm:$0xff] %v2249
        %2266 = vst [vmem:[%s460 + $0x28] sm:$0xff] %v2250
        %2267 = vst [vmem:[%s460 + $0x30] sm:$0xff] %v2251
        %2268 = vst [vmem:[%s460 + $0x38] sm:$0xff] %v2252
        %2269 = vst [vmem:[%s460 + $0x40] sm:$0xff] %v2253
        %2270 = vst [vmem:[%s460 + $0x48] sm:$0xff] %v2254
        %2271 = vst [vmem:[%s460 + $0x50] sm:$0xff] %v2255
        %2272 = vst [vmem:[%s460 + $0x58] sm:$0xff] %v2256
        %2273 = vst [vmem:[%s460 + $0x60] sm:$0xff] %v2257
        %2274 = vst [vmem:[%s460 + $0x68] sm:$0xff] %v2258
        %2275 = vst [vmem:[%s460 + $0x70] sm:$0xff] %v2259
        %2276 = vst [vmem:[%s460 + $0x78] sm:$0xff] %v2260
        %2277 = vst [vmem:[%s467] sm:$0xff] %v1391
        %2278 = vst [vmem:[%s467 + $0x8] sm:$0xff] %v1393
        %2279 = vst [vmem:[%s467 + $0x10] sm:$0xff] %v1396
        %2280 = vst [vmem:[%s467 + $0x18] sm:$0xff] %v1398
        %2281 = vst [vmem:[%s467 + $0x20] sm:$0xff] %v1401
        %2282 = vst [vmem:[%s467 + $0x28] sm:$0xff] %v1403
        %2283 = vst [vmem:[%s467 + $0x30] sm:$0xff] %v1406
        %2284 = vst [vmem:[%s467 + $0x38] sm:$0xff] %v1408
        %s2285 = sand.u32 %s261, 1
        %s2286 = scalar_lea.sflag [#allocation4], %s2285
        %s2287 = sand.u32 %s261, 1
        %s2288 = smul.addr %s2287, 128
        %s2289 = scalar_lea.vmem [#allocation8], %s2288
        %s2290 = sand.u32 %s287, 1
        %s2291 = scalar_lea.sflag [#allocation10], %s2290
        %s2292 = sand.u32 %s287, 1
        %s2293 = smul.addr %s2292, 64
        %s2294 = scalar_lea.vmem [#allocation9], %s2293
        // Predicated region
        $region73: #{tpu_custom_call.1} parent=59 // pred_check
          %p2295 = pneg %p271
        $region74: #{tpu_custom_call.1} parent=59 // pred_check_branch
          %2297 = sbr.rel (%p2295) target = $region76
        $region75: #{tpu_custom_call.1} parent=59 // pred_region
          %s2298 = smul.u32 8, %s33
          %2300 = vsyncadd %s2286, 0
          %s2301 = smul.addr %s2298, 4
          %s2302 = smul.addr %s2301, 4
          %s2303 = scalar_lea.hbm %s10, %s2302
          %s2304 = sshll.u32 %s2289, 4
          %s2305 = int_to_ptr.vmem [resolvable:$true] %s2304
          %s2306 = sshll.u32 %s2303, 4
          %s2307 = int_to_ptr.hbm [resolvable:$true] %s2306
          %2312 = dma.vmem_to_hbm [thread:$0]  %s2305, 2048, %s2307, %s2286, 256, 256, 16
        $region76: #{tpu_custom_call.1} parent=59 // pred_fallthru
          _
        // Predicated region
        $region77: #{tpu_custom_call.1} parent=59 // pred_check
          %p2313 = pneg %p297
        $region78: #{tpu_custom_call.1} parent=59 // pred_check_branch
          %2315 = sbr.rel (%p2313) target = $region80
        $region79: #{tpu_custom_call.1} parent=59 // pred_region
          %s2316 = smul.u32 8, %s33
          %2318 = vsyncadd %s2291, 0
          %s2319 = smul.addr %s2316, 8
          %s2320 = scalar_lea.hbm %s11, %s2319
          %s2321 = sshll.u32 %s2294, 4
          %s2322 = int_to_ptr.vmem [resolvable:$true] %s2321
          %s2323 = sshll.u32 %s2320, 4
          %s2324 = int_to_ptr.hbm [resolvable:$true] %s2323
          %2329 = dma.vmem_to_hbm [thread:$0]  %s2322, 1024, %s2324, %s2291, 128, 128, 8
        $region80: #{tpu_custom_call.1} parent=59 // pred_fallthru
          _
      $region60: #{tpu_custom_call.1} parent=5 // pred_fallthru
        _
      %p2330 = scmp.le.s32.totalorder 2, %s28
      // Predicated region
      $region81: #{tpu_custom_call.1} parent=5 // pred_check
        %p2331 = pneg %p2330
      $region82: #{tpu_custom_call.1} parent=5 // pred_check_branch
        %2333 = sbr.rel (%p2331) target = $region84
      $region83: #{tpu_custom_call.1} parent=5 // pred_region
        %s2334 = ssub.s32 %s28, 2
        // Predicated region
        $region85: #{tpu_custom_call.1} parent=83 // pred_check
          %p2335 = pneg %p277
        $region86: #{tpu_custom_call.1} parent=83 // pred_check_branch
          %2337 = sbr.rel (%p2335) target = $region88
        $region87: #{tpu_custom_call.1} parent=83 // pred_region
          %s2338 = sand.u32 %s262, 1
          %s2339 = scalar_lea.sflag [#allocation4], %s2338
          %s2340 = sand.u32 %s262, 1
          %s2341 = smul.addr %s2340, 128
          %s2342 = scalar_lea.vmem [#allocation8], %s2341
          %2344 = dma.done %s2339, 2048
        $region88: #{tpu_custom_call.1} parent=83 // pred_fallthru
          _
        // Predicated region
        $region89: #{tpu_custom_call.1} parent=83 // pred_check
          %p2345 = pneg %p303
        $region90: #{tpu_custom_call.1} parent=83 // pred_check_branch
          %2347 = sbr.rel (%p2345) target = $region92
        $region91: #{tpu_custom_call.1} parent=83 // pred_region
          %s2348 = sand.u32 %s288, 1
          %s2349 = scalar_lea.sflag [#allocation10], %s2348
          %s2350 = sand.u32 %s288, 1
          %s2351 = smul.addr %s2350, 64
          %s2352 = scalar_lea.vmem [#allocation9], %s2351
          %2354 = dma.done %s2349, 1024
        $region92: #{tpu_custom_call.1} parent=83 // pred_fallthru
          _
      $region84: #{tpu_custom_call.1} parent=5 // pred_fallthru
        _
    $region6: #{tpu_custom_call.1} parent=1 // loop_footer
      %s32 = sadd.s32 1, %s28
    $region7: #{tpu_custom_call.1} parent=1 // loop_footer_branch
      %27 = sbr.rel target = $region3
    $region8: #{tpu_custom_call.1} parent=1 // loop_exit
      _
    %2355 = vsyncpa [#allocation3], 1
    %s2356 = scalar_lea.sflag [#allocation3], 1
    %2357 = vsyncpa %s2356, 1
    %2358 = vsyncpa [#allocation6], 1
    %2359 = vsyncpa [#allocation4], 1
    %s2360 = scalar_lea.sflag [#allocation4], 1
    %2361 = vsyncpa %s2360, 1
    %2362 = vsyncpa [#allocation10], 1
    %s2363 = scalar_lea.sflag [#allocation10], 1
    %2364 = vsyncpa %s2363, 1

</llo_original>
